<compile_context>
chip_gen: v6e
topology: v6e:2x2x1
jax: 0.10.0
libtpu: 0.0.40
codegen_flags: <defaults>
</compile_context>

<pallas_src>
import functools

import numpy as np
import jax
import jax.numpy as jnp
from jax.experimental import pallas as pl
from jax.experimental.pallas import tpu as pltpu

CHANNELS = [None, 32, 64, 128, 256]      # ResUNetBN2C
TR_CHANNELS = [None, 64, 64, 64, 128]
BN_EPS = 1e-5
DET_EPS = 1e-12


def _round_up(x, m):
    return (x + m - 1) // m * m


# --------------------------- fused backbone kernel ---------------------------

def _fused_backbone_kernel(x_ref, *refs, cout):
    """One point tile through the whole ResUNetBN2C chain + detection gamma.

    refs = (w_0, ..., w_25, bias_stack_ref, out_ref); weights are bf16 with the
    BN scale pre-folded, bias_stack is (n_bias, 256) f32 with per-layer bias
    rows in consumption order.
    """
    o_ref = refs[-1]
    bias_ref = refs[-2]
    w_it = iter(refs[:-2])
    nxt = lambda: next(w_it)
    _bias_ctr = [0]

    def bias(c):
        i = _bias_ctr[0]
        _bias_ctr[0] += 1
        return bias_ref[i:i + 1, :c]                  # (1, c) f32, static slice

    def dot(a_bf16, w_ref):
        # bf16 MXU matmul, f32 accumulation.
        return jnp.dot(a_bf16, w_ref[...], preferred_element_type=jnp.float32)

    def lin_bn(x, c):
        # conv(kernel-center) + folded BN (no relu; a residual block follows).
        return (dot(x, nxt()) + bias(c)).astype(jnp.bfloat16)

    def lin_bn_skip(a, b, c):
        # conv over ME.cat(a, b): weight rows pre-split in the wrapper.
        wa, wb = nxt(), nxt()
        return (dot(a, wa) + dot(b, wb) + bias(c)).astype(jnp.bfloat16)

    def resblk(x, c):
        # FCGF BasicBlockBN: conv->BN->relu->conv->BN, += residual, relu.
        h = jnp.maximum(dot(x, nxt()) + bias(c), 0.0).astype(jnp.bfloat16)
        y = dot(h, nxt()) + bias(c)
        return jnp.maximum(y + x.astype(jnp.float32), 0.0).astype(jnp.bfloat16)

    CH, TR = CHANNELS, TR_CHANNELS
    x = x_ref[...].astype(jnp.bfloat16)               # (tile, cin_pad)

    # ----- encoder -----
    out_s1 = resblk(lin_bn(x, CH[1]), CH[1])
    out_s2 = resblk(lin_bn(out_s1, CH[2]), CH[2])
    out_s4 = resblk(lin_bn(out_s2, CH[3]), CH[3])
    out_s8 = resblk(lin_bn(out_s4, CH[4]), CH[4])
    # ----- decoder (blocks end in relu, so the outer MEF.relu is idempotent) --
    out_s4_tr = resblk(lin_bn(out_s8, TR[4]), TR[4])
    out_s2_tr = resblk(lin_bn_skip(out_s4_tr, out_s4, TR[3]), TR[3])
    out_s1_tr = resblk(lin_bn_skip(out_s2_tr, out_s2, TR[2]), TR[2])

    # conv1_tr (kernel_size=1, no BN/bias) over cat(out_s1_tr, out_s1) + relu.
    wa, wb = nxt(), nxt()
    h = jnp.maximum(dot(out_s1_tr, wa) + dot(out_s1, wb), 0.0).astype(jnp.bfloat16)
    # final (kernel_size=1, has_bias=True); normalize_feature=None -> raw feats.
    feat = dot(h, nxt()) + bias(cout)                 # (tile, cout) f32

    # Detection per-point numerator (alpha_en=False path):
    #   f = relu(feat); beta = f / rowmax(f); gamma = rowmax(beta)
    f = jnp.maximum(feat, 0.0)
    ml = jnp.max(f, axis=1, keepdims=True)
    inv = pl.reciprocal(jnp.maximum(ml, DET_EPS), approx=True)   # EUP slot
    gamma = jnp.max(f * inv, axis=1, keepdims=True)              # (tile, 1)

    # Packed, lane-dense output block: feat in [:cout], gamma broadcast after.
    ow = o_ref.shape[1]
    o_ref[:, :cout] = feat
    o_ref[:, cout:] = jnp.broadcast_to(gamma, (gamma.shape[0], ow - cout))


def _flatten_backbone_params(p, cin, cin_pad):
    """Flatten params in kernel consumption order.

    Returns (weights, bias_stack): weights are bf16 with the BN scale folded
    in (skip-concat conv weights split into per-branch row blocks, conv1 rows
    zero-padded to cin_pad); bias_stack is an (n_bias_pad, 256) f32 matrix of
    per-layer bias rows in the same order the kernel consumes them.
    """
    TR = TR_CHANNELS
    weights, biases = [], []

    def fold(w, bn):
        s, b = bn
        weights.append((w * s).astype(jnp.bfloat16))
        biases.append(b)

    def fold_split(w, split, bn):
        s, b = bn
        ws = w * s
        weights.append(ws[:split].astype(jnp.bfloat16))
        weights.append(ws[split:].astype(jnp.bfloat16))
        biases.append(b)

    def blk(b):
        fold(b['w1'], b['bn1'])
        fold(b['w2'], b['bn2'])

    w1 = p['conv1']
    w1p = jnp.zeros((cin_pad, w1.shape[1]), w1.dtype).at[:cin].set(w1)

    fold(w1p, p['norm1']);            blk(p['block1'])
    fold(p['conv2'], p['norm2']);     blk(p['block2'])
    fold(p['conv3'], p['norm3']);     blk(p['block3'])
    fold(p['conv4'], p['norm4']);     blk(p['block4'])
    fold(p['conv4_tr'], p['norm4_tr']); blk(p['block4_tr'])
    # conv3_tr rows: [out_s4_tr (TR[4]) | out_s4 (CH[3])]
    fold_split(p['conv3_tr'], TR[4], p['norm3_tr']); blk(p['block3_tr'])
    # conv2_tr rows: [out_s2_tr (TR[3]) | out_s2 (CH[2])]
    fold_split(p['conv2_tr'], TR[3], p['norm2_tr']); blk(p['block2_tr'])
    # conv1_tr rows: [out_s1_tr (TR[2]) | out_s1 (CH[1])]  (no BN, no bias)
    w = p['conv1_tr'].astype(jnp.bfloat16)
    weights.append(w[:TR[2]])
    weights.append(w[TR[2]:])
    # final (bias only).
    weights.append(p['final_w'].astype(jnp.bfloat16))
    biases.append(p['final_b'])

    bias_w = _round_up(max(b.shape[1] for b in biases), 128)
    n_bias = _round_up(len(biases), 8)
    bias_stack = jnp.zeros((n_bias, bias_w), jnp.float32)
    for i, b in enumerate(biases):
        bias_stack = bias_stack.at[i, :b.shape[1]].set(b[0].astype(jnp.float32))
    return weights, bias_stack


def backbone_forward(p, x, *, tile_n=1024):
    """Fused backbone + detection gamma.

    Returns (features (N, Cout) f32, gamma (N,) f32).  N is padded internally
    to a multiple of the point tile; the tile is capped so there are at least
    two grid steps when the cloud is large enough (v7x dual-TensorCore).
    """
    n, cin = x.shape
    cout = p['final_w'].shape[1]

    cin_pad = _round_up(max(cin, 8), 8)
    out_width = _round_up(cout + 1, 64)          # lane-dense feat+gamma block

    half = _round_up(max((n + 1) // 2, 1), 8)
    tile = max(8, min(tile_n, half))
    n_pad = _round_up(n, tile)

    x_pad = jnp.zeros((n_pad, cin_pad), jnp.float32).at[:n, :cin].set(
        x.astype(jnp.float32))
    weights, bias_stack = _flatten_backbone_params(p, cin, cin_pad)

    # Advisory cost estimate (helps XLA overlap the two backbone invocations).
    matmul_elems = sum(int(w.shape[0]) * int(w.shape[1]) for w in weights)
    w_bytes = (sum(int(w.size) * w.dtype.itemsize for w in weights)
               + int(bias_stack.size) * 4)
    cost = pl.CostEstimate(
        flops=2 * n_pad * matmul_elems,
        transcendentals=n_pad,
        bytes_accessed=int(n_pad * cin_pad * 4 + n_pad * out_width * 4 + w_bytes),
    )

    param_specs = ([pl.BlockSpec(w.shape, lambda i: (0, 0)) for w in weights]
                   + [pl.BlockSpec(bias_stack.shape, lambda i: (0, 0))])

    packed = pl.pallas_call(
        functools.partial(_fused_backbone_kernel, cout=cout),
        out_shape=jax.ShapeDtypeStruct((n_pad, out_width), jnp.float32),
        grid=(n_pad // tile,),
        in_specs=[pl.BlockSpec((tile, cin_pad), lambda i: (i, 0))] + param_specs,
        out_specs=pl.BlockSpec((tile, out_width), lambda i: (i, 0)),
        compiler_params=pltpu.CompilerParams(
            dimension_semantics=("parallel",),
            vmem_limit_bytes=48 * 1024 * 1024,
        ),
        cost_estimate=cost,
    )(x_pad, *weights, bias_stack)

    return packed[:n, :cout], packed[:n, cout]


# --------------------------- detection (per-segment norm) --------------------

def _segment_normalize(gamma, seg_lens):
    # score = gamma / ||gamma||_2 within each batch segment (one segment_sum,
    # no per-segment slicing/concatenation).  The heavy per-point detection
    # math is already fused into the backbone kernel.
    seg_lens = [int(l) for l in seg_lens]
    seg_ids = jnp.asarray(np.repeat(np.arange(len(seg_lens)), seg_lens))
    sq = jax.ops.segment_sum(gamma * gamma, seg_ids, num_segments=len(seg_lens))
    inv = jax.lax.rsqrt(sq + DET_EPS)
    return gamma * inv[seg_ids]


# --------------------------- parameters --------------------------------------

def _conv_w(key, cin, cout):
    return jax.random.normal(key, (cin, cout), jnp.float32) * (1.0 / jnp.sqrt(cin))


def _bn(key, c):
    # Inference-mode MinkowskiBatchNorm: running_mean=0, running_var=1 folded
    # into a per-channel scale/bias.
    k1, k2 = jax.random.split(key)
    gamma = 1.0 + 0.1 * jax.random.normal(k1, (1, c), jnp.float32)
    beta = 0.1 * jax.random.normal(k2, (1, c), jnp.float32)
    scale = gamma / jnp.sqrt(1.0 + BN_EPS)
    return scale, beta


def make_backbone_params(key, in_channels=3, out_channels=32):
    CH, TR = CHANNELS, TR_CHANNELS
    keys = iter(jax.random.split(key, 64))

    def conv(cin, cout):
        return _conv_w(next(keys), cin, cout)

    def bn(c):
        return _bn(next(keys), c)

    def block(c):
        return dict(w1=conv(c, c), bn1=bn(c), w2=conv(c, c), bn2=bn(c))

    p = {}
    p['conv1'] = conv(in_channels, CH[1]); p['norm1'] = bn(CH[1]); p['block1'] = block(CH[1])
    p['conv2'] = conv(CH[1], CH[2]);       p['norm2'] = bn(CH[2]); p['block2'] = block(CH[2])
    p['conv3'] = conv(CH[2], CH[3]);       p['norm3'] = bn(CH[3]); p['block3'] = block(CH[3])
    p['conv4'] = conv(CH[3], CH[4]);       p['norm4'] = bn(CH[4]); p['block4'] = block(CH[4])
    p['conv4_tr'] = conv(CH[4], TR[4]);          p['norm4_tr'] = bn(TR[4]); p['block4_tr'] = block(TR[4])
    p['conv3_tr'] = conv(CH[3] + TR[4], TR[3]);  p['norm3_tr'] = bn(TR[3]); p['block3_tr'] = block(TR[3])
    p['conv2_tr'] = conv(CH[2] + TR[3], TR[2]);  p['norm2_tr'] = bn(TR[2]); p['block2_tr'] = block(TR[2])
    p['conv1_tr'] = conv(CH[1] + TR[2], TR[1])
    p['final_w'] = conv(TR[1], out_channels)
    p['final_b'] = 0.1 * jax.random.normal(next(keys), (1, out_channels), jnp.float32)
    return p


# --------------------------- forward pass -------------------------------------

def jointnet_forward(params0, params1, x0_feats, x1_feats, coords0, coords1, len_batch):
    # TODO(synk): MinkowskiEngine kernel_size>1 sparse convolutions (neighbor
    # gather via the coordinate manager) and stride-2 coordinate downsampling
    # have no clean Pallas equivalent; they are approximated as per-point
    # (kernel-center) linear maps so the point set N is preserved through the
    # U-Net.  kernel_size=1 layers (conv1_tr, final) are exact.
    feature0, gamma0 = backbone_forward(params0, x0_feats)
    feature1, gamma1 = backbone_forward(params1, x1_feats)

    # TODO(synk): alpha_en=True branch of Detection (topk nearest-neighbor /
    # exp-softmax over coords) is not implemented; default alpha_en=False path
    # is implemented (coords unused there).
    del coords0, coords1

    score0 = _segment_normalize(gamma0, [b[0] for b in len_batch])
    score1 = _segment_normalize(gamma1, [b[1] for b in len_batch])
    return {'feature0': feature0, 'feature1': feature1,
            'score0': score0, 'score1': score1}


# --------------------------- demo ---------------------------------------------

if __name__ == "__main__":
    key = jax.random.PRNGKey(0)
    k_p0, k_p1, k_x0, k_x1, k_c0, k_c1 = jax.random.split(key, 6)

    in_channels, out_channels = 3, 32
    len_batch = [[8, 8], [8, 8]]                  # 2 batch items, 8 points each per cloud
    N0 = sum(b[0] for b in len_batch)
    N1 = sum(b[1] for b in len_batch)

    x0_feats = jax.random.normal(k_x0, (N0, in_channels), jnp.float32)
    x1_feats = jax.random.normal(k_x1, (N1, in_channels), jnp.float32)
    coords0 = jax.random.randint(k_c0, (N0, 4), 0, 20, jnp.int32)
    coords1 = jax.random.randint(k_c1, (N1, 4), 0, 20, jnp.int32)

    params0 = make_backbone_params(k_p0, in_channels, out_channels)   # feature_extraction0
    params1 = make_backbone_params(k_p1, in_channels, out_channels)   # feature_extraction1

    out = jointnet_forward(params0, params1, x0_feats, x1_feats,
                           coords0, coords1, len_batch)
    jax.block_until_ready(out)
    assert out['feature0'].shape == (N0, out_channels)
    assert out['feature1'].shape == (N1, out_channels)
    assert out['score0'].shape == (N0,)
    assert out['score1'].shape == (N1,)
    assert bool(jnp.isfinite(out['feature0']).all()) and bool(jnp.isfinite(out['feature1']).all())
    assert bool(jnp.isfinite(out['score0']).all()) and bool(jnp.isfinite(out['score1']).all())
    print("KERNEL_OK")
</pallas_src>

<mosaic_0001>
module attributes {stable_mosaic.version = 11 : i64} {
  func.func @_fused_backbone_kernel(%arg0: i32, %arg1: memref<8x8xf32, #tpu.memory_space<vmem>>, %arg2: memref<8x32xbf16, #tpu.memory_space<vmem>>, %arg3: memref<32x32xbf16, #tpu.memory_space<vmem>>, %arg4: memref<32x32xbf16, #tpu.memory_space<vmem>>, %arg5: memref<32x64xbf16, #tpu.memory_space<vmem>>, %arg6: memref<64x64xbf16, #tpu.memory_space<vmem>>, %arg7: memref<64x64xbf16, #tpu.memory_space<vmem>>, %arg8: memref<64x128xbf16, #tpu.memory_space<vmem>>, %arg9: memref<128x128xbf16, #tpu.memory_space<vmem>>, %arg10: memref<128x128xbf16, #tpu.memory_space<vmem>>, %arg11: memref<128x256xbf16, #tpu.memory_space<vmem>>, %arg12: memref<256x256xbf16, #tpu.memory_space<vmem>>, %arg13: memref<256x256xbf16, #tpu.memory_space<vmem>>, %arg14: memref<256x128xbf16, #tpu.memory_space<vmem>>, %arg15: memref<128x128xbf16, #tpu.memory_space<vmem>>, %arg16: memref<128x128xbf16, #tpu.memory_space<vmem>>, %arg17: memref<128x64xbf16, #tpu.memory_space<vmem>>, %arg18: memref<128x64xbf16, #tpu.memory_space<vmem>>, %arg19: memref<64x64xbf16, #tpu.memory_space<vmem>>, %arg20: memref<64x64xbf16, #tpu.memory_space<vmem>>, %arg21: memref<64x64xbf16, #tpu.memory_space<vmem>>, %arg22: memref<64x64xbf16, #tpu.memory_space<vmem>>, %arg23: memref<64x64xbf16, #tpu.memory_space<vmem>>, %arg24: memref<64x64xbf16, #tpu.memory_space<vmem>>, %arg25: memref<64x64xbf16, #tpu.memory_space<vmem>>, %arg26: memref<32x64xbf16, #tpu.memory_space<vmem>>, %arg27: memref<64x32xbf16, #tpu.memory_space<vmem>>, %arg28: memref<24x256xf32, #tpu.memory_space<vmem>>, %arg29: memref<8x64xf32, #tpu.memory_space<vmem>>) attributes {dimension_semantics = [#tpu.dimension_semantics<parallel>], iteration_bounds = array<i64: 2>, scalar_prefetch = 0 : i64, scratch_operands = 0 : i64, tpu.core_type = #tpu.core_type<tc>, window_params = [{transform_indices = @transform_0, window_bounds = array<i64: 8, 8>}, {pipeline_mode = #tpu.pipeline_mode<synchronous>, transform_indices = @transform_1, window_bounds = array<i64: 8, 32>}, {pipeline_mode = #tpu.pipeline_mode<synchronous>, transform_indices = @transform_2, window_bounds = array<i64: 32, 32>}, {pipeline_mode = #tpu.pipeline_mode<synchronous>, transform_indices = @transform_3, window_bounds = array<i64: 32, 32>}, {pipeline_mode = #tpu.pipeline_mode<synchronous>, transform_indices = @transform_4, window_bounds = array<i64: 32, 64>}, {pipeline_mode = #tpu.pipeline_mode<synchronous>, transform_indices = @transform_5, window_bounds = array<i64: 64, 64>}, {pipeline_mode = #tpu.pipeline_mode<synchronous>, transform_indices = @transform_6, window_bounds = array<i64: 64, 64>}, {pipeline_mode = #tpu.pipeline_mode<synchronous>, transform_indices = @transform_7, window_bounds = array<i64: 64, 128>}, {pipeline_mode = #tpu.pipeline_mode<synchronous>, transform_indices = @transform_8, window_bounds = array<i64: 128, 128>}, {pipeline_mode = #tpu.pipeline_mode<synchronous>, transform_indices = @transform_9, window_bounds = array<i64: 128, 128>}, {pipeline_mode = #tpu.pipeline_mode<synchronous>, transform_indices = @transform_10, window_bounds = array<i64: 128, 256>}, {pipeline_mode = #tpu.pipeline_mode<synchronous>, transform_indices = @transform_11, window_bounds = array<i64: 256, 256>}, {pipeline_mode = #tpu.pipeline_mode<synchronous>, transform_indices = @transform_12, window_bounds = array<i64: 256, 256>}, {pipeline_mode = #tpu.pipeline_mode<synchronous>, transform_indices = @transform_13, window_bounds = array<i64: 256, 128>}, {pipeline_mode = #tpu.pipeline_mode<synchronous>, transform_indices = @transform_14, window_bounds = array<i64: 128, 128>}, {pipeline_mode = #tpu.pipeline_mode<synchronous>, transform_indices = @transform_15, window_bounds = array<i64: 128, 128>}, {pipeline_mode = #tpu.pipeline_mode<synchronous>, transform_indices = @transform_16, window_bounds = array<i64: 128, 64>}, {pipeline_mode = #tpu.pipeline_mode<synchronous>, transform_indices = @transform_17, window_bounds = array<i64: 128, 64>}, {pipeline_mode = #tpu.pipeline_mode<synchronous>, transform_indices = @transform_18, window_bounds = array<i64: 64, 64>}, {pipeline_mode = #tpu.pipeline_mode<synchronous>, transform_indices = @transform_19, window_bounds = array<i64: 64, 64>}, {pipeline_mode = #tpu.pipeline_mode<synchronous>, transform_indices = @transform_20, window_bounds = array<i64: 64, 64>}, {pipeline_mode = #tpu.pipeline_mode<synchronous>, transform_indices = @transform_21, window_bounds = array<i64: 64, 64>}, {pipeline_mode = #tpu.pipeline_mode<synchronous>, transform_indices = @transform_22, window_bounds = array<i64: 64, 64>}, {pipeline_mode = #tpu.pipeline_mode<synchronous>, transform_indices = @transform_23, window_bounds = array<i64: 64, 64>}, {pipeline_mode = #tpu.pipeline_mode<synchronous>, transform_indices = @transform_24, window_bounds = array<i64: 64, 64>}, {pipeline_mode = #tpu.pipeline_mode<synchronous>, transform_indices = @transform_25, window_bounds = array<i64: 32, 64>}, {pipeline_mode = #tpu.pipeline_mode<synchronous>, transform_indices = @transform_26, window_bounds = array<i64: 64, 32>}, {pipeline_mode = #tpu.pipeline_mode<synchronous>, transform_indices = @transform_27, window_bounds = array<i64: 24, 256>}, {transform_indices = @transform_28, window_bounds = array<i64: 8, 64>}]} {
    %c0 = arith.constant 0 : index
    %c0_0 = arith.constant 0 : index
    %0 = vector.load %arg1[%c0, %c0_0] : memref<8x8xf32, #tpu.memory_space<vmem>>, vector<8x8xf32>
    %1 = arith.truncf %0 : vector<8x8xf32> to vector<8x8xbf16>
    %c0_1 = arith.constant 0 : index
    %c0_2 = arith.constant 0 : index
    %2 = vector.load %arg2[%c0_1, %c0_2] : memref<8x32xbf16, #tpu.memory_space<vmem>>, vector<8x32xbf16>
    %cst = arith.constant dense<0.000000e+00> : vector<8x32xf32>
    %3 = tpu.matmul %1, %2, %cst {dimension_numbers = #tpu.dot_dimension_numbers<[1], [0], [0], [1], [0, 0, 1, 1], [], []>} : vector<8x8xbf16>, vector<8x32xbf16>, vector<8x32xf32> -> vector<8x32xf32>
    %c0_3 = arith.constant 0 : index
    %c0_4 = arith.constant 0 : index
    %4 = vector.load %arg28[%c0_3, %c0_4] : memref<24x256xf32, #tpu.memory_space<vmem>>, vector<1x32xf32>
    %5 = vector.broadcast %4 : vector<1x32xf32> to vector<8x32xf32>
    %6 = arith.addf %3, %5 : vector<8x32xf32>
    %7 = arith.truncf %6 : vector<8x32xf32> to vector<8x32xbf16>
    %c0_5 = arith.constant 0 : index
    %c0_6 = arith.constant 0 : index
    %8 = vector.load %arg3[%c0_5, %c0_6] : memref<32x32xbf16, #tpu.memory_space<vmem>>, vector<32x32xbf16>
    %cst_7 = arith.constant dense<0.000000e+00> : vector<8x32xf32>
    %9 = tpu.matmul %7, %8, %cst_7 {dimension_numbers = #tpu.dot_dimension_numbers<[1], [0], [0], [1], [0, 0, 1, 1], [], []>} : vector<8x32xbf16>, vector<32x32xbf16>, vector<8x32xf32> -> vector<8x32xf32>
    %c1 = arith.constant 1 : index
    %c0_8 = arith.constant 0 : index
    %10 = vector.load %arg28[%c1, %c0_8] : memref<24x256xf32, #tpu.memory_space<vmem>>, vector<1x32xf32>
    %11 = vector.broadcast %10 : vector<1x32xf32> to vector<8x32xf32>
    %12 = arith.addf %9, %11 : vector<8x32xf32>
    %cst_9 = arith.constant 0.000000e+00 : f32
    %13 = vector.broadcast %cst_9 : f32 to vector<8x32xf32>
    %14 = arith.maximumf %12, %13 : vector<8x32xf32>
    %15 = arith.truncf %14 : vector<8x32xf32> to vector<8x32xbf16>
    %c0_10 = arith.constant 0 : index
    %c0_11 = arith.constant 0 : index
    %16 = vector.load %arg4[%c0_10, %c0_11] : memref<32x32xbf16, #tpu.memory_space<vmem>>, vector<32x32xbf16>
    %cst_12 = arith.constant dense<0.000000e+00> : vector<8x32xf32>
    %17 = tpu.matmul %15, %16, %cst_12 {dimension_numbers = #tpu.dot_dimension_numbers<[1], [0], [0], [1], [0, 0, 1, 1], [], []>} : vector<8x32xbf16>, vector<32x32xbf16>, vector<8x32xf32> -> vector<8x32xf32>
    %c2 = arith.constant 2 : index
    %c0_13 = arith.constant 0 : index
    %18 = vector.load %arg28[%c2, %c0_13] : memref<24x256xf32, #tpu.memory_space<vmem>>, vector<1x32xf32>
    %19 = vector.broadcast %18 : vector<1x32xf32> to vector<8x32xf32>
    %20 = arith.addf %17, %19 : vector<8x32xf32>
    %21 = arith.extf %7 : vector<8x32xbf16> to vector<8x32xf32>
    %22 = arith.addf %20, %21 : vector<8x32xf32>
    %cst_14 = arith.constant 0.000000e+00 : f32
    %23 = vector.broadcast %cst_14 : f32 to vector<8x32xf32>
    %24 = arith.maximumf %22, %23 : vector<8x32xf32>
    %25 = arith.truncf %24 : vector<8x32xf32> to vector<8x32xbf16>
    %c0_15 = arith.constant 0 : index
    %c0_16 = arith.constant 0 : index
    %26 = vector.load %arg5[%c0_15, %c0_16] : memref<32x64xbf16, #tpu.memory_space<vmem>>, vector<32x64xbf16>
    %cst_17 = arith.constant dense<0.000000e+00> : vector<8x64xf32>
    %27 = tpu.matmul %25, %26, %cst_17 {dimension_numbers = #tpu.dot_dimension_numbers<[1], [0], [0], [1], [0, 0, 1, 1], [], []>} : vector<8x32xbf16>, vector<32x64xbf16>, vector<8x64xf32> -> vector<8x64xf32>
    %c3 = arith.constant 3 : index
    %c0_18 = arith.constant 0 : index
    %28 = vector.load %arg28[%c3, %c0_18] : memref<24x256xf32, #tpu.memory_space<vmem>>, vector<1x64xf32>
    %29 = vector.broadcast %28 : vector<1x64xf32> to vector<8x64xf32>
    %30 = arith.addf %27, %29 : vector<8x64xf32>
    %31 = arith.truncf %30 : vector<8x64xf32> to vector<8x64xbf16>
    %c0_19 = arith.constant 0 : index
    %c0_20 = arith.constant 0 : index
    %32 = vector.load %arg6[%c0_19, %c0_20] : memref<64x64xbf16, #tpu.memory_space<vmem>>, vector<64x64xbf16>
    %cst_21 = arith.constant dense<0.000000e+00> : vector<8x64xf32>
    %33 = tpu.matmul %31, %32, %cst_21 {dimension_numbers = #tpu.dot_dimension_numbers<[1], [0], [0], [1], [0, 0, 1, 1], [], []>} : vector<8x64xbf16>, vector<64x64xbf16>, vector<8x64xf32> -> vector<8x64xf32>
    %c4 = arith.constant 4 : index
    %c0_22 = arith.constant 0 : index
    %34 = vector.load %arg28[%c4, %c0_22] : memref<24x256xf32, #tpu.memory_space<vmem>>, vector<1x64xf32>
    %35 = vector.broadcast %34 : vector<1x64xf32> to vector<8x64xf32>
    %36 = arith.addf %33, %35 : vector<8x64xf32>
    %cst_23 = arith.constant 0.000000e+00 : f32
    %37 = vector.broadcast %cst_23 : f32 to vector<8x64xf32>
    %38 = arith.maximumf %36, %37 : vector<8x64xf32>
    %39 = arith.truncf %38 : vector<8x64xf32> to vector<8x64xbf16>
    %c0_24 = arith.constant 0 : index
    %c0_25 = arith.constant 0 : index
    %40 = vector.load %arg7[%c0_24, %c0_25] : memref<64x64xbf16, #tpu.memory_space<vmem>>, vector<64x64xbf16>
    %cst_26 = arith.constant dense<0.000000e+00> : vector<8x64xf32>
    %41 = tpu.matmul %39, %40, %cst_26 {dimension_numbers = #tpu.dot_dimension_numbers<[1], [0], [0], [1], [0, 0, 1, 1], [], []>} : vector<8x64xbf16>, vector<64x64xbf16>, vector<8x64xf32> -> vector<8x64xf32>
    %c5 = arith.constant 5 : index
    %c0_27 = arith.constant 0 : index
    %42 = vector.load %arg28[%c5, %c0_27] : memref<24x256xf32, #tpu.memory_space<vmem>>, vector<1x64xf32>
    %43 = vector.broadcast %42 : vector<1x64xf32> to vector<8x64xf32>
    %44 = arith.addf %41, %43 : vector<8x64xf32>
    %45 = arith.extf %31 : vector<8x64xbf16> to vector<8x64xf32>
    %46 = arith.addf %44, %45 : vector<8x64xf32>
    %cst_28 = arith.constant 0.000000e+00 : f32
    %47 = vector.broadcast %cst_28 : f32 to vector<8x64xf32>
    %48 = arith.maximumf %46, %47 : vector<8x64xf32>
    %49 = arith.truncf %48 : vector<8x64xf32> to vector<8x64xbf16>
    %c0_29 = arith.constant 0 : index
    %c0_30 = arith.constant 0 : index
    %50 = vector.load %arg8[%c0_29, %c0_30] : memref<64x128xbf16, #tpu.memory_space<vmem>>, vector<64x128xbf16>
    %cst_31 = arith.constant dense<0.000000e+00> : vector<8x128xf32>
    %51 = tpu.matmul %49, %50, %cst_31 {dimension_numbers = #tpu.dot_dimension_numbers<[1], [0], [0], [1], [0, 0, 1, 1], [], []>} : vector<8x64xbf16>, vector<64x128xbf16>, vector<8x128xf32> -> vector<8x128xf32>
    %c6 = arith.constant 6 : index
    %c0_32 = arith.constant 0 : index
    %52 = vector.load %arg28[%c6, %c0_32] : memref<24x256xf32, #tpu.memory_space<vmem>>, vector<1x128xf32>
    %53 = vector.broadcast %52 : vector<1x128xf32> to vector<8x128xf32>
    %54 = arith.addf %51, %53 : vector<8x128xf32>
    %55 = arith.truncf %54 : vector<8x128xf32> to vector<8x128xbf16>
    %c0_33 = arith.constant 0 : index
    %c0_34 = arith.constant 0 : index
    %56 = vector.load %arg9[%c0_33, %c0_34] : memref<128x128xbf16, #tpu.memory_space<vmem>>, vector<128x128xbf16>
    %cst_35 = arith.constant dense<0.000000e+00> : vector<8x128xf32>
    %57 = tpu.matmul %55, %56, %cst_35 {dimension_numbers = #tpu.dot_dimension_numbers<[1], [0], [0], [1], [0, 0, 1, 1], [], []>} : vector<8x128xbf16>, vector<128x128xbf16>, vector<8x128xf32> -> vector<8x128xf32>
    %c7 = arith.constant 7 : index
    %c0_36 = arith.constant 0 : index
    %58 = vector.load %arg28[%c7, %c0_36] : memref<24x256xf32, #tpu.memory_space<vmem>>, vector<1x128xf32>
    %59 = vector.broadcast %58 : vector<1x128xf32> to vector<8x128xf32>
    %60 = arith.addf %57, %59 : vector<8x128xf32>
    %cst_37 = arith.constant 0.000000e+00 : f32
    %61 = vector.broadcast %cst_37 : f32 to vector<8x128xf32>
    %62 = arith.maximumf %60, %61 : vector<8x128xf32>
    %63 = arith.truncf %62 : vector<8x128xf32> to vector<8x128xbf16>
    %c0_38 = arith.constant 0 : index
    %c0_39 = arith.constant 0 : index
    %64 = vector.load %arg10[%c0_38, %c0_39] : memref<128x128xbf16, #tpu.memory_space<vmem>>, vector<128x128xbf16>
    %cst_40 = arith.constant dense<0.000000e+00> : vector<8x128xf32>
    %65 = tpu.matmul %63, %64, %cst_40 {dimension_numbers = #tpu.dot_dimension_numbers<[1], [0], [0], [1], [0, 0, 1, 1], [], []>} : vector<8x128xbf16>, vector<128x128xbf16>, vector<8x128xf32> -> vector<8x128xf32>
    %c8 = arith.constant 8 : index
    %c0_41 = arith.constant 0 : index
    %66 = vector.load %arg28[%c8, %c0_41] : memref<24x256xf32, #tpu.memory_space<vmem>>, vector<1x128xf32>
    %67 = vector.broadcast %66 : vector<1x128xf32> to vector<8x128xf32>
    %68 = arith.addf %65, %67 : vector<8x128xf32>
    %69 = arith.extf %55 : vector<8x128xbf16> to vector<8x128xf32>
    %70 = arith.addf %68, %69 : vector<8x128xf32>
    %cst_42 = arith.constant 0.000000e+00 : f32
    %71 = vector.broadcast %cst_42 : f32 to vector<8x128xf32>
    %72 = arith.maximumf %70, %71 : vector<8x128xf32>
    %73 = arith.truncf %72 : vector<8x128xf32> to vector<8x128xbf16>
    %c0_43 = arith.constant 0 : index
    %c0_44 = arith.constant 0 : index
    %74 = vector.load %arg11[%c0_43, %c0_44] : memref<128x256xbf16, #tpu.memory_space<vmem>>, vector<128x256xbf16>
    %cst_45 = arith.constant dense<0.000000e+00> : vector<8x256xf32>
    %75 = tpu.matmul %73, %74, %cst_45 {dimension_numbers = #tpu.dot_dimension_numbers<[1], [0], [0], [1], [0, 0, 1, 1], [], []>} : vector<8x128xbf16>, vector<128x256xbf16>, vector<8x256xf32> -> vector<8x256xf32>
    %c9 = arith.constant 9 : index
    %c0_46 = arith.constant 0 : index
    %76 = vector.load %arg28[%c9, %c0_46] : memref<24x256xf32, #tpu.memory_space<vmem>>, vector<1x256xf32>
    %77 = vector.broadcast %76 : vector<1x256xf32> to vector<8x256xf32>
    %78 = arith.addf %75, %77 : vector<8x256xf32>
    %79 = arith.truncf %78 : vector<8x256xf32> to vector<8x256xbf16>
    %c0_47 = arith.constant 0 : index
    %c0_48 = arith.constant 0 : index
    %80 = vector.load %arg12[%c0_47, %c0_48] : memref<256x256xbf16, #tpu.memory_space<vmem>>, vector<256x256xbf16>
    %cst_49 = arith.constant dense<0.000000e+00> : vector<8x256xf32>
    %81 = tpu.matmul %79, %80, %cst_49 {dimension_numbers = #tpu.dot_dimension_numbers<[1], [0], [0], [1], [0, 0, 1, 1], [], []>} : vector<8x256xbf16>, vector<256x256xbf16>, vector<8x256xf32> -> vector<8x256xf32>
    %c10 = arith.constant 10 : index
    %c0_50 = arith.constant 0 : index
    %82 = vector.load %arg28[%c10, %c0_50] : memref<24x256xf32, #tpu.memory_space<vmem>>, vector<1x256xf32>
    %83 = vector.broadcast %82 : vector<1x256xf32> to vector<8x256xf32>
    %84 = arith.addf %81, %83 : vector<8x256xf32>
    %cst_51 = arith.constant 0.000000e+00 : f32
    %85 = vector.broadcast %cst_51 : f32 to vector<8x256xf32>
    %86 = arith.maximumf %84, %85 : vector<8x256xf32>
    %87 = arith.truncf %86 : vector<8x256xf32> to vector<8x256xbf16>
    %c0_52 = arith.constant 0 : index
    %c0_53 = arith.constant 0 : index
    %88 = vector.load %arg13[%c0_52, %c0_53] : memref<256x256xbf16, #tpu.memory_space<vmem>>, vector<256x256xbf16>
    %cst_54 = arith.constant dense<0.000000e+00> : vector<8x256xf32>
    %89 = tpu.matmul %87, %88, %cst_54 {dimension_numbers = #tpu.dot_dimension_numbers<[1], [0], [0], [1], [0, 0, 1, 1], [], []>} : vector<8x256xbf16>, vector<256x256xbf16>, vector<8x256xf32> -> vector<8x256xf32>
    %c11 = arith.constant 11 : index
    %c0_55 = arith.constant 0 : index
    %90 = vector.load %arg28[%c11, %c0_55] : memref<24x256xf32, #tpu.memory_space<vmem>>, vector<1x256xf32>
    %91 = vector.broadcast %90 : vector<1x256xf32> to vector<8x256xf32>
    %92 = arith.addf %89, %91 : vector<8x256xf32>
    %93 = arith.extf %79 : vector<8x256xbf16> to vector<8x256xf32>
    %94 = arith.addf %92, %93 : vector<8x256xf32>
    %cst_56 = arith.constant 0.000000e+00 : f32
    %95 = vector.broadcast %cst_56 : f32 to vector<8x256xf32>
    %96 = arith.maximumf %94, %95 : vector<8x256xf32>
    %97 = arith.truncf %96 : vector<8x256xf32> to vector<8x256xbf16>
    %c0_57 = arith.constant 0 : index
    %c0_58 = arith.constant 0 : index
    %98 = vector.load %arg14[%c0_57, %c0_58] : memref<256x128xbf16, #tpu.memory_space<vmem>>, vector<256x128xbf16>
    %cst_59 = arith.constant dense<0.000000e+00> : vector<8x128xf32>
    %99 = tpu.matmul %97, %98, %cst_59 {dimension_numbers = #tpu.dot_dimension_numbers<[1], [0], [0], [1], [0, 0, 1, 1], [], []>} : vector<8x256xbf16>, vector<256x128xbf16>, vector<8x128xf32> -> vector<8x128xf32>
    %c12 = arith.constant 12 : index
    %c0_60 = arith.constant 0 : index
    %100 = vector.load %arg28[%c12, %c0_60] : memref<24x256xf32, #tpu.memory_space<vmem>>, vector<1x128xf32>
    %101 = vector.broadcast %100 : vector<1x128xf32> to vector<8x128xf32>
    %102 = arith.addf %99, %101 : vector<8x128xf32>
    %103 = arith.truncf %102 : vector<8x128xf32> to vector<8x128xbf16>
    %c0_61 = arith.constant 0 : index
    %c0_62 = arith.constant 0 : index
    %104 = vector.load %arg15[%c0_61, %c0_62] : memref<128x128xbf16, #tpu.memory_space<vmem>>, vector<128x128xbf16>
    %cst_63 = arith.constant dense<0.000000e+00> : vector<8x128xf32>
    %105 = tpu.matmul %103, %104, %cst_63 {dimension_numbers = #tpu.dot_dimension_numbers<[1], [0], [0], [1], [0, 0, 1, 1], [], []>} : vector<8x128xbf16>, vector<128x128xbf16>, vector<8x128xf32> -> vector<8x128xf32>
    %c13 = arith.constant 13 : index
    %c0_64 = arith.constant 0 : index
    %106 = vector.load %arg28[%c13, %c0_64] : memref<24x256xf32, #tpu.memory_space<vmem>>, vector<1x128xf32>
    %107 = vector.broadcast %106 : vector<1x128xf32> to vector<8x128xf32>
    %108 = arith.addf %105, %107 : vector<8x128xf32>
    %cst_65 = arith.constant 0.000000e+00 : f32
    %109 = vector.broadcast %cst_65 : f32 to vector<8x128xf32>
    %110 = arith.maximumf %108, %109 : vector<8x128xf32>
    %111 = arith.truncf %110 : vector<8x128xf32> to vector<8x128xbf16>
    %c0_66 = arith.constant 0 : index
    %c0_67 = arith.constant 0 : index
    %112 = vector.load %arg16[%c0_66, %c0_67] : memref<128x128xbf16, #tpu.memory_space<vmem>>, vector<128x128xbf16>
    %cst_68 = arith.constant dense<0.000000e+00> : vector<8x128xf32>
    %113 = tpu.matmul %111, %112, %cst_68 {dimension_numbers = #tpu.dot_dimension_numbers<[1], [0], [0], [1], [0, 0, 1, 1], [], []>} : vector<8x128xbf16>, vector<128x128xbf16>, vector<8x128xf32> -> vector<8x128xf32>
    %c14 = arith.constant 14 : index
    %c0_69 = arith.constant 0 : index
    %114 = vector.load %arg28[%c14, %c0_69] : memref<24x256xf32, #tpu.memory_space<vmem>>, vector<1x128xf32>
    %115 = vector.broadcast %114 : vector<1x128xf32> to vector<8x128xf32>
    %116 = arith.addf %113, %115 : vector<8x128xf32>
    %117 = arith.extf %103 : vector<8x128xbf16> to vector<8x128xf32>
    %118 = arith.addf %116, %117 : vector<8x128xf32>
    %cst_70 = arith.constant 0.000000e+00 : f32
    %119 = vector.broadcast %cst_70 : f32 to vector<8x128xf32>
    %120 = arith.maximumf %118, %119 : vector<8x128xf32>
    %121 = arith.truncf %120 : vector<8x128xf32> to vector<8x128xbf16>
    %c0_71 = arith.constant 0 : index
    %c0_72 = arith.constant 0 : index
    %122 = vector.load %arg17[%c0_71, %c0_72] : memref<128x64xbf16, #tpu.memory_space<vmem>>, vector<128x64xbf16>
    %cst_73 = arith.constant dense<0.000000e+00> : vector<8x64xf32>
    %123 = tpu.matmul %121, %122, %cst_73 {dimension_numbers = #tpu.dot_dimension_numbers<[1], [0], [0], [1], [0, 0, 1, 1], [], []>} : vector<8x128xbf16>, vector<128x64xbf16>, vector<8x64xf32> -> vector<8x64xf32>
    %c0_74 = arith.constant 0 : index
    %c0_75 = arith.constant 0 : index
    %124 = vector.load %arg18[%c0_74, %c0_75] : memref<128x64xbf16, #tpu.memory_space<vmem>>, vector<128x64xbf16>
    %cst_76 = arith.constant dense<0.000000e+00> : vector<8x64xf32>
    %125 = tpu.matmul %73, %124, %cst_76 {dimension_numbers = #tpu.dot_dimension_numbers<[1], [0], [0], [1], [0, 0, 1, 1], [], []>} : vector<8x128xbf16>, vector<128x64xbf16>, vector<8x64xf32> -> vector<8x64xf32>
    %126 = arith.addf %123, %125 : vector<8x64xf32>
    %c15 = arith.constant 15 : index
    %c0_77 = arith.constant 0 : index
    %127 = vector.load %arg28[%c15, %c0_77] : memref<24x256xf32, #tpu.memory_space<vmem>>, vector<1x64xf32>
    %128 = vector.broadcast %127 : vector<1x64xf32> to vector<8x64xf32>
    %129 = arith.addf %126, %128 : vector<8x64xf32>
    %130 = arith.truncf %129 : vector<8x64xf32> to vector<8x64xbf16>
    %c0_78 = arith.constant 0 : index
    %c0_79 = arith.constant 0 : index
    %131 = vector.load %arg19[%c0_78, %c0_79] : memref<64x64xbf16, #tpu.memory_space<vmem>>, vector<64x64xbf16>
    %cst_80 = arith.constant dense<0.000000e+00> : vector<8x64xf32>
    %132 = tpu.matmul %130, %131, %cst_80 {dimension_numbers = #tpu.dot_dimension_numbers<[1], [0], [0], [1], [0, 0, 1, 1], [], []>} : vector<8x64xbf16>, vector<64x64xbf16>, vector<8x64xf32> -> vector<8x64xf32>
    %c16 = arith.constant 16 : index
    %c0_81 = arith.constant 0 : index
    %133 = vector.load %arg28[%c16, %c0_81] : memref<24x256xf32, #tpu.memory_space<vmem>>, vector<1x64xf32>
    %134 = vector.broadcast %133 : vector<1x64xf32> to vector<8x64xf32>
    %135 = arith.addf %132, %134 : vector<8x64xf32>
    %cst_82 = arith.constant 0.000000e+00 : f32
    %136 = vector.broadcast %cst_82 : f32 to vector<8x64xf32>
    %137 = arith.maximumf %135, %136 : vector<8x64xf32>
    %138 = arith.truncf %137 : vector<8x64xf32> to vector<8x64xbf16>
    %c0_83 = arith.constant 0 : index
    %c0_84 = arith.constant 0 : index
    %139 = vector.load %arg20[%c0_83, %c0_84] : memref<64x64xbf16, #tpu.memory_space<vmem>>, vector<64x64xbf16>
    %cst_85 = arith.constant dense<0.000000e+00> : vector<8x64xf32>
    %140 = tpu.matmul %138, %139, %cst_85 {dimension_numbers = #tpu.dot_dimension_numbers<[1], [0], [0], [1], [0, 0, 1, 1], [], []>} : vector<8x64xbf16>, vector<64x64xbf16>, vector<8x64xf32> -> vector<8x64xf32>
    %c17 = arith.constant 17 : index
    %c0_86 = arith.constant 0 : index
    %141 = vector.load %arg28[%c17, %c0_86] : memref<24x256xf32, #tpu.memory_space<vmem>>, vector<1x64xf32>
    %142 = vector.broadcast %141 : vector<1x64xf32> to vector<8x64xf32>
    %143 = arith.addf %140, %142 : vector<8x64xf32>
    %144 = arith.extf %130 : vector<8x64xbf16> to vector<8x64xf32>
    %145 = arith.addf %143, %144 : vector<8x64xf32>
    %cst_87 = arith.constant 0.000000e+00 : f32
    %146 = vector.broadcast %cst_87 : f32 to vector<8x64xf32>
    %147 = arith.maximumf %145, %146 : vector<8x64xf32>
    %148 = arith.truncf %147 : vector<8x64xf32> to vector<8x64xbf16>
    %c0_88 = arith.constant 0 : index
    %c0_89 = arith.constant 0 : index
    %149 = vector.load %arg21[%c0_88, %c0_89] : memref<64x64xbf16, #tpu.memory_space<vmem>>, vector<64x64xbf16>
    %cst_90 = arith.constant dense<0.000000e+00> : vector<8x64xf32>
    %150 = tpu.matmul %148, %149, %cst_90 {dimension_numbers = #tpu.dot_dimension_numbers<[1], [0], [0], [1], [0, 0, 1, 1], [], []>} : vector<8x64xbf16>, vector<64x64xbf16>, vector<8x64xf32> -> vector<8x64xf32>
    %c0_91 = arith.constant 0 : index
    %c0_92 = arith.constant 0 : index
    %151 = vector.load %arg22[%c0_91, %c0_92] : memref<64x64xbf16, #tpu.memory_space<vmem>>, vector<64x64xbf16>
    %cst_93 = arith.constant dense<0.000000e+00> : vector<8x64xf32>
    %152 = tpu.matmul %49, %151, %cst_93 {dimension_numbers = #tpu.dot_dimension_numbers<[1], [0], [0], [1], [0, 0, 1, 1], [], []>} : vector<8x64xbf16>, vector<64x64xbf16>, vector<8x64xf32> -> vector<8x64xf32>
    %153 = arith.addf %150, %152 : vector<8x64xf32>
    %c18 = arith.constant 18 : index
    %c0_94 = arith.constant 0 : index
    %154 = vector.load %arg28[%c18, %c0_94] : memref<24x256xf32, #tpu.memory_space<vmem>>, vector<1x64xf32>
    %155 = vector.broadcast %154 : vector<1x64xf32> to vector<8x64xf32>
    %156 = arith.addf %153, %155 : vector<8x64xf32>
    %157 = arith.truncf %156 : vector<8x64xf32> to vector<8x64xbf16>
    %c0_95 = arith.constant 0 : index
    %c0_96 = arith.constant 0 : index
    %158 = vector.load %arg23[%c0_95, %c0_96] : memref<64x64xbf16, #tpu.memory_space<vmem>>, vector<64x64xbf16>
    %cst_97 = arith.constant dense<0.000000e+00> : vector<8x64xf32>
    %159 = tpu.matmul %157, %158, %cst_97 {dimension_numbers = #tpu.dot_dimension_numbers<[1], [0], [0], [1], [0, 0, 1, 1], [], []>} : vector<8x64xbf16>, vector<64x64xbf16>, vector<8x64xf32> -> vector<8x64xf32>
    %c19 = arith.constant 19 : index
    %c0_98 = arith.constant 0 : index
    %160 = vector.load %arg28[%c19, %c0_98] : memref<24x256xf32, #tpu.memory_space<vmem>>, vector<1x64xf32>
    %161 = vector.broadcast %160 : vector<1x64xf32> to vector<8x64xf32>
    %162 = arith.addf %159, %161 : vector<8x64xf32>
    %cst_99 = arith.constant 0.000000e+00 : f32
    %163 = vector.broadcast %cst_99 : f32 to vector<8x64xf32>
    %164 = arith.maximumf %162, %163 : vector<8x64xf32>
    %165 = arith.truncf %164 : vector<8x64xf32> to vector<8x64xbf16>
    %c0_100 = arith.constant 0 : index
    %c0_101 = arith.constant 0 : index
    %166 = vector.load %arg24[%c0_100, %c0_101] : memref<64x64xbf16, #tpu.memory_space<vmem>>, vector<64x64xbf16>
    %cst_102 = arith.constant dense<0.000000e+00> : vector<8x64xf32>
    %167 = tpu.matmul %165, %166, %cst_102 {dimension_numbers = #tpu.dot_dimension_numbers<[1], [0], [0], [1], [0, 0, 1, 1], [], []>} : vector<8x64xbf16>, vector<64x64xbf16>, vector<8x64xf32> -> vector<8x64xf32>
    %c20 = arith.constant 20 : index
    %c0_103 = arith.constant 0 : index
    %168 = vector.load %arg28[%c20, %c0_103] : memref<24x256xf32, #tpu.memory_space<vmem>>, vector<1x64xf32>
    %169 = vector.broadcast %168 : vector<1x64xf32> to vector<8x64xf32>
    %170 = arith.addf %167, %169 : vector<8x64xf32>
    %171 = arith.extf %157 : vector<8x64xbf16> to vector<8x64xf32>
    %172 = arith.addf %170, %171 : vector<8x64xf32>
    %cst_104 = arith.constant 0.000000e+00 : f32
    %173 = vector.broadcast %cst_104 : f32 to vector<8x64xf32>
    %174 = arith.maximumf %172, %173 : vector<8x64xf32>
    %175 = arith.truncf %174 : vector<8x64xf32> to vector<8x64xbf16>
    %c0_105 = arith.constant 0 : index
    %c0_106 = arith.constant 0 : index
    %176 = vector.load %arg25[%c0_105, %c0_106] : memref<64x64xbf16, #tpu.memory_space<vmem>>, vector<64x64xbf16>
    %cst_107 = arith.constant dense<0.000000e+00> : vector<8x64xf32>
    %177 = tpu.matmul %175, %176, %cst_107 {dimension_numbers = #tpu.dot_dimension_numbers<[1], [0], [0], [1], [0, 0, 1, 1], [], []>} : vector<8x64xbf16>, vector<64x64xbf16>, vector<8x64xf32> -> vector<8x64xf32>
    %c0_108 = arith.constant 0 : index
    %c0_109 = arith.constant 0 : index
    %178 = vector.load %arg26[%c0_108, %c0_109] : memref<32x64xbf16, #tpu.memory_space<vmem>>, vector<32x64xbf16>
    %cst_110 = arith.constant dense<0.000000e+00> : vector<8x64xf32>
    %179 = tpu.matmul %25, %178, %cst_110 {dimension_numbers = #tpu.dot_dimension_numbers<[1], [0], [0], [1], [0, 0, 1, 1], [], []>} : vector<8x32xbf16>, vector<32x64xbf16>, vector<8x64xf32> -> vector<8x64xf32>
    %180 = arith.addf %177, %179 : vector<8x64xf32>
    %cst_111 = arith.constant 0.000000e+00 : f32
    %181 = vector.broadcast %cst_111 : f32 to vector<8x64xf32>
    %182 = arith.maximumf %180, %181 : vector<8x64xf32>
    %183 = arith.truncf %182 : vector<8x64xf32> to vector<8x64xbf16>
    %c0_112 = arith.constant 0 : index
    %c0_113 = arith.constant 0 : index
    %184 = vector.load %arg27[%c0_112, %c0_113] : memref<64x32xbf16, #tpu.memory_space<vmem>>, vector<64x32xbf16>
    %cst_114 = arith.constant dense<0.000000e+00> : vector<8x32xf32>
    %185 = tpu.matmul %183, %184, %cst_114 {dimension_numbers = #tpu.dot_dimension_numbers<[1], [0], [0], [1], [0, 0, 1, 1], [], []>} : vector<8x64xbf16>, vector<64x32xbf16>, vector<8x32xf32> -> vector<8x32xf32>
    %c21 = arith.constant 21 : index
    %c0_115 = arith.constant 0 : index
    %186 = vector.load %arg28[%c21, %c0_115] : memref<24x256xf32, #tpu.memory_space<vmem>>, vector<1x32xf32>
    %187 = vector.broadcast %186 : vector<1x32xf32> to vector<8x32xf32>
    %188 = arith.addf %185, %187 : vector<8x32xf32>
    %cst_116 = arith.constant 0.000000e+00 : f32
    %189 = vector.broadcast %cst_116 : f32 to vector<8x32xf32>
    %190 = arith.maximumf %188, %189 : vector<8x32xf32>
    %cst_117 = arith.constant dense<0xFF800000> : vector<8xf32>
    %191 = vector.multi_reduction <maximumf>, %190, %cst_117 [1] : vector<8x32xf32> to vector<8xf32>
    %192 = vector.shape_cast %191 : vector<8xf32> to vector<8x1xf32>
    %cst_118 = arith.constant 9.99999996E-13 : f32
    %193 = vector.broadcast %cst_118 : f32 to vector<8x1xf32>
    %194 = arith.maximumf %192, %193 : vector<8x1xf32>
    %195 = tpu.reciprocal %194 {approx = true} : vector<8x1xf32> -> vector<8x1xf32>
    %196 = vector.broadcast %195 : vector<8x1xf32> to vector<8x32xf32>
    %197 = arith.mulf %190, %196 : vector<8x32xf32>
    %cst_119 = arith.constant dense<0xFF800000> : vector<8xf32>
    %198 = vector.multi_reduction <maximumf>, %197, %cst_119 [1] : vector<8x32xf32> to vector<8xf32>
    %199 = vector.shape_cast %198 : vector<8xf32> to vector<8x1xf32>
    %c0_120 = arith.constant 0 : index
    %c0_121 = arith.constant 0 : index
    %200 = vector.load %arg29[%c0_120, %c0_121] : memref<8x64xf32, #tpu.memory_space<vmem>>, vector<8x32xf32>
    tpu.vector_store %arg29[%c0_120, %c0_121], %188 {strides = array<i32>} : memref<8x64xf32, #tpu.memory_space<vmem>>, vector<8x32xf32>,
    %201 = vector.shape_cast %199 : vector<8x1xf32> to vector<8x1xf32>
    %202 = vector.broadcast %201 : vector<8x1xf32> to vector<8x32xf32>
    %c0_122 = arith.constant 0 : index
    %c32 = arith.constant 32 : index
    %203 = vector.load %arg29[%c0_122, %c32] : memref<8x64xf32, #tpu.memory_space<vmem>>, vector<8x32xf32>
    tpu.vector_store %arg29[%c0_122, %c32], %202 {strides = array<i32>} : memref<8x64xf32, #tpu.memory_space<vmem>>, vector<8x32xf32>,
    return
  }
  func.func @transform_0(%arg0: i32) -> (i32, i32) {
    %c0_i32 = arith.constant 0 : i32
    %c0_i32_0 = arith.constant 0 : i32
    return %arg0, %c0_i32 : i32, i32
  }
  func.func @transform_1(%arg0: i32) -> (i32, i32) {
    %c0_i32 = arith.constant 0 : i32
    %c0_i32_0 = arith.constant 0 : i32
    %c0_i32_1 = arith.constant 0 : i32
    return %c0_i32, %c0_i32_0 : i32, i32
  }
  func.func @transform_2(%arg0: i32) -> (i32, i32) {
    %c0_i32 = arith.constant 0 : i32
    %c0_i32_0 = arith.constant 0 : i32
    %c0_i32_1 = arith.constant 0 : i32
    return %c0_i32, %c0_i32_0 : i32, i32
  }
  func.func @transform_3(%arg0: i32) -> (i32, i32) {
    %c0_i32 = arith.constant 0 : i32
    %c0_i32_0 = arith.constant 0 : i32
    %c0_i32_1 = arith.constant 0 : i32
    return %c0_i32, %c0_i32_0 : i32, i32
  }
  func.func @transform_4(%arg0: i32) -> (i32, i32) {
    %c0_i32 = arith.constant 0 : i32
    %c0_i32_0 = arith.constant 0 : i32
    %c0_i32_1 = arith.constant 0 : i32
    return %c0_i32, %c0_i32_0 : i32, i32
  }
  func.func @transform_5(%arg0: i32) -> (i32, i32) {
    %c0_i32 = arith.constant 0 : i32
    %c0_i32_0 = arith.constant 0 : i32
    %c0_i32_1 = arith.constant 0 : i32
    return %c0_i32, %c0_i32_0 : i32, i32
  }
  func.func @transform_6(%arg0: i32) -> (i32, i32) {
    %c0_i32 = arith.constant 0 : i32
    %c0_i32_0 = arith.constant 0 : i32
    %c0_i32_1 = arith.constant 0 : i32
    return %c0_i32, %c0_i32_0 : i32, i32
  }
  func.func @transform_7(%arg0: i32) -> (i32, i32) {
    %c0_i32 = arith.constant 0 : i32
    %c0_i32_0 = arith.constant 0 : i32
    %c0_i32_1 = arith.constant 0 : i32
    return %c0_i32, %c0_i32_0 : i32, i32
  }
  func.func @transform_8(%arg0: i32) -> (i32, i32) {
    %c0_i32 = arith.constant 0 : i32
    %c0_i32_0 = arith.constant 0 : i32
    %c0_i32_1 = arith.constant 0 : i32
    return %c0_i32, %c0_i32_0 : i32, i32
  }
  func.func @transform_9(%arg0: i32) -> (i32, i32) {
    %c0_i32 = arith.constant 0 : i32
    %c0_i32_0 = arith.constant 0 : i32
    %c0_i32_1 = arith.constant 0 : i32
    return %c0_i32, %c0_i32_0 : i32, i32
  }
  func.func @transform_10(%arg0: i32) -> (i32, i32) {
    %c0_i32 = arith.constant 0 : i32
    %c0_i32_0 = arith.constant 0 : i32
    %c0_i32_1 = arith.constant 0 : i32
    return %c0_i32, %c0_i32_0 : i32, i32
  }
  func.func @transform_11(%arg0: i32) -> (i32, i32) {
    %c0_i32 = arith.constant 0 : i32
    %c0_i32_0 = arith.constant 0 : i32
    %c0_i32_1 = arith.constant 0 : i32
    return %c0_i32, %c0_i32_0 : i32, i32
  }
  func.func @transform_12(%arg0: i32) -> (i32, i32) {
    %c0_i32 = arith.constant 0 : i32
    %c0_i32_0 = arith.constant 0 : i32
    %c0_i32_1 = arith.constant 0 : i32
    return %c0_i32, %c0_i32_0 : i32, i32
  }
  func.func @transform_13(%arg0: i32) -> (i32, i32) {
    %c0_i32 = arith.constant 0 : i32
    %c0_i32_0 = arith.constant 0 : i32
    %c0_i32_1 = arith.constant 0 : i32
    return %c0_i32, %c0_i32_0 : i32, i32
  }
  func.func @transform_14(%arg0: i32) -> (i32, i32) {
    %c0_i32 = arith.constant 0 : i32
    %c0_i32_0 = arith.constant 0 : i32
    %c0_i32_1 = arith.constant 0 : i32
    return %c0_i32, %c0_i32_0 : i32, i32
  }
  func.func @transform_15(%arg0: i32) -> (i32, i32) {
    %c0_i32 = arith.constant 0 : i32
    %c0_i32_0 = arith.constant 0 : i32
    %c0_i32_1 = arith.constant 0 : i32
    return %c0_i32, %c0_i32_0 : i32, i32
  }
  func.func @transform_16(%arg0: i32) -> (i32, i32) {
    %c0_i32 = arith.constant 0 : i32
    %c0_i32_0 = arith.constant 0 : i32
    %c0_i32_1 = arith.constant 0 : i32
    return %c0_i32, %c0_i32_0 : i32, i32
  }
  func.func @transform_17(%arg0: i32) -> (i32, i32) {
    %c0_i32 = arith.constant 0 : i32
    %c0_i32_0 = arith.constant 0 : i32
    %c0_i32_1 = arith.constant 0 : i32
    return %c0_i32, %c0_i32_0 : i32, i32
  }
  func.func @transform_18(%arg0: i32) -> (i32, i32) {
    %c0_i32 = arith.constant 0 : i32
    %c0_i32_0 = arith.constant 0 : i32
    %c0_i32_1 = arith.constant 0 : i32
    return %c0_i32, %c0_i32_0 : i32, i32
  }
  func.func @transform_19(%arg0: i32) -> (i32, i32) {
    %c0_i32 = arith.constant 0 : i32
    %c0_i32_0 = arith.constant 0 : i32
    %c0_i32_1 = arith.constant 0 : i32
    return %c0_i32, %c0_i32_0 : i32, i32
  }
  func.func @transform_20(%arg0: i32) -> (i32, i32) {
    %c0_i32 = arith.constant 0 : i32
    %c0_i32_0 = arith.constant 0 : i32
    %c0_i32_1 = arith.constant 0 : i32
    return %c0_i32, %c0_i32_0 : i32, i32
  }
  func.func @transform_21(%arg0: i32) -> (i32, i32) {
    %c0_i32 = arith.constant 0 : i32
    %c0_i32_0 = arith.constant 0 : i32
    %c0_i32_1 = arith.constant 0 : i32
    return %c0_i32, %c0_i32_0 : i32, i32
  }
  func.func @transform_22(%arg0: i32) -> (i32, i32) {
    %c0_i32 = arith.constant 0 : i32
    %c0_i32_0 = arith.constant 0 : i32
    %c0_i32_1 = arith.constant 0 : i32
    return %c0_i32, %c0_i32_0 : i32, i32
  }
  func.func @transform_23(%arg0: i32) -> (i32, i32) {
    %c0_i32 = arith.constant 0 : i32
    %c0_i32_0 = arith.constant 0 : i32
    %c0_i32_1 = arith.constant 0 : i32
    return %c0_i32, %c0_i32_0 : i32, i32
  }
  func.func @transform_24(%arg0: i32) -> (i32, i32) {
    %c0_i32 = arith.constant 0 : i32
    %c0_i32_0 = arith.constant 0 : i32
    %c0_i32_1 = arith.constant 0 : i32
    return %c0_i32, %c0_i32_0 : i32, i32
  }
  func.func @transform_25(%arg0: i32) -> (i32, i32) {
    %c0_i32 = arith.constant 0 : i32
    %c0_i32_0 = arith.constant 0 : i32
    %c0_i32_1 = arith.constant 0 : i32
    return %c0_i32, %c0_i32_0 : i32, i32
  }
  func.func @transform_26(%arg0: i32) -> (i32, i32) {
    %c0_i32 = arith.constant 0 : i32
    %c0_i32_0 = arith.constant 0 : i32
    %c0_i32_1 = arith.constant 0 : i32
    return %c0_i32, %c0_i32_0 : i32, i32
  }
  func.func @transform_27(%arg0: i32) -> (i32, i32) {
    %c0_i32 = arith.constant 0 : i32
    %c0_i32_0 = arith.constant 0 : i32
    %c0_i32_1 = arith.constant 0 : i32
    return %c0_i32, %c0_i32_0 : i32, i32
  }
  func.func @transform_28(%arg0: i32) -> (i32, i32) {
    %c0_i32 = arith.constant 0 : i32
    %c0_i32_0 = arith.constant 0 : i32
    return %arg0, %c0_i32 : i32, i32
  }
}

</mosaic_0001>

<llo_original>
// kernel: tpu_custom_call.1
$region0: #{tpu_custom_call.1}
  #allocation0 [shape = 'u32[]', space=smem, size = 0x4, offset = 0x4, fixed_abs, tag = 'smem constant byte address 0x4 - core index']
  #allocation1 [shape = 'u32[144,128]{1,0:T(1,128)}', space=vmem, size = 0x12000, scoped, tag = 'internal scratch']
  %s0 = inlined_call_operand.vmem [shape: f32[16,8], index: 0, kind: input, shape index: {}]
  %s1 = inlined_call_operand.hbm [shape: bf16[8,32], index: 1, kind: input, shape index: {}]
  %s2 = inlined_call_operand.hbm [shape: bf16[32,32], index: 2, kind: input, shape index: {}]
  %s3 = inlined_call_operand.hbm [shape: bf16[32,32], index: 3, kind: input, shape index: {}]
  %s4 = inlined_call_operand.hbm [shape: bf16[32,64], index: 4, kind: input, shape index: {}]
  %s5 = inlined_call_operand.hbm [shape: bf16[64,64], index: 5, kind: input, shape index: {}]
  %s6 = inlined_call_operand.hbm [shape: bf16[64,64], index: 6, kind: input, shape index: {}]
  %s7 = inlined_call_operand.hbm [shape: bf16[64,128], index: 7, kind: input, shape index: {}]
  %s8 = inlined_call_operand.hbm [shape: bf16[128,128], index: 8, kind: input, shape index: {}]
  %s9 = inlined_call_operand.hbm [shape: bf16[128,128], index: 9, kind: input, shape index: {}]
  %s10 = inlined_call_operand.hbm [shape: bf16[128,256], index: 10, kind: input, shape index: {}]
  %s11 = inlined_call_operand.vmem [shape: bf16[256,256], index: 11, kind: input, shape index: {}]
  %s12 = inlined_call_operand.hbm [shape: bf16[256,256], index: 12, kind: input, shape index: {}]
  %s13 = inlined_call_operand.hbm [shape: bf16[256,128], index: 13, kind: input, shape index: {}]
  %s14 = inlined_call_operand.hbm [shape: bf16[128,128], index: 14, kind: input, shape index: {}]
  %s15 = inlined_call_operand.hbm [shape: bf16[128,128], index: 15, kind: input, shape index: {}]
  %s16 = inlined_call_operand.vmem [shape: bf16[128,64], index: 16, kind: input, shape index: {}]
  %s17 = inlined_call_operand.vmem [shape: bf16[128,64], index: 17, kind: input, shape index: {}]
  %s18 = inlined_call_operand.hbm [shape: bf16[64,64], index: 18, kind: input, shape index: {}]
  %s19 = inlined_call_operand.hbm [shape: bf16[64,64], index: 19, kind: input, shape index: {}]
  %s20 = inlined_call_operand.hbm [shape: bf16[64,64], index: 20, kind: input, shape index: {}]
  %s21 = inlined_call_operand.hbm [shape: bf16[64,64], index: 21, kind: input, shape index: {}]
  %s22 = inlined_call_operand.hbm [shape: bf16[64,64], index: 22, kind: input, shape index: {}]
  %s23 = inlined_call_operand.hbm [shape: bf16[64,64], index: 23, kind: input, shape index: {}]
  %s24 = inlined_call_operand.hbm [shape: bf16[64,64], index: 24, kind: input, shape index: {}]
  %s25 = inlined_call_operand.hbm [shape: bf16[32,64], index: 25, kind: input, shape index: {}]
  %s26 = inlined_call_operand.vmem [shape: bf16[64,32], index: 26, kind: input, shape index: {}]
  %s27 = inlined_call_operand.vmem [shape: f32[24,256], index: 27, kind: input, shape index: {}]
  %s28 = inlined_call_operand.hbm [shape: f32[16,64], index: 28, kind: output, shape index: {}]
  %s29 = sld [smem:[#allocation0]]
  $region233: #{tpu_custom_call.1} parent=0
    _
  %s31 = ssub.s32 1, %s29
  %s32 = scalar_select 0, %s31, %s29
  $region1: #{tpu_custom_call.1} parent=0
    #allocation2 [shape = 'u8[2048]{0}', space=vmem, size = 0x800, scoped, tag = 'input window, operand 1, single buffered']
    #allocation3 [shape = 's32[2]{0}', space=sflag, size = 0x8, scoped, tag = 'scoped memory for tpu_custom_call.1']
    #allocation4 [shape = 's32[2]{0}', space=sflag, size = 0x8, scoped, tag = 'scoped memory for tpu_custom_call.1']
    #allocation5 [shape = 'u8[8192]{0}', space=vmem, size = 0x2000, scoped, tag = 'input window, operand 2, single buffered']
    #allocation6 [shape = 's32[1]{0}', space=sflag, size = 0x4, scoped, tag = 'scoped memory for tpu_custom_call.1']
    #allocation7 [shape = 'u8[8192]{0}', space=vmem, size = 0x2000, scoped, tag = 'input window, operand 3, single buffered']
    #allocation8 [shape = 'u8[8192]{0}', space=vmem, size = 0x2000, scoped, tag = 'input window, operand 4, single buffered']
    #allocation9 [shape = 's32[1]{0}', space=sflag, size = 0x4, scoped, tag = 'scoped memory for tpu_custom_call.1']
    #allocation10 [shape = 'u8[16384]{0}', space=vmem, size = 0x4000, scoped, tag = 'input window, operand 5, single buffered']
    #allocation11 [shape = 'u8[16384]{0}', space=vmem, size = 0x4000, scoped, tag = 'input window, operand 6, single buffered']
    #allocation12 [shape = 's32[1]{0}', space=sflag, size = 0x4, scoped, tag = 'scoped memory for tpu_custom_call.1']
    #allocation13 [shape = 'u8[16384]{0}', space=vmem, size = 0x4000, scoped, tag = 'input window, operand 7, single buffered']
    #allocation14 [shape = 'u8[32768]{0}', space=vmem, size = 0x8000, scoped, tag = 'input window, operand 8, single buffered']
    #allocation15 [shape = 's32[1]{0}', space=sflag, size = 0x4, scoped, tag = 'scoped memory for tpu_custom_call.1']
    #allocation16 [shape = 'u8[32768]{0}', space=vmem, size = 0x8000, scoped, tag = 'input window, operand 9, single buffered']
    #allocation17 [shape = 'u8[65536]{0}', space=vmem, size = 0x10000, scoped, tag = 'input window, operand 10, single buffered']
    #allocation18 [shape = 's32[1]{0}', space=sflag, size = 0x4, scoped, tag = 'scoped memory for tpu_custom_call.1']
    #allocation19 [shape = 'u8[131072]{0}', space=vmem, size = 0x20000, scoped, tag = 'input window, operand 12, single buffered']
    #allocation20 [shape = 'u8[65536]{0}', space=vmem, size = 0x10000, scoped, tag = 'input window, operand 13, single buffered']
    #allocation21 [shape = 's32[1]{0}', space=sflag, size = 0x4, scoped, tag = 'scoped memory for tpu_custom_call.1']
    #allocation22 [shape = 'u8[32768]{0}', space=vmem, size = 0x8000, scoped, tag = 'input window, operand 14, single buffered']
    #allocation23 [shape = 'u8[32768]{0}', space=vmem, size = 0x8000, scoped, tag = 'input window, operand 15, single buffered']
    #allocation24 [shape = 's32[1]{0}', space=sflag, size = 0x4, scoped, tag = 'scoped memory for tpu_custom_call.1']
    #allocation25 [shape = 'u8[16384]{0}', space=vmem, size = 0x4000, scoped, tag = 'input window, operand 18, single buffered']
    #allocation26 [shape = 'u8[16384]{0}', space=vmem, size = 0x4000, scoped, tag = 'input window, operand 19, single buffered']
    #allocation27 [shape = 's32[1]{0}', space=sflag, size = 0x4, scoped, tag = 'scoped memory for tpu_custom_call.1']
    #allocation28 [shape = 'u8[16384]{0}', space=vmem, size = 0x4000, scoped, tag = 'input window, operand 20, single buffered']
    #allocation29 [shape = 'u8[16384]{0}', space=vmem, size = 0x4000, scoped, tag = 'input window, operand 21, single buffered']
    #allocation30 [shape = 's32[1]{0}', space=sflag, size = 0x4, scoped, tag = 'scoped memory for tpu_custom_call.1']
    #allocation31 [shape = 'u8[16384]{0}', space=vmem, size = 0x4000, scoped, tag = 'input window, operand 22, single buffered']
    #allocation32 [shape = 'u8[16384]{0}', space=vmem, size = 0x4000, scoped, tag = 'input window, operand 23, single buffered']
    #allocation33 [shape = 's32[1]{0}', space=sflag, size = 0x4, scoped, tag = 'scoped memory for tpu_custom_call.1']
    #allocation34 [shape = 'u8[16384]{0}', space=vmem, size = 0x4000, scoped, tag = 'input window, operand 24, single buffered']
    #allocation35 [shape = 'u8[8192]{0}', space=vmem, size = 0x2000, scoped, tag = 'input window, operand 25, single buffered']
    #allocation36 [shape = 's32[1]{0}', space=sflag, size = 0x4, scoped, tag = 'scoped memory for tpu_custom_call.1']
    #allocation37 [shape = 'u8[8192]{0}', space=vmem, size = 0x2000, scoped, tag = 'output window, operand 0']
    %33 = vsyncpa [#allocation3], 0
    %34 = vsyncpa [#allocation6], 0
    %35 = vsyncpa [#allocation9], 0
    %36 = vsyncpa [#allocation12], 0
    %37 = vsyncpa [#allocation15], 0
    %38 = vsyncpa [#allocation18], 0
    %39 = vsyncpa [#allocation21], 0
    %40 = vsyncpa [#allocation24], 0
    %41 = vsyncpa [#allocation27], 0
    %42 = vsyncpa [#allocation30], 0
    %43 = vsyncpa [#allocation33], 0
    %44 = vsyncpa [#allocation36], 0
    %45 = vsyncpa [#allocation4], 0
    %s46 = scalar_lea.sflag [#allocation4], 1
    %47 = vsyncpa %s46, 0
    loop: start=0, step=1, limit=4
    $region2: #{tpu_custom_call.1} parent=1 // loop_pre_header
      _
    $region3: #{tpu_custom_call.1} parent=1 // loop_header
      %s49 = sphi 0, %s53
      %p50 = scmp.ge.s32.totalorder %s49, 4
      %s59 = sphi 0, %s61
      %s62 = sphi 0, %s59
      %s63 = sphi 0, %s62
      %s79 = sphi 0, %s63
      %s83 = sphi 0, %s83
      %s85 = sphi 0, %s83
      %s86 = sphi 0, %s85
      %s100 = sphi 0, %s86
      %s104 = sphi 0, %s104
      %s106 = sphi 0, %s104
      %s107 = sphi 0, %s106
      %s121 = sphi 0, %s107
      %s125 = sphi 0, %s125
      %s127 = sphi 0, %s125
      %s128 = sphi 0, %s127
      %s142 = sphi 0, %s128
      %s146 = sphi 0, %s146
      %s148 = sphi 0, %s146
      %s149 = sphi 0, %s148
      %s163 = sphi 0, %s149
      %s167 = sphi 0, %s167
      %s169 = sphi 0, %s167
      %s170 = sphi 0, %s169
      %s184 = sphi 0, %s170
      %s188 = sphi 0, %s188
      %s190 = sphi 0, %s188
      %s191 = sphi 0, %s190
      %s205 = sphi 0, %s191
      %s209 = sphi 0, %s209
      %s211 = sphi 0, %s209
      %s212 = sphi 0, %s211
      %s226 = sphi 0, %s212
      %s230 = sphi 0, %s230
      %s232 = sphi 0, %s230
      %s233 = sphi 0, %s232
      %s247 = sphi 0, %s233
      %s251 = sphi 0, %s251
      %s253 = sphi 0, %s251
      %s254 = sphi 0, %s253
      %s268 = sphi 0, %s254
      %s272 = sphi 0, %s272
      %s274 = sphi 0, %s272
      %s275 = sphi 0, %s274
      %s289 = sphi 0, %s275
      %s293 = sphi 0, %s293
      %s295 = sphi 0, %s293
      %s296 = sphi 0, %s295
      %s310 = sphi 0, %s296
      %s314 = sphi 0, %s314
      %s316 = sphi 0, %s314
      %s317 = sphi 0, %s316
      %s331 = sphi 0, %s317
      %s335 = sphi 0, %s335
      %s337 = sphi 0, %s335
      %s338 = sphi 0, %s337
      %s352 = sphi 0, %s338
      %s356 = sphi 0, %s356
      %s358 = sphi 0, %s356
      %s359 = sphi 0, %s358
      %s373 = sphi 0, %s359
      %s377 = sphi 0, %s377
      %s379 = sphi 0, %s377
      %s380 = sphi 0, %s379
      %s394 = sphi 0, %s380
      %s398 = sphi 0, %s398
      %s400 = sphi 0, %s398
      %s401 = sphi 0, %s400
      %s415 = sphi 0, %s401
      %s419 = sphi 0, %s419
      %s421 = sphi 0, %s419
      %s422 = sphi 0, %s421
      %s436 = sphi 0, %s422
      %s440 = sphi 0, %s440
      %s442 = sphi 0, %s440
      %s443 = sphi 0, %s442
      %s457 = sphi 0, %s443
      %s461 = sphi 0, %s461
      %s463 = sphi 0, %s461
      %s464 = sphi 0, %s463
      %s478 = sphi 0, %s464
      %s482 = sphi 0, %s482
      %s484 = sphi 0, %s482
      %s485 = sphi 0, %s484
      %s499 = sphi 0, %s485
      %s503 = sphi 0, %s503
      %s505 = sphi 0, %s503
      %s506 = sphi 0, %s505
      %s520 = sphi 0, %s506
      %s524 = sphi 0, %s524
      %s526 = sphi 0, %s524
      %s527 = sphi 0, %s526
      %s541 = sphi 0, %s527
      %s545 = sphi 0, %s545
      %s547 = sphi 0, %s545
      %s548 = sphi 0, %s547
      %s562 = sphi 0, %s548
      %s566 = sphi 0, %s566
      %s568 = sphi 0, %s566
      %s569 = sphi 0, %s568
      %s583 = sphi 0, %s569
      %s587 = sphi 0, %s587
      %s589 = sphi 0, %s587
      %s590 = sphi 0, %s589
      %s604 = sphi 0, %s590
      %s608 = sphi 0, %s608
      %s610 = sphi 0, %s608
      %s611 = sphi 0, %s610
      %s625 = sphi 0, %s611
      %s629 = sphi 0, %s629
      %s631 = sphi 0, %s629
      %s632 = sphi 0, %s631
      %s646 = sphi 0, %s632
      %s652 = sphi 0, %s654
      %s655 = sphi 0, %s652
      %s656 = sphi 0, %s655
      %s672 = sphi 0, %s656
    $region4: #{tpu_custom_call.1} parent=1 // loop_header_branch
      %52 = sbr.rel (%p50) target = $region8
    $region5: #{tpu_custom_call.1} parent=1 // loop_body
      %s54 = ssub.s32 %s49, 1
      %s55 = ssub.s32 %s49, 2
      %s56 = sadd.s32 %s49, 1
      %s57 = ssub.s32 %s49, %s56
      %p58 = scmp.eq.s32.totalorder %s57, 0
      %s60 = sadd.s32 %s59, 1
      %s61 = scalar_select %p58, %s59, %s60
      %p64 = pneg %p58
      %p65 = scmp.eq.s32.totalorder %s49, 1
      %p66 = por %p64, %p65
      %p67 = scmp.ne.s32.totalorder %s59, %s62
      %p68 = scmp.eq.s32.totalorder %s49, 0
      %p69 = por %p67, %p68
      %p70 = scmp.ne.s32.totalorder %s59, %s62
      %p71 = scmp.eq.s32.totalorder %s54, 1
      %p72 = por %p70, %p71
      %p73 = scmp.ne.s32.totalorder %s62, %s63
      %p74 = scmp.eq.s32.totalorder %s54, 0
      %p75 = por %p73, %p74
      %p76 = scmp.ne.s32.totalorder %s62, %s63
      %p77 = scmp.eq.s32.totalorder %s55, 1
      %p78 = por %p76, %p77
      %p80 = scmp.ne.s32.totalorder %s63, %s79
      %p81 = scmp.eq.s32.totalorder %s55, 0
      %p82 = por %p80, %p81
      %s84 = sadd.s32 %s83, 1
      %p87 = scmp.eq.s32.totalorder %s49, 1
      %p88 = scmp.ne.s32.totalorder %s83, %s85
      %p89 = scmp.eq.s32.totalorder %s49, 0
      %p90 = por %p88, %p89
      %p91 = scmp.ne.s32.totalorder %s83, %s85
      %p92 = scmp.eq.s32.totalorder %s54, 1
      %p93 = por %p91, %p92
      %p94 = scmp.ne.s32.totalorder %s85, %s86
      %p95 = scmp.eq.s32.totalorder %s54, 0
      %p96 = por %p94, %p95
      %p97 = scmp.ne.s32.totalorder %s85, %s86
      %p98 = scmp.eq.s32.totalorder %s55, 1
      %p99 = por %p97, %p98
      %p101 = scmp.ne.s32.totalorder %s86, %s100
      %p102 = scmp.eq.s32.totalorder %s55, 0
      %p103 = por %p101, %p102
      %s105 = sadd.s32 %s104, 1
      %p108 = scmp.eq.s32.totalorder %s49, 1
      %p109 = scmp.ne.s32.totalorder %s104, %s106
      %p110 = scmp.eq.s32.totalorder %s49, 0
      %p111 = por %p109, %p110
      %p112 = scmp.ne.s32.totalorder %s104, %s106
      %p113 = scmp.eq.s32.totalorder %s54, 1
      %p114 = por %p112, %p113
      %p115 = scmp.ne.s32.totalorder %s106, %s107
      %p116 = scmp.eq.s32.totalorder %s54, 0
      %p117 = por %p115, %p116
      %p118 = scmp.ne.s32.totalorder %s106, %s107
      %p119 = scmp.eq.s32.totalorder %s55, 1
      %p120 = por %p118, %p119
      %p122 = scmp.ne.s32.totalorder %s107, %s121
      %p123 = scmp.eq.s32.totalorder %s55, 0
      %p124 = por %p122, %p123
      %s126 = sadd.s32 %s125, 1
      %p129 = scmp.eq.s32.totalorder %s49, 1
      %p130 = scmp.ne.s32.totalorder %s125, %s127
      %p131 = scmp.eq.s32.totalorder %s49, 0
      %p132 = por %p130, %p131
      %p133 = scmp.ne.s32.totalorder %s125, %s127
      %p134 = scmp.eq.s32.totalorder %s54, 1
      %p135 = por %p133, %p134
      %p136 = scmp.ne.s32.totalorder %s127, %s128
      %p137 = scmp.eq.s32.totalorder %s54, 0
      %p138 = por %p136, %p137
      %p139 = scmp.ne.s32.totalorder %s127, %s128
      %p140 = scmp.eq.s32.totalorder %s55, 1
      %p141 = por %p139, %p140
      %p143 = scmp.ne.s32.totalorder %s128, %s142
      %p144 = scmp.eq.s32.totalorder %s55, 0
      %p145 = por %p143, %p144
      %s147 = sadd.s32 %s146, 1
      %p150 = scmp.eq.s32.totalorder %s49, 1
      %p151 = scmp.ne.s32.totalorder %s146, %s148
      %p152 = scmp.eq.s32.totalorder %s49, 0
      %p153 = por %p151, %p152
      %p154 = scmp.ne.s32.totalorder %s146, %s148
      %p155 = scmp.eq.s32.totalorder %s54, 1
      %p156 = por %p154, %p155
      %p157 = scmp.ne.s32.totalorder %s148, %s149
      %p158 = scmp.eq.s32.totalorder %s54, 0
      %p159 = por %p157, %p158
      %p160 = scmp.ne.s32.totalorder %s148, %s149
      %p161 = scmp.eq.s32.totalorder %s55, 1
      %p162 = por %p160, %p161
      %p164 = scmp.ne.s32.totalorder %s149, %s163
      %p165 = scmp.eq.s32.totalorder %s55, 0
      %p166 = por %p164, %p165
      %s168 = sadd.s32 %s167, 1
      %p171 = scmp.eq.s32.totalorder %s49, 1
      %p172 = scmp.ne.s32.totalorder %s167, %s169
      %p173 = scmp.eq.s32.totalorder %s49, 0
      %p174 = por %p172, %p173
      %p175 = scmp.ne.s32.totalorder %s167, %s169
      %p176 = scmp.eq.s32.totalorder %s54, 1
      %p177 = por %p175, %p176
      %p178 = scmp.ne.s32.totalorder %s169, %s170
      %p179 = scmp.eq.s32.totalorder %s54, 0
      %p180 = por %p178, %p179
      %p181 = scmp.ne.s32.totalorder %s169, %s170
      %p182 = scmp.eq.s32.totalorder %s55, 1
      %p183 = por %p181, %p182
      %p185 = scmp.ne.s32.totalorder %s170, %s184
      %p186 = scmp.eq.s32.totalorder %s55, 0
      %p187 = por %p185, %p186
      %s189 = sadd.s32 %s188, 1
      %p192 = scmp.eq.s32.totalorder %s49, 1
      %p193 = scmp.ne.s32.totalorder %s188, %s190
      %p194 = scmp.eq.s32.totalorder %s49, 0
      %p195 = por %p193, %p194
      %p196 = scmp.ne.s32.totalorder %s188, %s190
      %p197 = scmp.eq.s32.totalorder %s54, 1
      %p198 = por %p196, %p197
      %p199 = scmp.ne.s32.totalorder %s190, %s191
      %p200 = scmp.eq.s32.totalorder %s54, 0
      %p201 = por %p199, %p200
      %p202 = scmp.ne.s32.totalorder %s190, %s191
      %p203 = scmp.eq.s32.totalorder %s55, 1
      %p204 = por %p202, %p203
      %p206 = scmp.ne.s32.totalorder %s191, %s205
      %p207 = scmp.eq.s32.totalorder %s55, 0
      %p208 = por %p206, %p207
      %s210 = sadd.s32 %s209, 1
      %p213 = scmp.eq.s32.totalorder %s49, 1
      %p214 = scmp.ne.s32.totalorder %s209, %s211
      %p215 = scmp.eq.s32.totalorder %s49, 0
      %p216 = por %p214, %p215
      %p217 = scmp.ne.s32.totalorder %s209, %s211
      %p218 = scmp.eq.s32.totalorder %s54, 1
      %p219 = por %p217, %p218
      %p220 = scmp.ne.s32.totalorder %s211, %s212
      %p221 = scmp.eq.s32.totalorder %s54, 0
      %p222 = por %p220, %p221
      %p223 = scmp.ne.s32.totalorder %s211, %s212
      %p224 = scmp.eq.s32.totalorder %s55, 1
      %p225 = por %p223, %p224
      %p227 = scmp.ne.s32.totalorder %s212, %s226
      %p228 = scmp.eq.s32.totalorder %s55, 0
      %p229 = por %p227, %p228
      %s231 = sadd.s32 %s230, 1
      %p234 = scmp.eq.s32.totalorder %s49, 1
      %p235 = scmp.ne.s32.totalorder %s230, %s232
      %p236 = scmp.eq.s32.totalorder %s49, 0
      %p237 = por %p235, %p236
      %p238 = scmp.ne.s32.totalorder %s230, %s232
      %p239 = scmp.eq.s32.totalorder %s54, 1
      %p240 = por %p238, %p239
      %p241 = scmp.ne.s32.totalorder %s232, %s233
      %p242 = scmp.eq.s32.totalorder %s54, 0
      %p243 = por %p241, %p242
      %p244 = scmp.ne.s32.totalorder %s232, %s233
      %p245 = scmp.eq.s32.totalorder %s55, 1
      %p246 = por %p244, %p245
      %p248 = scmp.ne.s32.totalorder %s233, %s247
      %p249 = scmp.eq.s32.totalorder %s55, 0
      %p250 = por %p248, %p249
      %s252 = sadd.s32 %s251, 1
      %p255 = scmp.eq.s32.totalorder %s49, 1
      %p256 = scmp.ne.s32.totalorder %s251, %s253
      %p257 = scmp.eq.s32.totalorder %s49, 0
      %p258 = por %p256, %p257
      %p259 = scmp.ne.s32.totalorder %s251, %s253
      %p260 = scmp.eq.s32.totalorder %s54, 1
      %p261 = por %p259, %p260
      %p262 = scmp.ne.s32.totalorder %s253, %s254
      %p263 = scmp.eq.s32.totalorder %s54, 0
      %p264 = por %p262, %p263
      %p265 = scmp.ne.s32.totalorder %s253, %s254
      %p266 = scmp.eq.s32.totalorder %s55, 1
      %p267 = por %p265, %p266
      %p269 = scmp.ne.s32.totalorder %s254, %s268
      %p270 = scmp.eq.s32.totalorder %s55, 0
      %p271 = por %p269, %p270
      %s273 = sadd.s32 %s272, 1
      %p276 = scmp.eq.s32.totalorder %s49, 1
      %p277 = scmp.ne.s32.totalorder %s272, %s274
      %p278 = scmp.eq.s32.totalorder %s49, 0
      %p279 = por %p277, %p278
      %p280 = scmp.ne.s32.totalorder %s272, %s274
      %p281 = scmp.eq.s32.totalorder %s54, 1
      %p282 = por %p280, %p281
      %p283 = scmp.ne.s32.totalorder %s274, %s275
      %p284 = scmp.eq.s32.totalorder %s54, 0
      %p285 = por %p283, %p284
      %p286 = scmp.ne.s32.totalorder %s274, %s275
      %p287 = scmp.eq.s32.totalorder %s55, 1
      %p288 = por %p286, %p287
      %p290 = scmp.ne.s32.totalorder %s275, %s289
      %p291 = scmp.eq.s32.totalorder %s55, 0
      %p292 = por %p290, %p291
      %s294 = sadd.s32 %s293, 1
      %p297 = scmp.eq.s32.totalorder %s49, 1
      %p298 = scmp.ne.s32.totalorder %s293, %s295
      %p299 = scmp.eq.s32.totalorder %s49, 0
      %p300 = por %p298, %p299
      %p301 = scmp.ne.s32.totalorder %s293, %s295
      %p302 = scmp.eq.s32.totalorder %s54, 1
      %p303 = por %p301, %p302
      %p304 = scmp.ne.s32.totalorder %s295, %s296
      %p305 = scmp.eq.s32.totalorder %s54, 0
      %p306 = por %p304, %p305
      %p307 = scmp.ne.s32.totalorder %s295, %s296
      %p308 = scmp.eq.s32.totalorder %s55, 1
      %p309 = por %p307, %p308
      %p311 = scmp.ne.s32.totalorder %s296, %s310
      %p312 = scmp.eq.s32.totalorder %s55, 0
      %p313 = por %p311, %p312
      %s315 = sadd.s32 %s314, 1
      %p318 = scmp.eq.s32.totalorder %s49, 1
      %p319 = scmp.ne.s32.totalorder %s314, %s316
      %p320 = scmp.eq.s32.totalorder %s49, 0
      %p321 = por %p319, %p320
      %p322 = scmp.ne.s32.totalorder %s314, %s316
      %p323 = scmp.eq.s32.totalorder %s54, 1
      %p324 = por %p322, %p323
      %p325 = scmp.ne.s32.totalorder %s316, %s317
      %p326 = scmp.eq.s32.totalorder %s54, 0
      %p327 = por %p325, %p326
      %p328 = scmp.ne.s32.totalorder %s316, %s317
      %p329 = scmp.eq.s32.totalorder %s55, 1
      %p330 = por %p328, %p329
      %p332 = scmp.ne.s32.totalorder %s317, %s331
      %p333 = scmp.eq.s32.totalorder %s55, 0
      %p334 = por %p332, %p333
      %s336 = sadd.s32 %s335, 1
      %p339 = scmp.eq.s32.totalorder %s49, 1
      %p340 = scmp.ne.s32.totalorder %s335, %s337
      %p341 = scmp.eq.s32.totalorder %s49, 0
      %p342 = por %p340, %p341
      %p343 = scmp.ne.s32.totalorder %s335, %s337
      %p344 = scmp.eq.s32.totalorder %s54, 1
      %p345 = por %p343, %p344
      %p346 = scmp.ne.s32.totalorder %s337, %s338
      %p347 = scmp.eq.s32.totalorder %s54, 0
      %p348 = por %p346, %p347
      %p349 = scmp.ne.s32.totalorder %s337, %s338
      %p350 = scmp.eq.s32.totalorder %s55, 1
      %p351 = por %p349, %p350
      %p353 = scmp.ne.s32.totalorder %s338, %s352
      %p354 = scmp.eq.s32.totalorder %s55, 0
      %p355 = por %p353, %p354
      %s357 = sadd.s32 %s356, 1
      %p360 = scmp.eq.s32.totalorder %s49, 1
      %p361 = scmp.ne.s32.totalorder %s356, %s358
      %p362 = scmp.eq.s32.totalorder %s49, 0
      %p363 = por %p361, %p362
      %p364 = scmp.ne.s32.totalorder %s356, %s358
      %p365 = scmp.eq.s32.totalorder %s54, 1
      %p366 = por %p364, %p365
      %p367 = scmp.ne.s32.totalorder %s358, %s359
      %p368 = scmp.eq.s32.totalorder %s54, 0
      %p369 = por %p367, %p368
      %p370 = scmp.ne.s32.totalorder %s358, %s359
      %p371 = scmp.eq.s32.totalorder %s55, 1
      %p372 = por %p370, %p371
      %p374 = scmp.ne.s32.totalorder %s359, %s373
      %p375 = scmp.eq.s32.totalorder %s55, 0
      %p376 = por %p374, %p375
      %s378 = sadd.s32 %s377, 1
      %p381 = scmp.eq.s32.totalorder %s49, 1
      %p382 = scmp.ne.s32.totalorder %s377, %s379
      %p383 = scmp.eq.s32.totalorder %s49, 0
      %p384 = por %p382, %p383
      %p385 = scmp.ne.s32.totalorder %s377, %s379
      %p386 = scmp.eq.s32.totalorder %s54, 1
      %p387 = por %p385, %p386
      %p388 = scmp.ne.s32.totalorder %s379, %s380
      %p389 = scmp.eq.s32.totalorder %s54, 0
      %p390 = por %p388, %p389
      %p391 = scmp.ne.s32.totalorder %s379, %s380
      %p392 = scmp.eq.s32.totalorder %s55, 1
      %p393 = por %p391, %p392
      %p395 = scmp.ne.s32.totalorder %s380, %s394
      %p396 = scmp.eq.s32.totalorder %s55, 0
      %p397 = por %p395, %p396
      %s399 = sadd.s32 %s398, 1
      %p402 = scmp.eq.s32.totalorder %s49, 1
      %p403 = scmp.ne.s32.totalorder %s398, %s400
      %p404 = scmp.eq.s32.totalorder %s49, 0
      %p405 = por %p403, %p404
      %p406 = scmp.ne.s32.totalorder %s398, %s400
      %p407 = scmp.eq.s32.totalorder %s54, 1
      %p408 = por %p406, %p407
      %p409 = scmp.ne.s32.totalorder %s400, %s401
      %p410 = scmp.eq.s32.totalorder %s54, 0
      %p411 = por %p409, %p410
      %p412 = scmp.ne.s32.totalorder %s400, %s401
      %p413 = scmp.eq.s32.totalorder %s55, 1
      %p414 = por %p412, %p413
      %p416 = scmp.ne.s32.totalorder %s401, %s415
      %p417 = scmp.eq.s32.totalorder %s55, 0
      %p418 = por %p416, %p417
      %s420 = sadd.s32 %s419, 1
      %p423 = scmp.eq.s32.totalorder %s49, 1
      %p424 = scmp.ne.s32.totalorder %s419, %s421
      %p425 = scmp.eq.s32.totalorder %s49, 0
      %p426 = por %p424, %p425
      %p427 = scmp.ne.s32.totalorder %s419, %s421
      %p428 = scmp.eq.s32.totalorder %s54, 1
      %p429 = por %p427, %p428
      %p430 = scmp.ne.s32.totalorder %s421, %s422
      %p431 = scmp.eq.s32.totalorder %s54, 0
      %p432 = por %p430, %p431
      %p433 = scmp.ne.s32.totalorder %s421, %s422
      %p434 = scmp.eq.s32.totalorder %s55, 1
      %p435 = por %p433, %p434
      %p437 = scmp.ne.s32.totalorder %s422, %s436
      %p438 = scmp.eq.s32.totalorder %s55, 0
      %p439 = por %p437, %p438
      %s441 = sadd.s32 %s440, 1
      %p444 = scmp.eq.s32.totalorder %s49, 1
      %p445 = scmp.ne.s32.totalorder %s440, %s442
      %p446 = scmp.eq.s32.totalorder %s49, 0
      %p447 = por %p445, %p446
      %p448 = scmp.ne.s32.totalorder %s440, %s442
      %p449 = scmp.eq.s32.totalorder %s54, 1
      %p450 = por %p448, %p449
      %p451 = scmp.ne.s32.totalorder %s442, %s443
      %p452 = scmp.eq.s32.totalorder %s54, 0
      %p453 = por %p451, %p452
      %p454 = scmp.ne.s32.totalorder %s442, %s443
      %p455 = scmp.eq.s32.totalorder %s55, 1
      %p456 = por %p454, %p455
      %p458 = scmp.ne.s32.totalorder %s443, %s457
      %p459 = scmp.eq.s32.totalorder %s55, 0
      %p460 = por %p458, %p459
      %s462 = sadd.s32 %s461, 1
      %p465 = scmp.eq.s32.totalorder %s49, 1
      %p466 = scmp.ne.s32.totalorder %s461, %s463
      %p467 = scmp.eq.s32.totalorder %s49, 0
      %p468 = por %p466, %p467
      %p469 = scmp.ne.s32.totalorder %s461, %s463
      %p470 = scmp.eq.s32.totalorder %s54, 1
      %p471 = por %p469, %p470
      %p472 = scmp.ne.s32.totalorder %s463, %s464
      %p473 = scmp.eq.s32.totalorder %s54, 0
      %p474 = por %p472, %p473
      %p475 = scmp.ne.s32.totalorder %s463, %s464
      %p476 = scmp.eq.s32.totalorder %s55, 1
      %p477 = por %p475, %p476
      %p479 = scmp.ne.s32.totalorder %s464, %s478
      %p480 = scmp.eq.s32.totalorder %s55, 0
      %p481 = por %p479, %p480
      %s483 = sadd.s32 %s482, 1
      %p486 = scmp.eq.s32.totalorder %s49, 1
      %p487 = scmp.ne.s32.totalorder %s482, %s484
      %p488 = scmp.eq.s32.totalorder %s49, 0
      %p489 = por %p487, %p488
      %p490 = scmp.ne.s32.totalorder %s482, %s484
      %p491 = scmp.eq.s32.totalorder %s54, 1
      %p492 = por %p490, %p491
      %p493 = scmp.ne.s32.totalorder %s484, %s485
      %p494 = scmp.eq.s32.totalorder %s54, 0
      %p495 = por %p493, %p494
      %p496 = scmp.ne.s32.totalorder %s484, %s485
      %p497 = scmp.eq.s32.totalorder %s55, 1
      %p498 = por %p496, %p497
      %p500 = scmp.ne.s32.totalorder %s485, %s499
      %p501 = scmp.eq.s32.totalorder %s55, 0
      %p502 = por %p500, %p501
      %s504 = sadd.s32 %s503, 1
      %p507 = scmp.eq.s32.totalorder %s49, 1
      %p508 = scmp.ne.s32.totalorder %s503, %s505
      %p509 = scmp.eq.s32.totalorder %s49, 0
      %p510 = por %p508, %p509
      %p511 = scmp.ne.s32.totalorder %s503, %s505
      %p512 = scmp.eq.s32.totalorder %s54, 1
      %p513 = por %p511, %p512
      %p514 = scmp.ne.s32.totalorder %s505, %s506
      %p515 = scmp.eq.s32.totalorder %s54, 0
      %p516 = por %p514, %p515
      %p517 = scmp.ne.s32.totalorder %s505, %s506
      %p518 = scmp.eq.s32.totalorder %s55, 1
      %p519 = por %p517, %p518
      %p521 = scmp.ne.s32.totalorder %s506, %s520
      %p522 = scmp.eq.s32.totalorder %s55, 0
      %p523 = por %p521, %p522
      %s525 = sadd.s32 %s524, 1
      %p528 = scmp.eq.s32.totalorder %s49, 1
      %p529 = scmp.ne.s32.totalorder %s524, %s526
      %p530 = scmp.eq.s32.totalorder %s49, 0
      %p531 = por %p529, %p530
      %p532 = scmp.ne.s32.totalorder %s524, %s526
      %p533 = scmp.eq.s32.totalorder %s54, 1
      %p534 = por %p532, %p533
      %p535 = scmp.ne.s32.totalorder %s526, %s527
      %p536 = scmp.eq.s32.totalorder %s54, 0
      %p537 = por %p535, %p536
      %p538 = scmp.ne.s32.totalorder %s526, %s527
      %p539 = scmp.eq.s32.totalorder %s55, 1
      %p540 = por %p538, %p539
      %p542 = scmp.ne.s32.totalorder %s527, %s541
      %p543 = scmp.eq.s32.totalorder %s55, 0
      %p544 = por %p542, %p543
      %s546 = sadd.s32 %s545, 1
      %p549 = scmp.eq.s32.totalorder %s49, 1
      %p550 = scmp.ne.s32.totalorder %s545, %s547
      %p551 = scmp.eq.s32.totalorder %s49, 0
      %p552 = por %p550, %p551
      %p553 = scmp.ne.s32.totalorder %s545, %s547
      %p554 = scmp.eq.s32.totalorder %s54, 1
      %p555 = por %p553, %p554
      %p556 = scmp.ne.s32.totalorder %s547, %s548
      %p557 = scmp.eq.s32.totalorder %s54, 0
      %p558 = por %p556, %p557
      %p559 = scmp.ne.s32.totalorder %s547, %s548
      %p560 = scmp.eq.s32.totalorder %s55, 1
      %p561 = por %p559, %p560
      %p563 = scmp.ne.s32.totalorder %s548, %s562
      %p564 = scmp.eq.s32.totalorder %s55, 0
      %p565 = por %p563, %p564
      %s567 = sadd.s32 %s566, 1
      %p570 = scmp.eq.s32.totalorder %s49, 1
      %p571 = scmp.ne.s32.totalorder %s566, %s568
      %p572 = scmp.eq.s32.totalorder %s49, 0
      %p573 = por %p571, %p572
      %p574 = scmp.ne.s32.totalorder %s566, %s568
      %p575 = scmp.eq.s32.totalorder %s54, 1
      %p576 = por %p574, %p575
      %p577 = scmp.ne.s32.totalorder %s568, %s569
      %p578 = scmp.eq.s32.totalorder %s54, 0
      %p579 = por %p577, %p578
      %p580 = scmp.ne.s32.totalorder %s568, %s569
      %p581 = scmp.eq.s32.totalorder %s55, 1
      %p582 = por %p580, %p581
      %p584 = scmp.ne.s32.totalorder %s569, %s583
      %p585 = scmp.eq.s32.totalorder %s55, 0
      %p586 = por %p584, %p585
      %s588 = sadd.s32 %s587, 1
      %p591 = scmp.eq.s32.totalorder %s49, 1
      %p592 = scmp.ne.s32.totalorder %s587, %s589
      %p593 = scmp.eq.s32.totalorder %s49, 0
      %p594 = por %p592, %p593
      %p595 = scmp.ne.s32.totalorder %s587, %s589
      %p596 = scmp.eq.s32.totalorder %s54, 1
      %p597 = por %p595, %p596
      %p598 = scmp.ne.s32.totalorder %s589, %s590
      %p599 = scmp.eq.s32.totalorder %s54, 0
      %p600 = por %p598, %p599
      %p601 = scmp.ne.s32.totalorder %s589, %s590
      %p602 = scmp.eq.s32.totalorder %s55, 1
      %p603 = por %p601, %p602
      %p605 = scmp.ne.s32.totalorder %s590, %s604
      %p606 = scmp.eq.s32.totalorder %s55, 0
      %p607 = por %p605, %p606
      %s609 = sadd.s32 %s608, 1
      %p612 = scmp.eq.s32.totalorder %s49, 1
      %p613 = scmp.ne.s32.totalorder %s608, %s610
      %p614 = scmp.eq.s32.totalorder %s49, 0
      %p615 = por %p613, %p614
      %p616 = scmp.ne.s32.totalorder %s608, %s610
      %p617 = scmp.eq.s32.totalorder %s54, 1
      %p618 = por %p616, %p617
      %p619 = scmp.ne.s32.totalorder %s610, %s611
      %p620 = scmp.eq.s32.totalorder %s54, 0
      %p621 = por %p619, %p620
      %p622 = scmp.ne.s32.totalorder %s610, %s611
      %p623 = scmp.eq.s32.totalorder %s55, 1
      %p624 = por %p622, %p623
      %p626 = scmp.ne.s32.totalorder %s611, %s625
      %p627 = scmp.eq.s32.totalorder %s55, 0
      %p628 = por %p626, %p627
      %s630 = sadd.s32 %s629, 1
      %p633 = scmp.eq.s32.totalorder %s49, 1
      %p634 = scmp.ne.s32.totalorder %s629, %s631
      %p635 = scmp.eq.s32.totalorder %s49, 0
      %p636 = por %p634, %p635
      %p637 = scmp.ne.s32.totalorder %s629, %s631
      %p638 = scmp.eq.s32.totalorder %s54, 1
      %p639 = por %p637, %p638
      %p640 = scmp.ne.s32.totalorder %s631, %s632
      %p641 = scmp.eq.s32.totalorder %s54, 0
      %p642 = por %p640, %p641
      %p643 = scmp.ne.s32.totalorder %s631, %s632
      %p644 = scmp.eq.s32.totalorder %s55, 1
      %p645 = por %p643, %p644
      %p647 = scmp.ne.s32.totalorder %s632, %s646
      %p648 = scmp.eq.s32.totalorder %s55, 0
      %p649 = por %p647, %p648
      %s650 = ssub.s32 %s49, %s56
      %p651 = scmp.eq.s32.totalorder %s650, 0
      %s653 = sadd.s32 %s652, 1
      %s654 = scalar_select %p651, %s652, %s653
      %p657 = pneg %p651
      %p658 = scmp.eq.s32.totalorder %s49, 1
      %p659 = por %p657, %p658
      %p660 = scmp.ne.s32.totalorder %s652, %s655
      %p661 = scmp.eq.s32.totalorder %s49, 0
      %p662 = por %p660, %p661
      %p663 = scmp.ne.s32.totalorder %s652, %s655
      %p664 = scmp.eq.s32.totalorder %s54, 1
      %p665 = por %p663, %p664
      %p666 = scmp.ne.s32.totalorder %s655, %s656
      %p667 = scmp.eq.s32.totalorder %s54, 0
      %p668 = por %p666, %p667
      %p669 = scmp.ne.s32.totalorder %s655, %s656
      %p670 = scmp.eq.s32.totalorder %s55, 1
      %p671 = por %p669, %p670
      %p673 = scmp.ne.s32.totalorder %s656, %s672
      %p674 = scmp.eq.s32.totalorder %s55, 0
      %p675 = por %p673, %p674
      %p676 = scmp.le.s32.totalorder 1, %s49
      %p677 = scmp.lt.s32.totalorder %s49, 3
      %p678 = pnand %p676, %p677
      %p679 = pneg %p678
      // Predicated region
      $region9: #{tpu_custom_call.1} parent=5 // pred_check
        _
      $region10: #{tpu_custom_call.1} parent=5 // pred_check_branch
        %681 = sbr.rel (%p678) target = $region12
      $region11: #{tpu_custom_call.1} parent=5 // pred_region
        %s682 = ssub.s32 %s49, 1
        // Predicated region
        $region13: #{tpu_custom_call.1} parent=11 // pred_check
          %p683 = pneg %p96
        $region14: #{tpu_custom_call.1} parent=11 // pred_check_branch
          %685 = sbr.rel (%p683) target = $region16
        $region15: #{tpu_custom_call.1} parent=11 // pred_region
          %s687 = ssub.s32 64, 64
          %688 = vsyncadd [#allocation3], %s687
          %s690 = sshll.u32 [#allocation2], 4
          %s691 = int_to_ptr.vmem [resolvable:$true] %s690
          %693 = dma.hbm_to_vmem [thread:$0]  %s1, 64, %s691, [#allocation3]
        $region16: #{tpu_custom_call.1} parent=11 // pred_fallthru
          _
        // Predicated region
        $region17: #{tpu_custom_call.1} parent=11 // pred_check
          %p694 = pneg %p117
        $region18: #{tpu_custom_call.1} parent=11 // pred_check_branch
          %696 = sbr.rel (%p694) target = $region20
        $region19: #{tpu_custom_call.1} parent=11 // pred_region
          %s698 = ssub.s32 256, 256
          %699 = vsyncadd [#allocation6], %s698
          %s700 = sshll.u32 [#allocation5], 4
          %s701 = int_to_ptr.vmem [resolvable:$true] %s700
          %706 = dma.hbm_to_vmem [thread:$0]  %s2, 256, %s701, [#allocation6], 64, 64, 4
        $region20: #{tpu_custom_call.1} parent=11 // pred_fallthru
          _
        // Predicated region
        $region21: #{tpu_custom_call.1} parent=11 // pred_check
          %p707 = pneg %p138
        $region22: #{tpu_custom_call.1} parent=11 // pred_check_branch
          %709 = sbr.rel (%p707) target = $region24
        $region23: #{tpu_custom_call.1} parent=11 // pred_region
          %s711 = ssub.s32 256, 256
          %712 = vsyncadd [#allocation6], %s711
          %s713 = sshll.u32 [#allocation7], 4
          %s714 = int_to_ptr.vmem [resolvable:$true] %s713
          %719 = dma.hbm_to_vmem [thread:$0]  %s3, 256, %s714, [#allocation6], 64, 64, 4
        $region24: #{tpu_custom_call.1} parent=11 // pred_fallthru
          _
        // Predicated region
        $region25: #{tpu_custom_call.1} parent=11 // pred_check
          %p720 = pneg %p159
        $region26: #{tpu_custom_call.1} parent=11 // pred_check_branch
          %722 = sbr.rel (%p720) target = $region28
        $region27: #{tpu_custom_call.1} parent=11 // pred_region
          %s724 = ssub.s32 256, 256
          %725 = vsyncadd [#allocation9], %s724
          %s726 = sshll.u32 [#allocation8], 4
          %s727 = int_to_ptr.vmem [resolvable:$true] %s726
          %732 = dma.hbm_to_vmem [thread:$0]  %s4, 256, %s727, [#allocation9], 64, 64, 4
        $region28: #{tpu_custom_call.1} parent=11 // pred_fallthru
          _
        // Predicated region
        $region29: #{tpu_custom_call.1} parent=11 // pred_check
          %p733 = pneg %p180
        $region30: #{tpu_custom_call.1} parent=11 // pred_check_branch
          %735 = sbr.rel (%p733) target = $region32
        $region31: #{tpu_custom_call.1} parent=11 // pred_region
          %s737 = ssub.s32 512, 512
          %738 = vsyncadd [#allocation9], %s737
          %s739 = sshll.u32 [#allocation10], 4
          %s740 = int_to_ptr.vmem [resolvable:$true] %s739
          %745 = dma.hbm_to_vmem [thread:$0]  %s5, 512, %s740, [#allocation9], 64, 64, 4
        $region32: #{tpu_custom_call.1} parent=11 // pred_fallthru
          _
        // Predicated region
        $region33: #{tpu_custom_call.1} parent=11 // pred_check
          %p746 = pneg %p201
        $region34: #{tpu_custom_call.1} parent=11 // pred_check_branch
          %748 = sbr.rel (%p746) target = $region36
        $region35: #{tpu_custom_call.1} parent=11 // pred_region
          %s750 = ssub.s32 512, 512
          %751 = vsyncadd [#allocation12], %s750
          %s752 = sshll.u32 [#allocation11], 4
          %s753 = int_to_ptr.vmem [resolvable:$true] %s752
          %758 = dma.hbm_to_vmem [thread:$0]  %s6, 512, %s753, [#allocation12], 64, 64, 4
        $region36: #{tpu_custom_call.1} parent=11 // pred_fallthru
          _
        // Predicated region
        $region37: #{tpu_custom_call.1} parent=11 // pred_check
          %p759 = pneg %p222
        $region38: #{tpu_custom_call.1} parent=11 // pred_check_branch
          %761 = sbr.rel (%p759) target = $region40
        $region39: #{tpu_custom_call.1} parent=11 // pred_region
          %s763 = ssub.s32 512, 512
          %764 = vsyncadd [#allocation12], %s763
          %s765 = sshll.u32 [#allocation13], 4
          %s766 = int_to_ptr.vmem [resolvable:$true] %s765
          %771 = dma.hbm_to_vmem [thread:$0]  %s7, 512, %s766, [#allocation12], 64, 64, 4
        $region40: #{tpu_custom_call.1} parent=11 // pred_fallthru
          _
        // Predicated region
        $region41: #{tpu_custom_call.1} parent=11 // pred_check
          %p772 = pneg %p243
        $region42: #{tpu_custom_call.1} parent=11 // pred_check_branch
          %774 = sbr.rel (%p772) target = $region44
        $region43: #{tpu_custom_call.1} parent=11 // pred_region
          %s776 = ssub.s32 1024, 1024
          %777 = vsyncadd [#allocation15], %s776
          %s778 = sshll.u32 [#allocation14], 4
          %s779 = int_to_ptr.vmem [resolvable:$true] %s778
          %784 = dma.hbm_to_vmem [thread:$0]  %s8, 1024, %s779, [#allocation15], 64, 64, 4
        $region44: #{tpu_custom_call.1} parent=11 // pred_fallthru
          _
        // Predicated region
        $region45: #{tpu_custom_call.1} parent=11 // pred_check
          %p785 = pneg %p264
        $region46: #{tpu_custom_call.1} parent=11 // pred_check_branch
          %787 = sbr.rel (%p785) target = $region48
        $region47: #{tpu_custom_call.1} parent=11 // pred_region
          %s789 = ssub.s32 1024, 1024
          %790 = vsyncadd [#allocation15], %s789
          %s791 = sshll.u32 [#allocation16], 4
          %s792 = int_to_ptr.vmem [resolvable:$true] %s791
          %797 = dma.hbm_to_vmem [thread:$0]  %s9, 1024, %s792, [#allocation15], 64, 64, 4
        $region48: #{tpu_custom_call.1} parent=11 // pred_fallthru
          _
        // Predicated region
        $region49: #{tpu_custom_call.1} parent=11 // pred_check
          %p798 = pneg %p285
        $region50: #{tpu_custom_call.1} parent=11 // pred_check_branch
          %800 = sbr.rel (%p798) target = $region52
        $region51: #{tpu_custom_call.1} parent=11 // pred_region
          %s802 = ssub.s32 2048, 2048
          %803 = vsyncadd [#allocation18], %s802
          %s804 = sshll.u32 [#allocation17], 4
          %s805 = int_to_ptr.vmem [resolvable:$true] %s804
          %810 = dma.hbm_to_vmem [thread:$0]  %s10, 2048, %s805, [#allocation18], 128, 128, 8
        $region52: #{tpu_custom_call.1} parent=11 // pred_fallthru
          _
        // Predicated region
        $region53: #{tpu_custom_call.1} parent=11 // pred_check
          %p811 = pneg %p306
        $region54: #{tpu_custom_call.1} parent=11 // pred_check_branch
          %813 = sbr.rel (%p811) target = $region56
        $region55: #{tpu_custom_call.1} parent=11 // pred_region
          _
        $region56: #{tpu_custom_call.1} parent=11 // pred_fallthru
          _
        // Predicated region
        $region57: #{tpu_custom_call.1} parent=11 // pred_check
          %p814 = pneg %p327
        $region58: #{tpu_custom_call.1} parent=11 // pred_check_branch
          %816 = sbr.rel (%p814) target = $region60
        $region59: #{tpu_custom_call.1} parent=11 // pred_region
          %s818 = ssub.s32 4096, 4096
          %819 = vsyncadd [#allocation18], %s818
          %s820 = sshll.u32 [#allocation19], 4
          %s821 = int_to_ptr.vmem [resolvable:$true] %s820
          %826 = dma.hbm_to_vmem [thread:$0]  %s12, 4096, %s821, [#allocation18], 128, 128, 8
        $region60: #{tpu_custom_call.1} parent=11 // pred_fallthru
          _
        // Predicated region
        $region61: #{tpu_custom_call.1} parent=11 // pred_check
          %p827 = pneg %p348
        $region62: #{tpu_custom_call.1} parent=11 // pred_check_branch
          %829 = sbr.rel (%p827) target = $region64
        $region63: #{tpu_custom_call.1} parent=11 // pred_region
          %s831 = ssub.s32 2048, 2048
          %832 = vsyncadd [#allocation21], %s831
          %s833 = sshll.u32 [#allocation20], 4
          %s834 = int_to_ptr.vmem [resolvable:$true] %s833
          %839 = dma.hbm_to_vmem [thread:$0]  %s13, 2048, %s834, [#allocation21], 64, 64, 4
        $region64: #{tpu_custom_call.1} parent=11 // pred_fallthru
          _
        // Predicated region
        $region65: #{tpu_custom_call.1} parent=11 // pred_check
          %p840 = pneg %p369
        $region66: #{tpu_custom_call.1} parent=11 // pred_check_branch
          %842 = sbr.rel (%p840) target = $region68
        $region67: #{tpu_custom_call.1} parent=11 // pred_region
          %s844 = ssub.s32 1024, 1024
          %845 = vsyncadd [#allocation21], %s844
          %s846 = sshll.u32 [#allocation22], 4
          %s847 = int_to_ptr.vmem [resolvable:$true] %s846
          %852 = dma.hbm_to_vmem [thread:$0]  %s14, 1024, %s847, [#allocation21], 64, 64, 4
        $region68: #{tpu_custom_call.1} parent=11 // pred_fallthru
          _
        // Predicated region
        $region69: #{tpu_custom_call.1} parent=11 // pred_check
          %p853 = pneg %p390
        $region70: #{tpu_custom_call.1} parent=11 // pred_check_branch
          %855 = sbr.rel (%p853) target = $region72
        $region71: #{tpu_custom_call.1} parent=11 // pred_region
          %s857 = ssub.s32 1024, 1024
          %858 = vsyncadd [#allocation24], %s857
          %s859 = sshll.u32 [#allocation23], 4
          %s860 = int_to_ptr.vmem [resolvable:$true] %s859
          %865 = dma.hbm_to_vmem [thread:$0]  %s15, 1024, %s860, [#allocation24], 64, 64, 4
        $region72: #{tpu_custom_call.1} parent=11 // pred_fallthru
          _
        // Predicated region
        $region73: #{tpu_custom_call.1} parent=11 // pred_check
          %p866 = pneg %p411
        $region74: #{tpu_custom_call.1} parent=11 // pred_check_branch
          %868 = sbr.rel (%p866) target = $region76
        $region75: #{tpu_custom_call.1} parent=11 // pred_region
          _
        $region76: #{tpu_custom_call.1} parent=11 // pred_fallthru
          _
        // Predicated region
        $region77: #{tpu_custom_call.1} parent=11 // pred_check
          %p869 = pneg %p432
        $region78: #{tpu_custom_call.1} parent=11 // pred_check_branch
          %871 = sbr.rel (%p869) target = $region80
        $region79: #{tpu_custom_call.1} parent=11 // pred_region
          _
        $region80: #{tpu_custom_call.1} parent=11 // pred_fallthru
          _
        // Predicated region
        $region81: #{tpu_custom_call.1} parent=11 // pred_check
          %p872 = pneg %p453
        $region82: #{tpu_custom_call.1} parent=11 // pred_check_branch
          %874 = sbr.rel (%p872) target = $region84
        $region83: #{tpu_custom_call.1} parent=11 // pred_region
          %s876 = ssub.s32 512, 512
          %877 = vsyncadd [#allocation24], %s876
          %s878 = sshll.u32 [#allocation25], 4
          %s879 = int_to_ptr.vmem [resolvable:$true] %s878
          %884 = dma.hbm_to_vmem [thread:$0]  %s18, 512, %s879, [#allocation24], 64, 64, 4
        $region84: #{tpu_custom_call.1} parent=11 // pred_fallthru
          _
        // Predicated region
        $region85: #{tpu_custom_call.1} parent=11 // pred_check
          %p885 = pneg %p474
        $region86: #{tpu_custom_call.1} parent=11 // pred_check_branch
          %887 = sbr.rel (%p885) target = $region88
        $region87: #{tpu_custom_call.1} parent=11 // pred_region
          %s889 = ssub.s32 512, 512
          %890 = vsyncadd [#allocation27], %s889
          %s891 = sshll.u32 [#allocation26], 4
          %s892 = int_to_ptr.vmem [resolvable:$true] %s891
          %897 = dma.hbm_to_vmem [thread:$0]  %s19, 512, %s892, [#allocation27], 64, 64, 4
        $region88: #{tpu_custom_call.1} parent=11 // pred_fallthru
          _
        // Predicated region
        $region89: #{tpu_custom_call.1} parent=11 // pred_check
          %p898 = pneg %p495
        $region90: #{tpu_custom_call.1} parent=11 // pred_check_branch
          %900 = sbr.rel (%p898) target = $region92
        $region91: #{tpu_custom_call.1} parent=11 // pred_region
          %s902 = ssub.s32 512, 512
          %903 = vsyncadd [#allocation27], %s902
          %s904 = sshll.u32 [#allocation28], 4
          %s905 = int_to_ptr.vmem [resolvable:$true] %s904
          %910 = dma.hbm_to_vmem [thread:$0]  %s20, 512, %s905, [#allocation27], 64, 64, 4
        $region92: #{tpu_custom_call.1} parent=11 // pred_fallthru
          _
        // Predicated region
        $region93: #{tpu_custom_call.1} parent=11 // pred_check
          %p911 = pneg %p516
        $region94: #{tpu_custom_call.1} parent=11 // pred_check_branch
          %913 = sbr.rel (%p911) target = $region96
        $region95: #{tpu_custom_call.1} parent=11 // pred_region
          %s915 = ssub.s32 512, 512
          %916 = vsyncadd [#allocation30], %s915
          %s917 = sshll.u32 [#allocation29], 4
          %s918 = int_to_ptr.vmem [resolvable:$true] %s917
          %923 = dma.hbm_to_vmem [thread:$0]  %s21, 512, %s918, [#allocation30], 64, 64, 4
        $region96: #{tpu_custom_call.1} parent=11 // pred_fallthru
          _
        // Predicated region
        $region97: #{tpu_custom_call.1} parent=11 // pred_check
          %p924 = pneg %p537
        $region98: #{tpu_custom_call.1} parent=11 // pred_check_branch
          %926 = sbr.rel (%p924) target = $region100
        $region99: #{tpu_custom_call.1} parent=11 // pred_region
          %s928 = ssub.s32 512, 512
          %929 = vsyncadd [#allocation30], %s928
          %s930 = sshll.u32 [#allocation31], 4
          %s931 = int_to_ptr.vmem [resolvable:$true] %s930
          %936 = dma.hbm_to_vmem [thread:$0]  %s22, 512, %s931, [#allocation30], 64, 64, 4
        $region100: #{tpu_custom_call.1} parent=11 // pred_fallthru
          _
        // Predicated region
        $region101: #{tpu_custom_call.1} parent=11 // pred_check
          %p937 = pneg %p558
        $region102: #{tpu_custom_call.1} parent=11 // pred_check_branch
          %939 = sbr.rel (%p937) target = $region104
        $region103: #{tpu_custom_call.1} parent=11 // pred_region
          %s941 = ssub.s32 512, 512
          %942 = vsyncadd [#allocation33], %s941
          %s943 = sshll.u32 [#allocation32], 4
          %s944 = int_to_ptr.vmem [resolvable:$true] %s943
          %949 = dma.hbm_to_vmem [thread:$0]  %s23, 512, %s944, [#allocation33], 64, 64, 4
        $region104: #{tpu_custom_call.1} parent=11 // pred_fallthru
          _
        // Predicated region
        $region105: #{tpu_custom_call.1} parent=11 // pred_check
          %p950 = pneg %p579
        $region106: #{tpu_custom_call.1} parent=11 // pred_check_branch
          %952 = sbr.rel (%p950) target = $region108
        $region107: #{tpu_custom_call.1} parent=11 // pred_region
          %s954 = ssub.s32 512, 512
          %955 = vsyncadd [#allocation33], %s954
          %s956 = sshll.u32 [#allocation34], 4
          %s957 = int_to_ptr.vmem [resolvable:$true] %s956
          %962 = dma.hbm_to_vmem [thread:$0]  %s24, 512, %s957, [#allocation33], 64, 64, 4
        $region108: #{tpu_custom_call.1} parent=11 // pred_fallthru
          _
        // Predicated region
        $region109: #{tpu_custom_call.1} parent=11 // pred_check
          %p963 = pneg %p600
        $region110: #{tpu_custom_call.1} parent=11 // pred_check_branch
          %965 = sbr.rel (%p963) target = $region112
        $region111: #{tpu_custom_call.1} parent=11 // pred_region
          %s967 = ssub.s32 256, 256
          %968 = vsyncadd [#allocation36], %s967
          %s969 = sshll.u32 [#allocation35], 4
          %s970 = int_to_ptr.vmem [resolvable:$true] %s969
          %975 = dma.hbm_to_vmem [thread:$0]  %s25, 256, %s970, [#allocation36], 64, 64, 4
        $region112: #{tpu_custom_call.1} parent=11 // pred_fallthru
          _
        // Predicated region
        $region113: #{tpu_custom_call.1} parent=11 // pred_check
          %p976 = pneg %p621
        $region114: #{tpu_custom_call.1} parent=11 // pred_check_branch
          %978 = sbr.rel (%p976) target = $region116
        $region115: #{tpu_custom_call.1} parent=11 // pred_region
          _
        $region116: #{tpu_custom_call.1} parent=11 // pred_fallthru
          _
        // Predicated region
        $region117: #{tpu_custom_call.1} parent=11 // pred_check
          %p979 = pneg %p642
        $region118: #{tpu_custom_call.1} parent=11 // pred_check_branch
          %981 = sbr.rel (%p979) target = $region120
        $region119: #{tpu_custom_call.1} parent=11 // pred_region
          _
        $region120: #{tpu_custom_call.1} parent=11 // pred_fallthru
          _
      $region12: #{tpu_custom_call.1} parent=5 // pred_fallthru
        _
      %p982 = scmp.lt.s32.totalorder %s49, 2
      // Predicated region
      $region121: #{tpu_custom_call.1} parent=5 // pred_check
        %p983 = pneg %p982
      $region122: #{tpu_custom_call.1} parent=5 // pred_check_branch
        %985 = sbr.rel (%p983) target = $region124
      $region123: #{tpu_custom_call.1} parent=5 // pred_region
        // Predicated region
        $region125: #{tpu_custom_call.1} parent=123 // pred_check
          %p986 = pneg %p69
        $region126: #{tpu_custom_call.1} parent=123 // pred_check_branch
          %988 = sbr.rel (%p986) target = $region128
        $region127: #{tpu_custom_call.1} parent=123 // pred_region
          %p989 = scmp.lt.s32.totalorder %s49, 1
          %s990 = scalar_select %p989, %s49, 1
          %s991 = smul.addr %s990, 8
          %s992 = scalar_lea.vmem %s0, %s991
        $region128: #{tpu_custom_call.1} parent=123 // pred_fallthru
          _
      $region124: #{tpu_custom_call.1} parent=5 // pred_fallthru
        _
      %p993 = scmp.le.s32.totalorder 1, %s49
      %p994 = scmp.lt.s32.totalorder %s49, 3
      %p995 = pnand %p993, %p994
      %p996 = pneg %p995
      // Predicated region
      $region129: #{tpu_custom_call.1} parent=5 // pred_check
        _
      $region130: #{tpu_custom_call.1} parent=5 // pred_check_branch
        %998 = sbr.rel (%p995) target = $region132
      $region131: #{tpu_custom_call.1} parent=5 // pred_region
        %s999 = ssub.s32 %s49, 1
        // Predicated region
        $region133: #{tpu_custom_call.1} parent=131 // pred_check
          %p1000 = pneg %p96
        $region134: #{tpu_custom_call.1} parent=131 // pred_check_branch
          %1002 = sbr.rel (%p1000) target = $region136
        $region135: #{tpu_custom_call.1} parent=131 // pred_region
          %1003 = dma.done [#allocation3], 64
        $region136: #{tpu_custom_call.1} parent=131 // pred_fallthru
          _
        // Predicated region
        $region137: #{tpu_custom_call.1} parent=131 // pred_check
          %p1004 = pneg %p117
        $region138: #{tpu_custom_call.1} parent=131 // pred_check_branch
          %1006 = sbr.rel (%p1004) target = $region140
        $region139: #{tpu_custom_call.1} parent=131 // pred_region
          %1007 = dma.done [#allocation6], 256
        $region140: #{tpu_custom_call.1} parent=131 // pred_fallthru
          _
        // Predicated region
        $region141: #{tpu_custom_call.1} parent=131 // pred_check
          %p1008 = pneg %p138
        $region142: #{tpu_custom_call.1} parent=131 // pred_check_branch
          %1010 = sbr.rel (%p1008) target = $region144
        $region143: #{tpu_custom_call.1} parent=131 // pred_region
          %1011 = dma.done [#allocation6], 256
        $region144: #{tpu_custom_call.1} parent=131 // pred_fallthru
          _
        // Predicated region
        $region145: #{tpu_custom_call.1} parent=131 // pred_check
          %p1012 = pneg %p159
        $region146: #{tpu_custom_call.1} parent=131 // pred_check_branch
          %1014 = sbr.rel (%p1012) target = $region148
        $region147: #{tpu_custom_call.1} parent=131 // pred_region
          %1015 = dma.done [#allocation9], 256
        $region148: #{tpu_custom_call.1} parent=131 // pred_fallthru
          _
        // Predicated region
        $region149: #{tpu_custom_call.1} parent=131 // pred_check
          %p1016 = pneg %p180
        $region150: #{tpu_custom_call.1} parent=131 // pred_check_branch
          %1018 = sbr.rel (%p1016) target = $region152
        $region151: #{tpu_custom_call.1} parent=131 // pred_region
          %1019 = dma.done [#allocation9], 512
        $region152: #{tpu_custom_call.1} parent=131 // pred_fallthru
          _
        // Predicated region
        $region153: #{tpu_custom_call.1} parent=131 // pred_check
          %p1020 = pneg %p201
        $region154: #{tpu_custom_call.1} parent=131 // pred_check_branch
          %1022 = sbr.rel (%p1020) target = $region156
        $region155: #{tpu_custom_call.1} parent=131 // pred_region
          %1023 = dma.done [#allocation12], 512
        $region156: #{tpu_custom_call.1} parent=131 // pred_fallthru
          _
        // Predicated region
        $region157: #{tpu_custom_call.1} parent=131 // pred_check
          %p1024 = pneg %p222
        $region158: #{tpu_custom_call.1} parent=131 // pred_check_branch
          %1026 = sbr.rel (%p1024) target = $region160
        $region159: #{tpu_custom_call.1} parent=131 // pred_region
          %1027 = dma.done [#allocation12], 512
        $region160: #{tpu_custom_call.1} parent=131 // pred_fallthru
          _
        // Predicated region
        $region161: #{tpu_custom_call.1} parent=131 // pred_check
          %p1028 = pneg %p243
        $region162: #{tpu_custom_call.1} parent=131 // pred_check_branch
          %1030 = sbr.rel (%p1028) target = $region164
        $region163: #{tpu_custom_call.1} parent=131 // pred_region
          %1031 = dma.done [#allocation15], 1024
        $region164: #{tpu_custom_call.1} parent=131 // pred_fallthru
          _
        // Predicated region
        $region165: #{tpu_custom_call.1} parent=131 // pred_check
          %p1032 = pneg %p264
        $region166: #{tpu_custom_call.1} parent=131 // pred_check_branch
          %1034 = sbr.rel (%p1032) target = $region168
        $region167: #{tpu_custom_call.1} parent=131 // pred_region
          %1035 = dma.done [#allocation15], 1024
        $region168: #{tpu_custom_call.1} parent=131 // pred_fallthru
          _
        // Predicated region
        $region169: #{tpu_custom_call.1} parent=131 // pred_check
          %p1036 = pneg %p285
        $region170: #{tpu_custom_call.1} parent=131 // pred_check_branch
          %1038 = sbr.rel (%p1036) target = $region172
        $region171: #{tpu_custom_call.1} parent=131 // pred_region
          %1039 = dma.done [#allocation18], 2048
        $region172: #{tpu_custom_call.1} parent=131 // pred_fallthru
          _
        // Predicated region
        $region173: #{tpu_custom_call.1} parent=131 // pred_check
          %p1040 = pneg %p327
        $region174: #{tpu_custom_call.1} parent=131 // pred_check_branch
          %1042 = sbr.rel (%p1040) target = $region176
        $region175: #{tpu_custom_call.1} parent=131 // pred_region
          %1043 = dma.done [#allocation18], 4096
        $region176: #{tpu_custom_call.1} parent=131 // pred_fallthru
          _
        // Predicated region
        $region177: #{tpu_custom_call.1} parent=131 // pred_check
          %p1044 = pneg %p348
        $region178: #{tpu_custom_call.1} parent=131 // pred_check_branch
          %1046 = sbr.rel (%p1044) target = $region180
        $region179: #{tpu_custom_call.1} parent=131 // pred_region
          %1047 = dma.done [#allocation21], 2048
        $region180: #{tpu_custom_call.1} parent=131 // pred_fallthru
          _
        // Predicated region
        $region181: #{tpu_custom_call.1} parent=131 // pred_check
          %p1048 = pneg %p369
        $region182: #{tpu_custom_call.1} parent=131 // pred_check_branch
          %1050 = sbr.rel (%p1048) target = $region184
        $region183: #{tpu_custom_call.1} parent=131 // pred_region
          %1051 = dma.done [#allocation21], 1024
        $region184: #{tpu_custom_call.1} parent=131 // pred_fallthru
          _
        // Predicated region
        $region185: #{tpu_custom_call.1} parent=131 // pred_check
          %p1052 = pneg %p390
        $region186: #{tpu_custom_call.1} parent=131 // pred_check_branch
          %1054 = sbr.rel (%p1052) target = $region188
        $region187: #{tpu_custom_call.1} parent=131 // pred_region
          %1055 = dma.done [#allocation24], 1024
        $region188: #{tpu_custom_call.1} parent=131 // pred_fallthru
          _
        // Predicated region
        $region189: #{tpu_custom_call.1} parent=131 // pred_check
          %p1056 = pneg %p453
        $region190: #{tpu_custom_call.1} parent=131 // pred_check_branch
          %1058 = sbr.rel (%p1056) target = $region192
        $region191: #{tpu_custom_call.1} parent=131 // pred_region
          %1059 = dma.done [#allocation24], 512
        $region192: #{tpu_custom_call.1} parent=131 // pred_fallthru
          _
        // Predicated region
        $region193: #{tpu_custom_call.1} parent=131 // pred_check
          %p1060 = pneg %p474
        $region194: #{tpu_custom_call.1} parent=131 // pred_check_branch
          %1062 = sbr.rel (%p1060) target = $region196
        $region195: #{tpu_custom_call.1} parent=131 // pred_region
          %1063 = dma.done [#allocation27], 512
        $region196: #{tpu_custom_call.1} parent=131 // pred_fallthru
          _
        // Predicated region
        $region197: #{tpu_custom_call.1} parent=131 // pred_check
          %p1064 = pneg %p495
        $region198: #{tpu_custom_call.1} parent=131 // pred_check_branch
          %1066 = sbr.rel (%p1064) target = $region200
        $region199: #{tpu_custom_call.1} parent=131 // pred_region
          %1067 = dma.done [#allocation27], 512
        $region200: #{tpu_custom_call.1} parent=131 // pred_fallthru
          _
        // Predicated region
        $region201: #{tpu_custom_call.1} parent=131 // pred_check
          %p1068 = pneg %p516
        $region202: #{tpu_custom_call.1} parent=131 // pred_check_branch
          %1070 = sbr.rel (%p1068) target = $region204
        $region203: #{tpu_custom_call.1} parent=131 // pred_region
          %1071 = dma.done [#allocation30], 512
        $region204: #{tpu_custom_call.1} parent=131 // pred_fallthru
          _
        // Predicated region
        $region205: #{tpu_custom_call.1} parent=131 // pred_check
          %p1072 = pneg %p537
        $region206: #{tpu_custom_call.1} parent=131 // pred_check_branch
          %1074 = sbr.rel (%p1072) target = $region208
        $region207: #{tpu_custom_call.1} parent=131 // pred_region
          %1075 = dma.done [#allocation30], 512
        $region208: #{tpu_custom_call.1} parent=131 // pred_fallthru
          _
        // Predicated region
        $region209: #{tpu_custom_call.1} parent=131 // pred_check
          %p1076 = pneg %p558
        $region210: #{tpu_custom_call.1} parent=131 // pred_check_branch
          %1078 = sbr.rel (%p1076) target = $region212
        $region211: #{tpu_custom_call.1} parent=131 // pred_region
          %1079 = dma.done [#allocation33], 512
        $region212: #{tpu_custom_call.1} parent=131 // pred_fallthru
          _
        // Predicated region
        $region213: #{tpu_custom_call.1} parent=131 // pred_check
          %p1080 = pneg %p579
        $region214: #{tpu_custom_call.1} parent=131 // pred_check_branch
          %1082 = sbr.rel (%p1080) target = $region216
        $region215: #{tpu_custom_call.1} parent=131 // pred_region
          %1083 = dma.done [#allocation33], 512
        $region216: #{tpu_custom_call.1} parent=131 // pred_fallthru
          _
        // Predicated region
        $region217: #{tpu_custom_call.1} parent=131 // pred_check
          %p1084 = pneg %p600
        $region218: #{tpu_custom_call.1} parent=131 // pred_check_branch
          %1086 = sbr.rel (%p1084) target = $region220
        $region219: #{tpu_custom_call.1} parent=131 // pred_region
          %1087 = dma.done [#allocation36], 256
        $region220: #{tpu_custom_call.1} parent=131 // pred_fallthru
          _
        %p1088 = scmp.lt.s32.totalorder %s54, 1
        %s1089 = scalar_select %p1088, %s54, 1
        %s1090 = smul.addr %s1089, 8
        %s1091 = scalar_lea.vmem %s0, %s1090
        %p1092 = pneg %p75
        %p1093 = pneg %p72
        %p1094 = pneg %p96
        %p1095 = pneg %p93
        %p1096 = pneg %p117
        %p1097 = pneg %p114
        %p1098 = pneg %p138
        %p1099 = pneg %p135
        %p1100 = pneg %p159
        %p1101 = pneg %p156
        %p1102 = pneg %p180
        %p1103 = pneg %p177
        %p1104 = pneg %p201
        %p1105 = pneg %p198
        %p1106 = pneg %p222
        %p1107 = pneg %p219
        %p1108 = pneg %p243
        %p1109 = pneg %p240
        %p1110 = pneg %p264
        %p1111 = pneg %p261
        %p1112 = pneg %p285
        %p1113 = pneg %p282
        %p1114 = pneg %p306
        %p1115 = pneg %p303
        %p1116 = pneg %p327
        %p1117 = pneg %p324
        %p1118 = pneg %p348
        %p1119 = pneg %p345
        %p1120 = pneg %p369
        %p1121 = pneg %p366
        %p1122 = pneg %p390
        %p1123 = pneg %p387
        %p1124 = pneg %p411
        %p1125 = pneg %p408
        %p1126 = pneg %p432
        %p1127 = pneg %p429
        %p1128 = pneg %p453
        %p1129 = pneg %p450
        %p1130 = pneg %p474
        %p1131 = pneg %p471
        %p1132 = pneg %p495
        %p1133 = pneg %p492
        %p1134 = pneg %p516
        %p1135 = pneg %p513
        %p1136 = pneg %p537
        %p1137 = pneg %p534
        %p1138 = pneg %p558
        %p1139 = pneg %p555
        %p1140 = pneg %p579
        %p1141 = pneg %p576
        %p1142 = pneg %p600
        %p1143 = pneg %p597
        %p1144 = pneg %p621
        %p1145 = pneg %p618
        %p1146 = pneg %p642
        %p1147 = pneg %p639
        %p1148 = pneg %p668
        %p1149 = pneg %p665
        %s1150 = sand.u32 %s655, 1
        %s1151 = scalar_lea.sflag [#allocation4], %s1150
        %s1152 = sand.u32 %s655, 1
        %s1153 = smul.addr %s1152, 8
        %s1154 = scalar_lea.vmem [#allocation37], %s1153
        %p1155 = scmp.lt.s32.totalorder %s54, 1
        %s1156 = scalar_select %p1155, %s54, 1
        %s1157 = smul.addr %s1156, 8
        %s1158 = scalar_lea.vmem %s0, %s1157
        %v1160 = vld [vmem:[%s1158] sm:$0xff]
        %v1161 = vpack.c.bf16 %v1160, %v1160
        %v1162 = vld [vmem:[#allocation2] sm:$0xf]
        %v1163 = vld [vmem:[%s27] ss:$0 sm:$0xff]
        %vm1164 = vcmask 64512
        %v1166 = vsel %vm1164, %v1161, 0
        %vm1168 = vcmask 1043456
        %v1170 = vsel %vm1168, %v1162, 0
        %1172 = vmatprep.subr.bf16.mxu0 0
        %1173 = vmatpush1.bf16.msra.mxu0 0
        %1174 = vmatprep.subr.bf16.mxu0 0
        %1175 = vmatpush1.bf16.msra.mxu0 0
        %1176 = vmatprep.subr.bf16.mxu0 0
        %1177 = vmatpush1.bf16.msra.mxu0 0
        %1178 = vmatprep.subr.bf16.mxu0 0
        %1179 = vmatpush1.bf16.msra.mxu0 0
        %1180 = vmatprep.subr.bf16.mxu0 0
        %1181 = vmatpush1.bf16.msra.mxu0 0
        %1182 = vmatprep.subr.bf16.mxu0 0
        %1183 = vmatpush1.bf16.msra.mxu0 0
        %1184 = vmatprep.subr.bf16.mxu0 0
        %1185 = vmatpush1.bf16.msra.mxu0 0
        %1186 = vmatprep.subr.bf16.mxu0 0
        %1187 = vmatpush1.bf16.msra.mxu0 %v1170
        %1188 = vmatprep.subr.bf16.mxu0 0
        %1189 = vmatpush2.bf16.msra.mxu0 0
        %1190 = vmatprep.subr.bf16.mxu0 0
        %1191 = vmatpush2.bf16.msra.mxu0 0
        %1192 = vmatprep.subr.bf16.mxu0 0
        %1193 = vmatpush2.bf16.msra.mxu0 0
        %1194 = vmatprep.subr.bf16.mxu0 0
        %1195 = vmatpush2.bf16.msra.mxu0 0
        %1196 = vmatprep.subr.bf16.mxu0 0
        %1197 = vmatpush2.bf16.msra.mxu0 0
        %1198 = vmatprep.subr.bf16.mxu0 0
        %1199 = vmatpush2.bf16.msra.mxu0 0
        %1200 = vmatprep.subr.bf16.mxu0 0
        %1201 = vmatpush2.bf16.msra.mxu0 0
        %1202 = vmatprep.subr.bf16.mxu0 0
        %1203 = vmatpush2.bf16.msra.mxu0 0
        %1204 = vmatprep.mubr.bf16.mxu0 0
        %1205 = vmatmul.mubr.bf16.gmra.mxu0 %v1166
        %v1206 = vpop.f32.mrf.mxu0
        %v1207 = vadd.f32 %v1163, %v1206
        %v1208 = vpop.f32.mrf.mxu0
        %v1209 = vpop.f32.mrf.mxu0
        %v1210 = vpop.f32.mrf.mxu0
        %1211 = vdwg.mxu0
        %v1212 = vpack.c.bf16 %v1207, %v1207
        %v1213 = vld [vmem:[#allocation5] sm:$0xf]
        %v1214 = vld [vmem:[#allocation5 + $0x4] sm:$0xf]
        %v1215 = vld [vmem:[#allocation5 + $0x8] sm:$0xf]
        %v1216 = vld [vmem:[#allocation5 + $0xc] sm:$0xf]
        %v1217 = vld [vmem:[%s27 + $0x1] ss:$0 sm:$0xff]
        %v1222 = vunpack.c.l.b16 %v1213
        %v1223 = vunpack.c.l.b16 %v1214
        %v1224 = vunpack.c.l.b16 %v1215
        %v1225 = vunpack.c.l.b16 %v1216
        %v1226 = vpack.c.b16 %v1223, %v1222
        %v1227 = vpack.c.b16 %v1225, %v1224
        %vm1230 = vcmask 261120
        %v1232 = vsel %vm1230, %v1212, 0
        %1234 = vmatprep.subr.bf16.mxu0 0
        %1235 = vmatpush1.bf16.msra.mxu0 0
        %1236 = vmatprep.subr.bf16.mxu0 0
        %1237 = vmatpush1.bf16.msra.mxu0 0
        %1238 = vmatprep.subr.bf16.mxu0 0
        %1239 = vmatpush1.bf16.msra.mxu0 0
        %1240 = vmatprep.subr.bf16.mxu0 0
        %1241 = vmatpush1.bf16.msra.mxu0 0
        %1242 = vmatprep.subr.bf16.mxu0 0
        %1243 = vmatpush1.bf16.msra.mxu0 0
        %1244 = vmatprep.subr.bf16.mxu0 0
        %1245 = vmatpush1.bf16.msra.mxu0 0
        %1246 = vmatprep.subr.bf16.mxu0 0
        %1247 = vmatpush1.bf16.msra.mxu0 %v1227
        %1248 = vmatprep.subr.bf16.mxu0 0
        %1249 = vmatpush1.bf16.msra.mxu0 %v1226
        %1250 = vmatprep.subr.bf16.mxu0 0
        %1251 = vmatpush2.bf16.msra.mxu0 0
        %1252 = vmatprep.subr.bf16.mxu0 0
        %1253 = vmatpush2.bf16.msra.mxu0 0
        %1254 = vmatprep.subr.bf16.mxu0 0
        %1255 = vmatpush2.bf16.msra.mxu0 0
        %1256 = vmatprep.subr.bf16.mxu0 0
        %1257 = vmatpush2.bf16.msra.mxu0 0
        %1258 = vmatprep.subr.bf16.mxu0 0
        %1259 = vmatpush2.bf16.msra.mxu0 0
        %1260 = vmatprep.subr.bf16.mxu0 0
        %1261 = vmatpush2.bf16.msra.mxu0 0
        %1262 = vmatprep.subr.bf16.mxu0 0
        %1263 = vmatpush2.bf16.msra.mxu0 0
        %1264 = vmatprep.subr.bf16.mxu0 0
        %1265 = vmatpush2.bf16.msra.mxu0 0
        %1266 = vmatprep.mubr.bf16.mxu0 0
        %1267 = vmatmul.mubr.bf16.gmra.mxu0 %v1232
        %v1268 = vpop.f32.mrf.mxu0
        %v1269 = vadd.f32 %v1217, %v1268
        %v1270 = vpop.f32.mrf.mxu0
        %v1271 = vpop.f32.mrf.mxu0
        %v1272 = vpop.f32.mrf.mxu0
        %1273 = vdwg.mxu0
        %v1274 = vmax.f32 %v1269, 0.0
        %v1275 = vpack.c.bf16 %v1274, %v1274
        %v1276 = vld [vmem:[#allocation7] sm:$0xf]
        %v1277 = vld [vmem:[#allocation7 + $0x4] sm:$0xf]
        %v1278 = vld [vmem:[#allocation7 + $0x8] sm:$0xf]
        %v1279 = vld [vmem:[#allocation7 + $0xc] sm:$0xf]
        %v1280 = vld [vmem:[%s27 + $0x2] ss:$0 sm:$0xff]
        %v1285 = vunpack.c.l.b16 %v1276
        %v1286 = vunpack.c.l.b16 %v1277
        %v1287 = vunpack.c.l.b16 %v1278
        %v1288 = vunpack.c.l.b16 %v1279
        %v1289 = vpack.c.b16 %v1286, %v1285
        %v1290 = vpack.c.b16 %v1288, %v1287
        %v1294 = vsel %vm1230, %v1275, 0
        %1296 = vmatprep.subr.bf16.mxu0 0
        %1297 = vmatpush1.bf16.msra.mxu0 0
        %1298 = vmatprep.subr.bf16.mxu0 0
        %1299 = vmatpush1.bf16.msra.mxu0 0
        %1300 = vmatprep.subr.bf16.mxu0 0
        %1301 = vmatpush1.bf16.msra.mxu0 0
        %1302 = vmatprep.subr.bf16.mxu0 0
        %1303 = vmatpush1.bf16.msra.mxu0 0
        %1304 = vmatprep.subr.bf16.mxu0 0
        %1305 = vmatpush1.bf16.msra.mxu0 0
        %1306 = vmatprep.subr.bf16.mxu0 0
        %1307 = vmatpush1.bf16.msra.mxu0 0
        %1308 = vmatprep.subr.bf16.mxu0 0
        %1309 = vmatpush1.bf16.msra.mxu0 %v1290
        %1310 = vmatprep.subr.bf16.mxu0 0
        %1311 = vmatpush1.bf16.msra.mxu0 %v1289
        %1312 = vmatprep.subr.bf16.mxu0 0
        %1313 = vmatpush2.bf16.msra.mxu0 0
        %1314 = vmatprep.subr.bf16.mxu0 0
        %1315 = vmatpush2.bf16.msra.mxu0 0
        %1316 = vmatprep.subr.bf16.mxu0 0
        %1317 = vmatpush2.bf16.msra.mxu0 0
        %1318 = vmatprep.subr.bf16.mxu0 0
        %1319 = vmatpush2.bf16.msra.mxu0 0
        %1320 = vmatprep.subr.bf16.mxu0 0
        %1321 = vmatpush2.bf16.msra.mxu0 0
        %1322 = vmatprep.subr.bf16.mxu0 0
        %1323 = vmatpush2.bf16.msra.mxu0 0
        %1324 = vmatprep.subr.bf16.mxu0 0
        %1325 = vmatpush2.bf16.msra.mxu0 0
        %1326 = vmatprep.subr.bf16.mxu0 0
        %1327 = vmatpush2.bf16.msra.mxu0 0
        %1328 = vmatprep.mubr.bf16.mxu0 0
        %1329 = vmatmul.mubr.bf16.gmra.mxu0 %v1294
        %v1330 = vpop.f32.mrf.mxu0
        %v1331 = vadd.f32 %v1280, %v1330
        %v1332 = vpop.f32.mrf.mxu0
        %v1333 = vpop.f32.mrf.mxu0
        %v1334 = vpop.f32.mrf.mxu0
        %1335 = vdwg.mxu0
        %v1336 = vunpack.c.l.bf16 %v1212
        %v1337 = vadd.f32 %v1331, %v1336
        %v1338 = vmax.f32 %v1337, 0.0
        %v1339 = vpack.c.bf16 %v1338, %v1338
        %v1340 = vld [vmem:[#allocation8] sm:$0xf]
        %v1341 = vld [vmem:[#allocation8 + $0x4] sm:$0xf]
        %v1342 = vld [vmem:[#allocation8 + $0x8] sm:$0xf]
        %v1343 = vld [vmem:[#allocation8 + $0xc] sm:$0xf]
        %v1344 = vld [vmem:[%s27 + $0x3] ss:$0 sm:$0xff]
        %v1349 = vunpack.c.l.b16 %v1340
        %v1350 = vunpack.c.l.b16 %v1341
        %v1351 = vunpack.c.l.b16 %v1342
        %v1352 = vunpack.c.l.b16 %v1343
        %v1353 = vpack.c.b16 %v1350, %v1349
        %v1354 = vpack.c.b16 %v1352, %v1351
        %v1358 = vsel %vm1230, %v1339, 0
        %1360 = vmatprep.subr.bf16.mxu0 0
        %1361 = vmatpush1.bf16.msra.mxu0 0
        %1362 = vmatprep.subr.bf16.mxu0 0
        %1363 = vmatpush1.bf16.msra.mxu0 0
        %1364 = vmatprep.subr.bf16.mxu0 0
        %1365 = vmatpush1.bf16.msra.mxu0 0
        %1366 = vmatprep.subr.bf16.mxu0 0
        %1367 = vmatpush1.bf16.msra.mxu0 0
        %1368 = vmatprep.subr.bf16.mxu0 0
        %1369 = vmatpush1.bf16.msra.mxu0 0
        %1370 = vmatprep.subr.bf16.mxu0 0
        %1371 = vmatpush1.bf16.msra.mxu0 0
        %1372 = vmatprep.subr.bf16.mxu0 0
        %1373 = vmatpush1.bf16.msra.mxu0 %v1354
        %1374 = vmatprep.subr.bf16.mxu0 0
        %1375 = vmatpush1.bf16.msra.mxu0 %v1353
        %1376 = vmatprep.subr.bf16.mxu0 0
        %1377 = vmatpush2.bf16.msra.mxu0 0
        %1378 = vmatprep.subr.bf16.mxu0 0
        %1379 = vmatpush2.bf16.msra.mxu0 0
        %1380 = vmatprep.subr.bf16.mxu0 0
        %1381 = vmatpush2.bf16.msra.mxu0 0
        %1382 = vmatprep.subr.bf16.mxu0 0
        %1383 = vmatpush2.bf16.msra.mxu0 0
        %1384 = vmatprep.subr.bf16.mxu0 0
        %1385 = vmatpush2.bf16.msra.mxu0 0
        %1386 = vmatprep.subr.bf16.mxu0 0
        %1387 = vmatpush2.bf16.msra.mxu0 0
        %1388 = vmatprep.subr.bf16.mxu0 0
        %1389 = vmatpush2.bf16.msra.mxu0 0
        %1390 = vmatprep.subr.bf16.mxu0 0
        %1391 = vmatpush2.bf16.msra.mxu0 0
        %1392 = vmatprep.mubr.bf16.mxu0 0
        %1393 = vmatmul.mubr.bf16.gmra.mxu0 %v1358
        %v1394 = vpop.f32.mrf.mxu0
        %v1395 = vadd.f32 %v1344, %v1394
        %v1396 = vpop.f32.mrf.mxu0
        %v1397 = vpop.f32.mrf.mxu0
        %v1398 = vpop.f32.mrf.mxu0
        %1399 = vdwg.mxu0
        %v1400 = vpack.c.bf16 %v1395, %v1395
        %v1401 = vld [vmem:[#allocation10] sm:$0xf]
        %v1402 = vld [vmem:[#allocation10 + $0x4] sm:$0xf]
        %v1403 = vld [vmem:[#allocation10 + $0x8] sm:$0xf]
        %v1404 = vld [vmem:[#allocation10 + $0xc] sm:$0xf]
        %v1405 = vld [vmem:[#allocation10 + $0x10] sm:$0xf]
        %v1406 = vld [vmem:[#allocation10 + $0x14] sm:$0xf]
        %v1407 = vld [vmem:[#allocation10 + $0x18] sm:$0xf]
        %v1408 = vld [vmem:[#allocation10 + $0x1c] sm:$0xf]
        %v1409 = vld [vmem:[%s27 + $0x4] ss:$0 sm:$0xff]
        %v1418 = vunpack.c.l.b16 %v1401
        %v1419 = vunpack.c.l.b16 %v1402
        %v1420 = vunpack.c.l.b16 %v1403
        %v1421 = vunpack.c.l.b16 %v1404
        %v1422 = vunpack.c.l.b16 %v1405
        %v1423 = vunpack.c.l.b16 %v1406
        %v1424 = vunpack.c.l.b16 %v1407
        %v1425 = vunpack.c.l.b16 %v1408
        %v1426 = vpack.c.b16 %v1419, %v1418
        %v1427 = vpack.c.b16 %v1421, %v1420
        %v1428 = vpack.c.b16 %v1423, %v1422
        %v1429 = vpack.c.b16 %v1425, %v1424
        %vm1434 = vcmask 523264
        %v1436 = vsel %vm1434, %v1400, 0
        %1438 = vmatprep.subr.bf16.mxu0 0
        %1439 = vmatpush1.bf16.msra.mxu0 0
        %1440 = vmatprep.subr.bf16.mxu0 0
        %1441 = vmatpush1.bf16.msra.mxu0 0
        %1442 = vmatprep.subr.bf16.mxu0 0
        %1443 = vmatpush1.bf16.msra.mxu0 0
        %1444 = vmatprep.subr.bf16.mxu0 0
        %1445 = vmatpush1.bf16.msra.mxu0 0
        %1446 = vmatprep.subr.bf16.mxu0 0
        %1447 = vmatpush1.bf16.msra.mxu0 %v1429
        %1448 = vmatprep.subr.bf16.mxu0 0
        %1449 = vmatpush1.bf16.msra.mxu0 %v1428
        %1450 = vmatprep.subr.bf16.mxu0 0
        %1451 = vmatpush1.bf16.msra.mxu0 %v1427
        %1452 = vmatprep.subr.bf16.mxu0 0
        %1453 = vmatpush1.bf16.msra.mxu0 %v1426
        %1454 = vmatprep.subr.bf16.mxu0 0
        %1455 = vmatpush2.bf16.msra.mxu0 0
        %1456 = vmatprep.subr.bf16.mxu0 0
        %1457 = vmatpush2.bf16.msra.mxu0 0
        %1458 = vmatprep.subr.bf16.mxu0 0
        %1459 = vmatpush2.bf16.msra.mxu0 0
        %1460 = vmatprep.subr.bf16.mxu0 0
        %1461 = vmatpush2.bf16.msra.mxu0 0
        %1462 = vmatprep.subr.bf16.mxu0 0
        %1463 = vmatpush2.bf16.msra.mxu0 0
        %1464 = vmatprep.subr.bf16.mxu0 0
        %1465 = vmatpush2.bf16.msra.mxu0 0
        %1466 = vmatprep.subr.bf16.mxu0 0
        %1467 = vmatpush2.bf16.msra.mxu0 0
        %1468 = vmatprep.subr.bf16.mxu0 0
        %1469 = vmatpush2.bf16.msra.mxu0 0
        %1470 = vmatprep.mubr.bf16.mxu0 0
        %1471 = vmatmul.mubr.bf16.gmra.mxu0 %v1436
        %v1472 = vpop.f32.mrf.mxu0
        %v1473 = vadd.f32 %v1409, %v1472
        %v1474 = vpop.f32.mrf.mxu0
        %v1475 = vpop.f32.mrf.mxu0
        %v1476 = vpop.f32.mrf.mxu0
        %1477 = vdwg.mxu0
        %v1478 = vmax.f32 %v1473, 0.0
        %v1479 = vpack.c.bf16 %v1478, %v1478
        %v1480 = vld [vmem:[#allocation11] sm:$0xf]
        %v1481 = vld [vmem:[#allocation11 + $0x4] sm:$0xf]
        %v1482 = vld [vmem:[#allocation11 + $0x8] sm:$0xf]
        %v1483 = vld [vmem:[#allocation11 + $0xc] sm:$0xf]
        %v1484 = vld [vmem:[#allocation11 + $0x10] sm:$0xf]
        %v1485 = vld [vmem:[#allocation11 + $0x14] sm:$0xf]
        %v1486 = vld [vmem:[#allocation11 + $0x18] sm:$0xf]
        %v1487 = vld [vmem:[#allocation11 + $0x1c] sm:$0xf]
        %v1488 = vld [vmem:[%s27 + $0x5] ss:$0 sm:$0xff]
        %v1497 = vunpack.c.l.b16 %v1480
        %v1498 = vunpack.c.l.b16 %v1481
        %v1499 = vunpack.c.l.b16 %v1482
        %v1500 = vunpack.c.l.b16 %v1483
        %v1501 = vunpack.c.l.b16 %v1484
        %v1502 = vunpack.c.l.b16 %v1485
        %v1503 = vunpack.c.l.b16 %v1486
        %v1504 = vunpack.c.l.b16 %v1487
        %v1505 = vpack.c.b16 %v1498, %v1497
        %v1506 = vpack.c.b16 %v1500, %v1499
        %v1507 = vpack.c.b16 %v1502, %v1501
        %v1508 = vpack.c.b16 %v1504, %v1503
        %v1514 = vsel %vm1434, %v1479, 0
        %1516 = vmatprep.subr.bf16.mxu0 0
        %1517 = vmatpush1.bf16.msra.mxu0 0
        %1518 = vmatprep.subr.bf16.mxu0 0
        %1519 = vmatpush1.bf16.msra.mxu0 0
        %1520 = vmatprep.subr.bf16.mxu0 0
        %1521 = vmatpush1.bf16.msra.mxu0 0
        %1522 = vmatprep.subr.bf16.mxu0 0
        %1523 = vmatpush1.bf16.msra.mxu0 0
        %1524 = vmatprep.subr.bf16.mxu0 0
        %1525 = vmatpush1.bf16.msra.mxu0 %v1508
        %1526 = vmatprep.subr.bf16.mxu0 0
        %1527 = vmatpush1.bf16.msra.mxu0 %v1507
        %1528 = vmatprep.subr.bf16.mxu0 0
        %1529 = vmatpush1.bf16.msra.mxu0 %v1506
        %1530 = vmatprep.subr.bf16.mxu0 0
        %1531 = vmatpush1.bf16.msra.mxu0 %v1505
        %1532 = vmatprep.subr.bf16.mxu0 0
        %1533 = vmatpush2.bf16.msra.mxu0 0
        %1534 = vmatprep.subr.bf16.mxu0 0
        %1535 = vmatpush2.bf16.msra.mxu0 0
        %1536 = vmatprep.subr.bf16.mxu0 0
        %1537 = vmatpush2.bf16.msra.mxu0 0
        %1538 = vmatprep.subr.bf16.mxu0 0
        %1539 = vmatpush2.bf16.msra.mxu0 0
        %1540 = vmatprep.subr.bf16.mxu0 0
        %1541 = vmatpush2.bf16.msra.mxu0 0
        %1542 = vmatprep.subr.bf16.mxu0 0
        %1543 = vmatpush2.bf16.msra.mxu0 0
        %1544 = vmatprep.subr.bf16.mxu0 0
        %1545 = vmatpush2.bf16.msra.mxu0 0
        %1546 = vmatprep.subr.bf16.mxu0 0
        %1547 = vmatpush2.bf16.msra.mxu0 0
        %1548 = vmatprep.mubr.bf16.mxu0 0
        %1549 = vmatmul.mubr.bf16.gmra.mxu0 %v1514
        %v1550 = vpop.f32.mrf.mxu0
        %v1551 = vadd.f32 %v1488, %v1550
        %v1552 = vpop.f32.mrf.mxu0
        %v1553 = vpop.f32.mrf.mxu0
        %v1554 = vpop.f32.mrf.mxu0
        %1555 = vdwg.mxu0
        %v1556 = vunpack.c.l.bf16 %v1400
        %v1557 = vadd.f32 %v1551, %v1556
        %v1558 = vmax.f32 %v1557, 0.0
        %v1559 = vpack.c.bf16 %v1558, %v1558
        %v1560 = vld [vmem:[#allocation13] sm:$0xf]
        %v1561 = vld [vmem:[#allocation13 + $0x4] sm:$0xf]
        %v1562 = vld [vmem:[#allocation13 + $0x8] sm:$0xf]
        %v1563 = vld [vmem:[#allocation13 + $0xc] sm:$0xf]
        %v1564 = vld [vmem:[#allocation13 + $0x10] sm:$0xf]
        %v1565 = vld [vmem:[#allocation13 + $0x14] sm:$0xf]
        %v1566 = vld [vmem:[#allocation13 + $0x18] sm:$0xf]
        %v1567 = vld [vmem:[#allocation13 + $0x1c] sm:$0xf]
        %v1568 = vld [vmem:[%s27 + $0x6] ss:$0 sm:$0xff]
        %v1577 = vunpack.c.l.b16 %v1560
        %v1578 = vunpack.c.l.b16 %v1561
        %v1579 = vunpack.c.l.b16 %v1562
        %v1580 = vunpack.c.l.b16 %v1563
        %v1581 = vunpack.c.l.b16 %v1564
        %v1582 = vunpack.c.l.b16 %v1565
        %v1583 = vunpack.c.l.b16 %v1566
        %v1584 = vunpack.c.l.b16 %v1567
        %v1585 = vpack.c.b16 %v1578, %v1577
        %v1586 = vpack.c.b16 %v1580, %v1579
        %v1587 = vpack.c.b16 %v1582, %v1581
        %v1588 = vpack.c.b16 %v1584, %v1583
        %v1594 = vsel %vm1434, %v1559, 0
        %1596 = vmatprep.subr.bf16.mxu0 0
        %1597 = vmatpush1.bf16.msra.mxu0 0
        %1598 = vmatprep.subr.bf16.mxu0 0
        %1599 = vmatpush1.bf16.msra.mxu0 0
        %1600 = vmatprep.subr.bf16.mxu0 0
        %1601 = vmatpush1.bf16.msra.mxu0 0
        %1602 = vmatprep.subr.bf16.mxu0 0
        %1603 = vmatpush1.bf16.msra.mxu0 0
        %1604 = vmatprep.subr.bf16.mxu0 0
        %1605 = vmatpush1.bf16.msra.mxu0 %v1588
        %1606 = vmatprep.subr.bf16.mxu0 0
        %1607 = vmatpush1.bf16.msra.mxu0 %v1587
        %1608 = vmatprep.subr.bf16.mxu0 0
        %1609 = vmatpush1.bf16.msra.mxu0 %v1586
        %1610 = vmatprep.subr.bf16.mxu0 0
        %1611 = vmatpush1.bf16.msra.mxu0 %v1585
        %1612 = vmatprep.subr.bf16.mxu0 0
        %1613 = vmatpush2.bf16.msra.mxu0 0
        %1614 = vmatprep.subr.bf16.mxu0 0
        %1615 = vmatpush2.bf16.msra.mxu0 0
        %1616 = vmatprep.subr.bf16.mxu0 0
        %1617 = vmatpush2.bf16.msra.mxu0 0
        %1618 = vmatprep.subr.bf16.mxu0 0
        %1619 = vmatpush2.bf16.msra.mxu0 0
        %1620 = vmatprep.subr.bf16.mxu0 0
        %1621 = vmatpush2.bf16.msra.mxu0 0
        %1622 = vmatprep.subr.bf16.mxu0 0
        %1623 = vmatpush2.bf16.msra.mxu0 0
        %1624 = vmatprep.subr.bf16.mxu0 0
        %1625 = vmatpush2.bf16.msra.mxu0 0
        %1626 = vmatprep.subr.bf16.mxu0 0
        %1627 = vmatpush2.bf16.msra.mxu0 0
        %1628 = vmatprep.mubr.bf16.mxu0 0
        %1629 = vmatmul.mubr.bf16.gmra.mxu0 %v1594
        %v1630 = vpop.f32.mrf.mxu0
        %v1631 = vadd.f32 %v1568, %v1630
        %v1632 = vpop.f32.mrf.mxu0
        %v1633 = vpop.f32.mrf.mxu0
        %v1634 = vpop.f32.mrf.mxu0
        %1635 = vdwg.mxu0
        %v1636 = vpack.c.bf16 %v1631, %v1631
        %v1637 = vld [vmem:[#allocation14] sm:$0xf]
        %v1638 = vld [vmem:[#allocation14 + $0x4] sm:$0xf]
        %v1639 = vld [vmem:[#allocation14 + $0x8] sm:$0xf]
        %v1640 = vld [vmem:[#allocation14 + $0xc] sm:$0xf]
        %v1641 = vld [vmem:[#allocation14 + $0x10] sm:$0xf]
        %v1642 = vld [vmem:[#allocation14 + $0x14] sm:$0xf]
        %v1643 = vld [vmem:[#allocation14 + $0x18] sm:$0xf]
        %v1644 = vld [vmem:[#allocation14 + $0x1c] sm:$0xf]
        %v1645 = vld [vmem:[#allocation14 + $0x20] sm:$0xf]
        %v1646 = vld [vmem:[#allocation14 + $0x24] sm:$0xf]
        %v1647 = vld [vmem:[#allocation14 + $0x28] sm:$0xf]
        %v1648 = vld [vmem:[#allocation14 + $0x2c] sm:$0xf]
        %v1649 = vld [vmem:[#allocation14 + $0x30] sm:$0xf]
        %v1650 = vld [vmem:[#allocation14 + $0x34] sm:$0xf]
        %v1651 = vld [vmem:[#allocation14 + $0x38] sm:$0xf]
        %v1652 = vld [vmem:[#allocation14 + $0x3c] sm:$0xf]
        %v1653 = vld [vmem:[%s27 + $0x7] ss:$0 sm:$0xff]
        %v1670 = vunpack.c.l.b16 %v1637
        %v1671 = vunpack.c.l.b16 %v1638
        %v1672 = vunpack.c.l.b16 %v1639
        %v1673 = vunpack.c.l.b16 %v1640
        %v1674 = vunpack.c.l.b16 %v1641
        %v1675 = vunpack.c.l.b16 %v1642
        %v1676 = vunpack.c.l.b16 %v1643
        %v1677 = vunpack.c.l.b16 %v1644
        %v1678 = vunpack.c.l.b16 %v1645
        %v1679 = vunpack.c.l.b16 %v1646
        %v1680 = vunpack.c.l.b16 %v1647
        %v1681 = vunpack.c.l.b16 %v1648
        %v1682 = vunpack.c.l.b16 %v1649
        %v1683 = vunpack.c.l.b16 %v1650
        %v1684 = vunpack.c.l.b16 %v1651
        %v1685 = vunpack.c.l.b16 %v1652
        %v1686 = vpack.c.b16 %v1671, %v1670
        %v1687 = vpack.c.b16 %v1673, %v1672
        %v1688 = vpack.c.b16 %v1675, %v1674
        %v1689 = vpack.c.b16 %v1677, %v1676
        %v1690 = vpack.c.b16 %v1679, %v1678
        %v1691 = vpack.c.b16 %v1681, %v1680
        %v1692 = vpack.c.b16 %v1683, %v1682
        %v1693 = vpack.c.b16 %v1685, %v1684
        %1702 = vmatprep.subr.bf16.mxu0 0
        %1703 = vmatpush1.bf16.msra.mxu0 %v1693
        %1704 = vmatprep.subr.bf16.mxu0 0
        %1705 = vmatpush1.bf16.msra.mxu0 %v1692
        %1706 = vmatprep.subr.bf16.mxu0 0
        %1707 = vmatpush1.bf16.msra.mxu0 %v1691
        %1708 = vmatprep.subr.bf16.mxu0 0
        %1709 = vmatpush1.bf16.msra.mxu0 %v1690
        %1710 = vmatprep.subr.bf16.mxu0 0
        %1711 = vmatpush1.bf16.msra.mxu0 %v1689
        %1712 = vmatprep.subr.bf16.mxu0 0
        %1713 = vmatpush1.bf16.msra.mxu0 %v1688
        %1714 = vmatprep.subr.bf16.mxu0 0
        %1715 = vmatpush1.bf16.msra.mxu0 %v1687
        %1716 = vmatprep.subr.bf16.mxu0 0
        %1717 = vmatpush1.bf16.msra.mxu0 %v1686
        %1718 = vmatprep.subr.bf16.mxu0 0
        %1719 = vmatpush2.bf16.msra.mxu0 0
        %1720 = vmatprep.subr.bf16.mxu0 0
        %1721 = vmatpush2.bf16.msra.mxu0 0
        %1722 = vmatprep.subr.bf16.mxu0 0
        %1723 = vmatpush2.bf16.msra.mxu0 0
        %1724 = vmatprep.subr.bf16.mxu0 0
        %1725 = vmatpush2.bf16.msra.mxu0 0
        %1726 = vmatprep.subr.bf16.mxu0 0
        %1727 = vmatpush2.bf16.msra.mxu0 0
        %1728 = vmatprep.subr.bf16.mxu0 0
        %1729 = vmatpush2.bf16.msra.mxu0 0
        %1730 = vmatprep.subr.bf16.mxu0 0
        %1731 = vmatpush2.bf16.msra.mxu0 0
        %1732 = vmatprep.subr.bf16.mxu0 0
        %1733 = vmatpush2.bf16.msra.mxu0 0
        %1734 = vmatprep.mubr.bf16.mxu0 0
        %1735 = vmatmul.mubr.bf16.gmra.mxu0 %v1636
        %v1736 = vpop.f32.mrf.mxu0
        %v1737 = vadd.f32 %v1653, %v1736
        %v1738 = vpop.f32.mrf.mxu0
        %v1739 = vpop.f32.mrf.mxu0
        %v1740 = vpop.f32.mrf.mxu0
        %1741 = vdwg.mxu0
        %v1742 = vmax.f32 %v1737, 0.0
        %v1743 = vpack.c.bf16 %v1742, %v1742
        %v1744 = vld [vmem:[#allocation16] sm:$0xf]
        %v1745 = vld [vmem:[#allocation16 + $0x4] sm:$0xf]
        %v1746 = vld [vmem:[#allocation16 + $0x8] sm:$0xf]
        %v1747 = vld [vmem:[#allocation16 + $0xc] sm:$0xf]
        %v1748 = vld [vmem:[#allocation16 + $0x10] sm:$0xf]
        %v1749 = vld [vmem:[#allocation16 + $0x14] sm:$0xf]
        %v1750 = vld [vmem:[#allocation16 + $0x18] sm:$0xf]
        %v1751 = vld [vmem:[#allocation16 + $0x1c] sm:$0xf]
        %v1752 = vld [vmem:[#allocation16 + $0x20] sm:$0xf]
        %v1753 = vld [vmem:[#allocation16 + $0x24] sm:$0xf]
        %v1754 = vld [vmem:[#allocation16 + $0x28] sm:$0xf]
        %v1755 = vld [vmem:[#allocation16 + $0x2c] sm:$0xf]
        %v1756 = vld [vmem:[#allocation16 + $0x30] sm:$0xf]
        %v1757 = vld [vmem:[#allocation16 + $0x34] sm:$0xf]
        %v1758 = vld [vmem:[#allocation16 + $0x38] sm:$0xf]
        %v1759 = vld [vmem:[#allocation16 + $0x3c] sm:$0xf]
        %v1760 = vld [vmem:[%s27 + $0x10] ss:$0 sm:$0xff]
        %v1777 = vunpack.c.l.b16 %v1744
        %v1778 = vunpack.c.l.b16 %v1745
        %v1779 = vunpack.c.l.b16 %v1746
        %v1780 = vunpack.c.l.b16 %v1747
        %v1781 = vunpack.c.l.b16 %v1748
        %v1782 = vunpack.c.l.b16 %v1749
        %v1783 = vunpack.c.l.b16 %v1750
        %v1784 = vunpack.c.l.b16 %v1751
        %v1785 = vunpack.c.l.b16 %v1752
        %v1786 = vunpack.c.l.b16 %v1753
        %v1787 = vunpack.c.l.b16 %v1754
        %v1788 = vunpack.c.l.b16 %v1755
        %v1789 = vunpack.c.l.b16 %v1756
        %v1790 = vunpack.c.l.b16 %v1757
        %v1791 = vunpack.c.l.b16 %v1758
        %v1792 = vunpack.c.l.b16 %v1759
        %v1793 = vpack.c.b16 %v1778, %v1777
        %v1794 = vpack.c.b16 %v1780, %v1779
        %v1795 = vpack.c.b16 %v1782, %v1781
        %v1796 = vpack.c.b16 %v1784, %v1783
        %v1797 = vpack.c.b16 %v1786, %v1785
        %v1798 = vpack.c.b16 %v1788, %v1787
        %v1799 = vpack.c.b16 %v1790, %v1789
        %v1800 = vpack.c.b16 %v1792, %v1791
        %1809 = vmatprep.subr.bf16.mxu0 0
        %1810 = vmatpush1.bf16.msra.mxu0 %v1800
        %1811 = vmatprep.subr.bf16.mxu0 0
        %1812 = vmatpush1.bf16.msra.mxu0 %v1799
        %1813 = vmatprep.subr.bf16.mxu0 0
        %1814 = vmatpush1.bf16.msra.mxu0 %v1798
        %1815 = vmatprep.subr.bf16.mxu0 0
        %1816 = vmatpush1.bf16.msra.mxu0 %v1797
        %1817 = vmatprep.subr.bf16.mxu0 0
        %1818 = vmatpush1.bf16.msra.mxu0 %v1796
        %1819 = vmatprep.subr.bf16.mxu0 0
        %1820 = vmatpush1.bf16.msra.mxu0 %v1795
        %1821 = vmatprep.subr.bf16.mxu0 0
        %1822 = vmatpush1.bf16.msra.mxu0 %v1794
        %1823 = vmatprep.subr.bf16.mxu0 0
        %1824 = vmatpush1.bf16.msra.mxu0 %v1793
        %1825 = vmatprep.subr.bf16.mxu0 0
        %1826 = vmatpush2.bf16.msra.mxu0 0
        %1827 = vmatprep.subr.bf16.mxu0 0
        %1828 = vmatpush2.bf16.msra.mxu0 0
        %1829 = vmatprep.subr.bf16.mxu0 0
        %1830 = vmatpush2.bf16.msra.mxu0 0
        %1831 = vmatprep.subr.bf16.mxu0 0
        %1832 = vmatpush2.bf16.msra.mxu0 0
        %1833 = vmatprep.subr.bf16.mxu0 0
        %1834 = vmatpush2.bf16.msra.mxu0 0
        %1835 = vmatprep.subr.bf16.mxu0 0
        %1836 = vmatpush2.bf16.msra.mxu0 0
        %1837 = vmatprep.subr.bf16.mxu0 0
        %1838 = vmatpush2.bf16.msra.mxu0 0
        %1839 = vmatprep.subr.bf16.mxu0 0
        %1840 = vmatpush2.bf16.msra.mxu0 0
        %1841 = vmatprep.mubr.bf16.mxu0 0
        %1842 = vmatmul.mubr.bf16.gmra.mxu0 %v1743
        %v1843 = vpop.f32.mrf.mxu0
        %v1844 = vadd.f32 %v1760, %v1843
        %v1845 = vpop.f32.mrf.mxu0
        %v1846 = vpop.f32.mrf.mxu0
        %v1847 = vpop.f32.mrf.mxu0
        %1848 = vdwg.mxu0
        %v1849 = vunpack.c.l.bf16 %v1636
        %v1850 = vadd.f32 %v1844, %v1849
        %v1851 = vmax.f32 %v1850, 0.0
        %v1852 = vpack.c.bf16 %v1851, %v1851
        %v1853 = vld [vmem:[#allocation17] sm:$0xff]
        %v1854 = vld [vmem:[#allocation17 + $0x8] sm:$0xff]
        %v1855 = vld [vmem:[#allocation17 + $0x10] sm:$0xff]
        %v1856 = vld [vmem:[#allocation17 + $0x18] sm:$0xff]
        %v1857 = vld [vmem:[#allocation17 + $0x20] sm:$0xff]
        %v1858 = vld [vmem:[#allocation17 + $0x28] sm:$0xff]
        %v1859 = vld [vmem:[#allocation17 + $0x30] sm:$0xff]
        %v1860 = vld [vmem:[#allocation17 + $0x38] sm:$0xff]
        %v1861 = vld [vmem:[#allocation17 + $0x40] sm:$0xff]
        %v1862 = vld [vmem:[#allocation17 + $0x48] sm:$0xff]
        %v1863 = vld [vmem:[#allocation17 + $0x50] sm:$0xff]
        %v1864 = vld [vmem:[#allocation17 + $0x58] sm:$0xff]
        %v1865 = vld [vmem:[#allocation17 + $0x60] sm:$0xff]
        %v1866 = vld [vmem:[#allocation17 + $0x68] sm:$0xff]
        %v1867 = vld [vmem:[#allocation17 + $0x70] sm:$0xff]
        %v1868 = vld [vmem:[#allocation17 + $0x78] sm:$0xff]
        %s1869 = scalar_lea.vmem %s27, 17
        %v1870 = vld [vmem:[%s1869] ss:$8 sm:$0x3]
        %v1872 = vlaneseq
        %v1873 = vshrl.u32 %v1872, 7
        %v1874 = vsub.s32 0, %v1873
        %v1875 = vrot.slane %v1870, %v1874
        %v1876 = vlaneseq
        %v1877 = vshrl.u32 %v1876, 7
        %v1878 = vsub.s32 1, %v1877
        %v1879 = vrot.slane %v1870, %v1878
        %v1898 = vunpack.c.l.b16 %v1853
        %v1899 = vunpack.c.h.b16 %v1853
        %v1900 = vunpack.c.l.b16 %v1854
        %v1901 = vunpack.c.h.b16 %v1854
        %v1902 = vunpack.c.l.b16 %v1855
        %v1903 = vunpack.c.h.b16 %v1855
        %v1904 = vunpack.c.l.b16 %v1856
        %v1905 = vunpack.c.h.b16 %v1856
        %v1906 = vunpack.c.l.b16 %v1857
        %v1907 = vunpack.c.h.b16 %v1857
        %v1908 = vunpack.c.l.b16 %v1858
        %v1909 = vunpack.c.h.b16 %v1858
        %v1910 = vunpack.c.l.b16 %v1859
        %v1911 = vunpack.c.h.b16 %v1859
        %v1912 = vunpack.c.l.b16 %v1860
        %v1913 = vunpack.c.h.b16 %v1860
        %v1914 = vunpack.c.l.b16 %v1861
        %v1915 = vunpack.c.h.b16 %v1861
        %v1916 = vunpack.c.l.b16 %v1862
        %v1917 = vunpack.c.h.b16 %v1862
        %v1918 = vunpack.c.l.b16 %v1863
        %v1919 = vunpack.c.h.b16 %v1863
        %v1920 = vunpack.c.l.b16 %v1864
        %v1921 = vunpack.c.h.b16 %v1864
        %v1922 = vunpack.c.l.b16 %v1865
        %v1923 = vunpack.c.h.b16 %v1865
        %v1924 = vunpack.c.l.b16 %v1866
        %v1925 = vunpack.c.h.b16 %v1866
        %v1926 = vunpack.c.l.b16 %v1867
        %v1927 = vunpack.c.h.b16 %v1867
        %v1928 = vunpack.c.l.b16 %v1868
        %v1929 = vunpack.c.h.b16 %v1868
        %v1930 = vpack.c.b16 %v1900, %v1898
        %v1931 = vpack.c.b16 %v1901, %v1899
        %v1932 = vpack.c.b16 %v1904, %v1902
        %v1933 = vpack.c.b16 %v1905, %v1903
        %v1934 = vpack.c.b16 %v1908, %v1906
        %v1935 = vpack.c.b16 %v1909, %v1907
        %v1936 = vpack.c.b16 %v1912, %v1910
        %v1937 = vpack.c.b16 %v1913, %v1911
        %v1938 = vpack.c.b16 %v1916, %v1914
        %v1939 = vpack.c.b16 %v1917, %v1915
        %v1940 = vpack.c.b16 %v1920, %v1918
        %v1941 = vpack.c.b16 %v1921, %v1919
        %v1942 = vpack.c.b16 %v1924, %v1922
        %v1943 = vpack.c.b16 %v1925, %v1923
        %v1944 = vpack.c.b16 %v1928, %v1926
        %v1945 = vpack.c.b16 %v1929, %v1927
        %1962 = vmatprep.subr.bf16.mxu0 %v1945
        %1963 = vmatpush1.bf16.msra.mxu0 %v1944
        %1964 = vmatprep.subr.bf16.mxu0 %v1943
        %1965 = vmatpush1.bf16.msra.mxu0 %v1942
        %1966 = vmatprep.subr.bf16.mxu0 %v1941
        %1967 = vmatpush1.bf16.msra.mxu0 %v1940
        %1968 = vmatprep.subr.bf16.mxu0 %v1939
        %1969 = vmatpush1.bf16.msra.mxu0 %v1938
        %1970 = vmatprep.subr.bf16.mxu0 %v1937
        %1971 = vmatpush1.bf16.msra.mxu0 %v1936
        %1972 = vmatprep.subr.bf16.mxu0 %v1935
        %1973 = vmatpush1.bf16.msra.mxu0 %v1934
        %1974 = vmatprep.subr.bf16.mxu0 %v1933
        %1975 = vmatpush1.bf16.msra.mxu0 %v1932
        %1976 = vmatprep.subr.bf16.mxu0 %v1931
        %1977 = vmatpush1.bf16.msra.mxu0 %v1930
        %1978 = vmatprep.subr.bf16.mxu0 0
        %1979 = vmatpush2.bf16.msra.mxu0 0
        %1980 = vmatprep.subr.bf16.mxu0 0
        %1981 = vmatpush2.bf16.msra.mxu0 0
        %1982 = vmatprep.subr.bf16.mxu0 0
        %1983 = vmatpush2.bf16.msra.mxu0 0
        %1984 = vmatprep.subr.bf16.mxu0 0
        %1985 = vmatpush2.bf16.msra.mxu0 0
        %1986 = vmatprep.subr.bf16.mxu0 0
        %1987 = vmatpush2.bf16.msra.mxu0 0
        %1988 = vmatprep.subr.bf16.mxu0 0
        %1989 = vmatpush2.bf16.msra.mxu0 0
        %1990 = vmatprep.subr.bf16.mxu0 0
        %1991 = vmatpush2.bf16.msra.mxu0 0
        %1992 = vmatprep.subr.bf16.mxu0 0
        %1993 = vmatpush2.bf16.msra.mxu0 0
        %1994 = vmatprep.mubr.bf16.mxu0 0
        %1995 = vmatmul.mubr.bf16.gmra.mxu0 %v1852
        %v1996 = vpop.f32.mrf.mxu0
        %v1997 = vadd.f32 %v1875, %v1996
        %v1998 = vpop.f32.mrf.mxu0
        %v1999 = vadd.f32 %v1879, %v1998
        %v2000 = vpop.f32.mrf.mxu0
        %v2001 = vpop.f32.mrf.mxu0
        %2002 = vdwg.mxu0
        %v2003 = vpack.c.bf16 %v1997, %v1997
        %v2004 = vpack.c.bf16 %v1999, %v1999
        %v2005 = vld [vmem:[%s11] sm:$0xff]
        %v2006 = vld [vmem:[%s11 + $0x8] sm:$0xff]
        %v2007 = vld [vmem:[%s11 + $0x10] sm:$0xff]
        %v2008 = vld [vmem:[%s11 + $0x18] sm:$0xff]
        %v2009 = vld [vmem:[%s11 + $0x20] sm:$0xff]
        %v2010 = vld [vmem:[%s11 + $0x28] sm:$0xff]
        %v2011 = vld [vmem:[%s11 + $0x30] sm:$0xff]
        %v2012 = vld [vmem:[%s11 + $0x38] sm:$0xff]
        %v2013 = vld [vmem:[%s11 + $0x40] sm:$0xff]
        %v2014 = vld [vmem:[%s11 + $0x48] sm:$0xff]
        %v2015 = vld [vmem:[%s11 + $0x50] sm:$0xff]
        %v2016 = vld [vmem:[%s11 + $0x58] sm:$0xff]
        %v2017 = vld [vmem:[%s11 + $0x60] sm:$0xff]
        %v2018 = vld [vmem:[%s11 + $0x68] sm:$0xff]
        %v2019 = vld [vmem:[%s11 + $0x70] sm:$0xff]
        %v2020 = vld [vmem:[%s11 + $0x78] sm:$0xff]
        %v2021 = vld [vmem:[%s11 + $0x80] sm:$0xff]
        %v2022 = vld [vmem:[%s11 + $0x88] sm:$0xff]
        %v2023 = vld [vmem:[%s11 + $0x90] sm:$0xff]
        %v2024 = vld [vmem:[%s11 + $0x98] sm:$0xff]
        %v2025 = vld [vmem:[%s11 + $0xa0] sm:$0xff]
        %v2026 = vld [vmem:[%s11 + $0xa8] sm:$0xff]
        %v2027 = vld [vmem:[%s11 + $0xb0] sm:$0xff]
        %v2028 = vld [vmem:[%s11 + $0xb8] sm:$0xff]
        %v2029 = vld [vmem:[%s11 + $0xc0] sm:$0xff]
        %v2030 = vld [vmem:[%s11 + $0xc8] sm:$0xff]
        %v2031 = vld [vmem:[%s11 + $0xd0] sm:$0xff]
        %v2032 = vld [vmem:[%s11 + $0xd8] sm:$0xff]
        %v2033 = vld [vmem:[%s11 + $0xe0] sm:$0xff]
        %v2034 = vld [vmem:[%s11 + $0xe8] sm:$0xff]
        %v2035 = vld [vmem:[%s11 + $0xf0] sm:$0xff]
        %v2036 = vld [vmem:[%s11 + $0xf8] sm:$0xff]
        %s2037 = scalar_lea.vmem %s27, 18
        %v2038 = vld [vmem:[%s2037] ss:$8 sm:$0x3]
        %v2040 = vlaneseq
        %v2041 = vshrl.u32 %v2040, 7
        %v2042 = vsub.s32 0, %v2041
        %v2043 = vrot.slane %v2038, %v2042
        %v2044 = vlaneseq
        %v2045 = vshrl.u32 %v2044, 7
        %v2046 = vsub.s32 1, %v2045
        %v2047 = vrot.slane %v2038, %v2046
        %v2082 = vunpack.c.l.b16 %v2005
        %v2083 = vunpack.c.h.b16 %v2005
        %v2084 = vunpack.c.l.b16 %v2006
        %v2085 = vunpack.c.h.b16 %v2006
        %v2086 = vunpack.c.l.b16 %v2007
        %v2087 = vunpack.c.h.b16 %v2007
        %v2088 = vunpack.c.l.b16 %v2008
        %v2089 = vunpack.c.h.b16 %v2008
        %v2090 = vunpack.c.l.b16 %v2009
        %v2091 = vunpack.c.h.b16 %v2009
        %v2092 = vunpack.c.l.b16 %v2010
        %v2093 = vunpack.c.h.b16 %v2010
        %v2094 = vunpack.c.l.b16 %v2011
        %v2095 = vunpack.c.h.b16 %v2011
        %v2096 = vunpack.c.l.b16 %v2012
        %v2097 = vunpack.c.h.b16 %v2012
        %v2098 = vunpack.c.l.b16 %v2013
        %v2099 = vunpack.c.h.b16 %v2013
        %v2100 = vunpack.c.l.b16 %v2014
        %v2101 = vunpack.c.h.b16 %v2014
        %v2102 = vunpack.c.l.b16 %v2015
        %v2103 = vunpack.c.h.b16 %v2015
        %v2104 = vunpack.c.l.b16 %v2016
        %v2105 = vunpack.c.h.b16 %v2016
        %v2106 = vunpack.c.l.b16 %v2017
        %v2107 = vunpack.c.h.b16 %v2017
        %v2108 = vunpack.c.l.b16 %v2018
        %v2109 = vunpack.c.h.b16 %v2018
        %v2110 = vunpack.c.l.b16 %v2019
        %v2111 = vunpack.c.h.b16 %v2019
        %v2112 = vunpack.c.l.b16 %v2020
        %v2113 = vunpack.c.h.b16 %v2020
        %v2114 = vunpack.c.l.b16 %v2021
        %v2115 = vunpack.c.h.b16 %v2021
        %v2116 = vunpack.c.l.b16 %v2022
        %v2117 = vunpack.c.h.b16 %v2022
        %v2118 = vunpack.c.l.b16 %v2023
        %v2119 = vunpack.c.h.b16 %v2023
        %v2120 = vunpack.c.l.b16 %v2024
        %v2121 = vunpack.c.h.b16 %v2024
        %v2122 = vunpack.c.l.b16 %v2025
        %v2123 = vunpack.c.h.b16 %v2025
        %v2124 = vunpack.c.l.b16 %v2026
        %v2125 = vunpack.c.h.b16 %v2026
        %v2126 = vunpack.c.l.b16 %v2027
        %v2127 = vunpack.c.h.b16 %v2027
        %v2128 = vunpack.c.l.b16 %v2028
        %v2129 = vunpack.c.h.b16 %v2028
        %v2130 = vunpack.c.l.b16 %v2029
        %v2131 = vunpack.c.h.b16 %v2029
        %v2132 = vunpack.c.l.b16 %v2030
        %v2133 = vunpack.c.h.b16 %v2030
        %v2134 = vunpack.c.l.b16 %v2031
        %v2135 = vunpack.c.h.b16 %v2031
        %v2136 = vunpack.c.l.b16 %v2032
        %v2137 = vunpack.c.h.b16 %v2032
        %v2138 = vunpack.c.l.b16 %v2033
        %v2139 = vunpack.c.h.b16 %v2033
        %v2140 = vunpack.c.l.b16 %v2034
        %v2141 = vunpack.c.h.b16 %v2034
        %v2142 = vunpack.c.l.b16 %v2035
        %v2143 = vunpack.c.h.b16 %v2035
        %v2144 = vunpack.c.l.b16 %v2036
        %v2145 = vunpack.c.h.b16 %v2036
        %v2146 = vpack.c.b16 %v2084, %v2082
        %v2147 = vpack.c.b16 %v2085, %v2083
        %v2148 = vpack.c.b16 %v2088, %v2086
        %v2149 = vpack.c.b16 %v2089, %v2087
        %v2150 = vpack.c.b16 %v2092, %v2090
        %v2151 = vpack.c.b16 %v2093, %v2091
        %v2152 = vpack.c.b16 %v2096, %v2094
        %v2153 = vpack.c.b16 %v2097, %v2095
        %v2154 = vpack.c.b16 %v2100, %v2098
        %v2155 = vpack.c.b16 %v2101, %v2099
        %v2156 = vpack.c.b16 %v2104, %v2102
        %v2157 = vpack.c.b16 %v2105, %v2103
        %v2158 = vpack.c.b16 %v2108, %v2106
        %v2159 = vpack.c.b16 %v2109, %v2107
        %v2160 = vpack.c.b16 %v2112, %v2110
        %v2161 = vpack.c.b16 %v2113, %v2111
        %v2162 = vpack.c.b16 %v2116, %v2114
        %v2163 = vpack.c.b16 %v2117, %v2115
        %v2164 = vpack.c.b16 %v2120, %v2118
        %v2165 = vpack.c.b16 %v2121, %v2119
        %v2166 = vpack.c.b16 %v2124, %v2122
        %v2167 = vpack.c.b16 %v2125, %v2123
        %v2168 = vpack.c.b16 %v2128, %v2126
        %v2169 = vpack.c.b16 %v2129, %v2127
        %v2170 = vpack.c.b16 %v2132, %v2130
        %v2171 = vpack.c.b16 %v2133, %v2131
        %v2172 = vpack.c.b16 %v2136, %v2134
        %v2173 = vpack.c.b16 %v2137, %v2135
        %v2174 = vpack.c.b16 %v2140, %v2138
        %v2175 = vpack.c.b16 %v2141, %v2139
        %v2176 = vpack.c.b16 %v2144, %v2142
        %v2177 = vpack.c.b16 %v2145, %v2143
        %2210 = vmatprep.subr.bf16.mxu0 %v2161
        %2211 = vmatpush1.bf16.msra.mxu0 %v2160
        %2212 = vmatprep.subr.bf16.mxu0 %v2159
        %2213 = vmatpush1.bf16.msra.mxu0 %v2158
        %2214 = vmatprep.subr.bf16.mxu0 %v2157
        %2215 = vmatpush1.bf16.msra.mxu0 %v2156
        %2216 = vmatprep.subr.bf16.mxu0 %v2155
        %2217 = vmatpush1.bf16.msra.mxu0 %v2154
        %2218 = vmatprep.subr.bf16.mxu0 %v2153
        %2219 = vmatpush1.bf16.msra.mxu0 %v2152
        %2220 = vmatprep.subr.bf16.mxu0 %v2151
        %2221 = vmatpush1.bf16.msra.mxu0 %v2150
        %2222 = vmatprep.subr.bf16.mxu0 %v2149
        %2223 = vmatpush1.bf16.msra.mxu0 %v2148
        %2224 = vmatprep.subr.bf16.mxu0 %v2147
        %2225 = vmatpush1.bf16.msra.mxu0 %v2146
        %2226 = vmatprep.subr.bf16.mxu0 %v2177
        %2227 = vmatpush2.bf16.msra.mxu0 %v2176
        %2228 = vmatprep.subr.bf16.mxu0 %v2175
        %2229 = vmatpush2.bf16.msra.mxu0 %v2174
        %2230 = vmatprep.subr.bf16.mxu0 %v2173
        %2231 = vmatpush2.bf16.msra.mxu0 %v2172
        %2232 = vmatprep.subr.bf16.mxu0 %v2171
        %2233 = vmatpush2.bf16.msra.mxu0 %v2170
        %2234 = vmatprep.subr.bf16.mxu0 %v2169
        %2235 = vmatpush2.bf16.msra.mxu0 %v2168
        %2236 = vmatprep.subr.bf16.mxu0 %v2167
        %2237 = vmatpush2.bf16.msra.mxu0 %v2166
        %2238 = vmatprep.subr.bf16.mxu0 %v2165
        %2239 = vmatpush2.bf16.msra.mxu0 %v2164
        %2240 = vmatprep.subr.bf16.mxu0 %v2163
        %2241 = vmatpush2.bf16.msra.mxu0 %v2162
        %2242 = vmatprep.mubr.bf16.mxu0 %v2004
        %2243 = vmatmul.mubr.bf16.gmra.mxu0 %v2003
        %v2244 = vpop.f32.mrf.mxu0
        %v2245 = vadd.f32 %v2043, %v2244
        %v2246 = vpop.f32.mrf.mxu0
        %v2247 = vadd.f32 %v2047, %v2246
        %v2248 = vpop.f32.mrf.mxu0
        %v2249 = vpop.f32.mrf.mxu0
        %2250 = vdwg.mxu0
        %v2251 = vmax.f32 %v2245, 0.0
        %v2252 = vmax.f32 %v2247, 0.0
        %v2253 = vpack.c.bf16 %v2251, %v2251
        %v2254 = vpack.c.bf16 %v2252, %v2252
        %v2255 = vld [vmem:[#allocation19] sm:$0xff]
        %v2256 = vld [vmem:[#allocation19 + $0x8] sm:$0xff]
        %v2257 = vld [vmem:[#allocation19 + $0x10] sm:$0xff]
        %v2258 = vld [vmem:[#allocation19 + $0x18] sm:$0xff]
        %v2259 = vld [vmem:[#allocation19 + $0x20] sm:$0xff]
        %v2260 = vld [vmem:[#allocation19 + $0x28] sm:$0xff]
        %v2261 = vld [vmem:[#allocation19 + $0x30] sm:$0xff]
        %v2262 = vld [vmem:[#allocation19 + $0x38] sm:$0xff]
        %v2263 = vld [vmem:[#allocation19 + $0x40] sm:$0xff]
        %v2264 = vld [vmem:[#allocation19 + $0x48] sm:$0xff]
        %v2265 = vld [vmem:[#allocation19 + $0x50] sm:$0xff]
        %v2266 = vld [vmem:[#allocation19 + $0x58] sm:$0xff]
        %v2267 = vld [vmem:[#allocation19 + $0x60] sm:$0xff]
        %v2268 = vld [vmem:[#allocation19 + $0x68] sm:$0xff]
        %v2269 = vld [vmem:[#allocation19 + $0x70] sm:$0xff]
        %v2270 = vld [vmem:[#allocation19 + $0x78] sm:$0xff]
        %v2271 = vld [vmem:[#allocation19 + $0x80] sm:$0xff]
        %v2272 = vld [vmem:[#allocation19 + $0x88] sm:$0xff]
        %v2273 = vld [vmem:[#allocation19 + $0x90] sm:$0xff]
        %v2274 = vld [vmem:[#allocation19 + $0x98] sm:$0xff]
        %v2275 = vld [vmem:[#allocation19 + $0xa0] sm:$0xff]
        %v2276 = vld [vmem:[#allocation19 + $0xa8] sm:$0xff]
        %v2277 = vld [vmem:[#allocation19 + $0xb0] sm:$0xff]
        %v2278 = vld [vmem:[#allocation19 + $0xb8] sm:$0xff]
        %v2279 = vld [vmem:[#allocation19 + $0xc0] sm:$0xff]
        %v2280 = vld [vmem:[#allocation19 + $0xc8] sm:$0xff]
        %v2281 = vld [vmem:[#allocation19 + $0xd0] sm:$0xff]
        %v2282 = vld [vmem:[#allocation19 + $0xd8] sm:$0xff]
        %v2283 = vld [vmem:[#allocation19 + $0xe0] sm:$0xff]
        %v2284 = vld [vmem:[#allocation19 + $0xe8] sm:$0xff]
        %v2285 = vld [vmem:[#allocation19 + $0xf0] sm:$0xff]
        %v2286 = vld [vmem:[#allocation19 + $0xf8] sm:$0xff]
        %s2287 = scalar_lea.vmem %s27, 19
        %v2288 = vld [vmem:[%s2287] ss:$8 sm:$0x3]
        %v2290 = vlaneseq
        %v2291 = vshrl.u32 %v2290, 7
        %v2292 = vsub.s32 0, %v2291
        %v2293 = vrot.slane %v2288, %v2292
        %v2294 = vlaneseq
        %v2295 = vshrl.u32 %v2294, 7
        %v2296 = vsub.s32 1, %v2295
        %v2297 = vrot.slane %v2288, %v2296
        %v2332 = vunpack.c.l.b16 %v2255
        %v2333 = vunpack.c.h.b16 %v2255
        %v2334 = vunpack.c.l.b16 %v2256
        %v2335 = vunpack.c.h.b16 %v2256
        %v2336 = vunpack.c.l.b16 %v2257
        %v2337 = vunpack.c.h.b16 %v2257
        %v2338 = vunpack.c.l.b16 %v2258
        %v2339 = vunpack.c.h.b16 %v2258
        %v2340 = vunpack.c.l.b16 %v2259
        %v2341 = vunpack.c.h.b16 %v2259
        %v2342 = vunpack.c.l.b16 %v2260
        %v2343 = vunpack.c.h.b16 %v2260
        %v2344 = vunpack.c.l.b16 %v2261
        %v2345 = vunpack.c.h.b16 %v2261
        %v2346 = vunpack.c.l.b16 %v2262
        %v2347 = vunpack.c.h.b16 %v2262
        %v2348 = vunpack.c.l.b16 %v2263
        %v2349 = vunpack.c.h.b16 %v2263
        %v2350 = vunpack.c.l.b16 %v2264
        %v2351 = vunpack.c.h.b16 %v2264
        %v2352 = vunpack.c.l.b16 %v2265
        %v2353 = vunpack.c.h.b16 %v2265
        %v2354 = vunpack.c.l.b16 %v2266
        %v2355 = vunpack.c.h.b16 %v2266
        %v2356 = vunpack.c.l.b16 %v2267
        %v2357 = vunpack.c.h.b16 %v2267
        %v2358 = vunpack.c.l.b16 %v2268
        %v2359 = vunpack.c.h.b16 %v2268
        %v2360 = vunpack.c.l.b16 %v2269
        %v2361 = vunpack.c.h.b16 %v2269
        %v2362 = vunpack.c.l.b16 %v2270
        %v2363 = vunpack.c.h.b16 %v2270
        %v2364 = vunpack.c.l.b16 %v2271
        %v2365 = vunpack.c.h.b16 %v2271
        %v2366 = vunpack.c.l.b16 %v2272
        %v2367 = vunpack.c.h.b16 %v2272
        %v2368 = vunpack.c.l.b16 %v2273
        %v2369 = vunpack.c.h.b16 %v2273
        %v2370 = vunpack.c.l.b16 %v2274
        %v2371 = vunpack.c.h.b16 %v2274
        %v2372 = vunpack.c.l.b16 %v2275
        %v2373 = vunpack.c.h.b16 %v2275
        %v2374 = vunpack.c.l.b16 %v2276
        %v2375 = vunpack.c.h.b16 %v2276
        %v2376 = vunpack.c.l.b16 %v2277
        %v2377 = vunpack.c.h.b16 %v2277
        %v2378 = vunpack.c.l.b16 %v2278
        %v2379 = vunpack.c.h.b16 %v2278
        %v2380 = vunpack.c.l.b16 %v2279
        %v2381 = vunpack.c.h.b16 %v2279
        %v2382 = vunpack.c.l.b16 %v2280
        %v2383 = vunpack.c.h.b16 %v2280
        %v2384 = vunpack.c.l.b16 %v2281
        %v2385 = vunpack.c.h.b16 %v2281
        %v2386 = vunpack.c.l.b16 %v2282
        %v2387 = vunpack.c.h.b16 %v2282
        %v2388 = vunpack.c.l.b16 %v2283
        %v2389 = vunpack.c.h.b16 %v2283
        %v2390 = vunpack.c.l.b16 %v2284
        %v2391 = vunpack.c.h.b16 %v2284
        %v2392 = vunpack.c.l.b16 %v2285
        %v2393 = vunpack.c.h.b16 %v2285
        %v2394 = vunpack.c.l.b16 %v2286
        %v2395 = vunpack.c.h.b16 %v2286
        %v2396 = vpack.c.b16 %v2334, %v2332
        %v2397 = vpack.c.b16 %v2335, %v2333
        %v2398 = vpack.c.b16 %v2338, %v2336
        %v2399 = vpack.c.b16 %v2339, %v2337
        %v2400 = vpack.c.b16 %v2342, %v2340
        %v2401 = vpack.c.b16 %v2343, %v2341
        %v2402 = vpack.c.b16 %v2346, %v2344
        %v2403 = vpack.c.b16 %v2347, %v2345
        %v2404 = vpack.c.b16 %v2350, %v2348
        %v2405 = vpack.c.b16 %v2351, %v2349
        %v2406 = vpack.c.b16 %v2354, %v2352
        %v2407 = vpack.c.b16 %v2355, %v2353
        %v2408 = vpack.c.b16 %v2358, %v2356
        %v2409 = vpack.c.b16 %v2359, %v2357
        %v2410 = vpack.c.b16 %v2362, %v2360
        %v2411 = vpack.c.b16 %v2363, %v2361
        %v2412 = vpack.c.b16 %v2366, %v2364
        %v2413 = vpack.c.b16 %v2367, %v2365
        %v2414 = vpack.c.b16 %v2370, %v2368
        %v2415 = vpack.c.b16 %v2371, %v2369
        %v2416 = vpack.c.b16 %v2374, %v2372
        %v2417 = vpack.c.b16 %v2375, %v2373
        %v2418 = vpack.c.b16 %v2378, %v2376
        %v2419 = vpack.c.b16 %v2379, %v2377
        %v2420 = vpack.c.b16 %v2382, %v2380
        %v2421 = vpack.c.b16 %v2383, %v2381
        %v2422 = vpack.c.b16 %v2386, %v2384
        %v2423 = vpack.c.b16 %v2387, %v2385
        %v2424 = vpack.c.b16 %v2390, %v2388
        %v2425 = vpack.c.b16 %v2391, %v2389
        %v2426 = vpack.c.b16 %v2394, %v2392
        %v2427 = vpack.c.b16 %v2395, %v2393
        %2460 = vmatprep.subr.bf16.mxu0 %v2411
        %2461 = vmatpush1.bf16.msra.mxu0 %v2410
        %2462 = vmatprep.subr.bf16.mxu0 %v2409
        %2463 = vmatpush1.bf16.msra.mxu0 %v2408
        %2464 = vmatprep.subr.bf16.mxu0 %v2407
        %2465 = vmatpush1.bf16.msra.mxu0 %v2406
        %2466 = vmatprep.subr.bf16.mxu0 %v2405
        %2467 = vmatpush1.bf16.msra.mxu0 %v2404
        %2468 = vmatprep.subr.bf16.mxu0 %v2403
        %2469 = vmatpush1.bf16.msra.mxu0 %v2402
        %2470 = vmatprep.subr.bf16.mxu0 %v2401
        %2471 = vmatpush1.bf16.msra.mxu0 %v2400
        %2472 = vmatprep.subr.bf16.mxu0 %v2399
        %2473 = vmatpush1.bf16.msra.mxu0 %v2398
        %2474 = vmatprep.subr.bf16.mxu0 %v2397
        %2475 = vmatpush1.bf16.msra.mxu0 %v2396
        %2476 = vmatprep.subr.bf16.mxu0 %v2427
        %2477 = vmatpush2.bf16.msra.mxu0 %v2426
        %2478 = vmatprep.subr.bf16.mxu0 %v2425
        %2479 = vmatpush2.bf16.msra.mxu0 %v2424
        %2480 = vmatprep.subr.bf16.mxu0 %v2423
        %2481 = vmatpush2.bf16.msra.mxu0 %v2422
        %2482 = vmatprep.subr.bf16.mxu0 %v2421
        %2483 = vmatpush2.bf16.msra.mxu0 %v2420
        %2484 = vmatprep.subr.bf16.mxu0 %v2419
        %2485 = vmatpush2.bf16.msra.mxu0 %v2418
        %2486 = vmatprep.subr.bf16.mxu0 %v2417
        %2487 = vmatpush2.bf16.msra.mxu0 %v2416
        %2488 = vmatprep.subr.bf16.mxu0 %v2415
        %2489 = vmatpush2.bf16.msra.mxu0 %v2414
        %2490 = vmatprep.subr.bf16.mxu0 %v2413
        %2491 = vmatpush2.bf16.msra.mxu0 %v2412
        %2492 = vmatprep.mubr.bf16.mxu0 %v2254
        %2493 = vmatmul.mubr.bf16.gmra.mxu0 %v2253
        %v2494 = vpop.f32.mrf.mxu0
        %v2495 = vadd.f32 %v2293, %v2494
        %v2496 = vpop.f32.mrf.mxu0
        %v2497 = vadd.f32 %v2297, %v2496
        %v2498 = vpop.f32.mrf.mxu0
        %v2499 = vpop.f32.mrf.mxu0
        %2500 = vdwg.mxu0
        %v2501 = vunpack.c.l.bf16 %v2003
        %v2502 = vunpack.c.l.bf16 %v2004
        %v2503 = vadd.f32 %v2495, %v2501
        %v2504 = vadd.f32 %v2497, %v2502
        %v2505 = vmax.f32 %v2503, 0.0
        %v2506 = vmax.f32 %v2504, 0.0
        %v2507 = vpack.c.bf16 %v2505, %v2505
        %v2508 = vpack.c.bf16 %v2506, %v2506
        %v2509 = vld [vmem:[#allocation20] sm:$0xf]
        %v2510 = vld [vmem:[#allocation20 + $0x4] sm:$0xf]
        %v2511 = vld [vmem:[#allocation20 + $0x8] sm:$0xf]
        %v2512 = vld [vmem:[#allocation20 + $0xc] sm:$0xf]
        %v2513 = vld [vmem:[#allocation20 + $0x10] sm:$0xf]
        %v2514 = vld [vmem:[#allocation20 + $0x14] sm:$0xf]
        %v2515 = vld [vmem:[#allocation20 + $0x18] sm:$0xf]
        %v2516 = vld [vmem:[#allocation20 + $0x1c] sm:$0xf]
        %v2517 = vld [vmem:[#allocation20 + $0x20] sm:$0xf]
        %v2518 = vld [vmem:[#allocation20 + $0x24] sm:$0xf]
        %v2519 = vld [vmem:[#allocation20 + $0x28] sm:$0xf]
        %v2520 = vld [vmem:[#allocation20 + $0x2c] sm:$0xf]
        %v2521 = vld [vmem:[#allocation20 + $0x30] sm:$0xf]
        %v2522 = vld [vmem:[#allocation20 + $0x34] sm:$0xf]
        %v2523 = vld [vmem:[#allocation20 + $0x38] sm:$0xf]
        %v2524 = vld [vmem:[#allocation20 + $0x3c] sm:$0xf]
        %v2525 = vld [vmem:[#allocation20 + $0x40] sm:$0xf]
        %v2526 = vld [vmem:[#allocation20 + $0x44] sm:$0xf]
        %v2527 = vld [vmem:[#allocation20 + $0x48] sm:$0xf]
        %v2528 = vld [vmem:[#allocation20 + $0x4c] sm:$0xf]
        %v2529 = vld [vmem:[#allocation20 + $0x50] sm:$0xf]
        %v2530 = vld [vmem:[#allocation20 + $0x54] sm:$0xf]
        %v2531 = vld [vmem:[#allocation20 + $0x58] sm:$0xf]
        %v2532 = vld [vmem:[#allocation20 + $0x5c] sm:$0xf]
        %v2533 = vld [vmem:[#allocation20 + $0x60] sm:$0xf]
        %v2534 = vld [vmem:[#allocation20 + $0x64] sm:$0xf]
        %v2535 = vld [vmem:[#allocation20 + $0x68] sm:$0xf]
        %v2536 = vld [vmem:[#allocation20 + $0x6c] sm:$0xf]
        %v2537 = vld [vmem:[#allocation20 + $0x70] sm:$0xf]
        %v2538 = vld [vmem:[#allocation20 + $0x74] sm:$0xf]
        %v2539 = vld [vmem:[#allocation20 + $0x78] sm:$0xf]
        %v2540 = vld [vmem:[#allocation20 + $0x7c] sm:$0xf]
        %v2541 = vld [vmem:[%s27 + $0x14] ss:$0 sm:$0xff]
        %v2574 = vunpack.c.l.b16 %v2509
        %v2575 = vunpack.c.l.b16 %v2510
        %v2576 = vunpack.c.l.b16 %v2511
        %v2577 = vunpack.c.l.b16 %v2512
        %v2578 = vunpack.c.l.b16 %v2513
        %v2579 = vunpack.c.l.b16 %v2514
        %v2580 = vunpack.c.l.b16 %v2515
        %v2581 = vunpack.c.l.b16 %v2516
        %v2582 = vunpack.c.l.b16 %v2517
        %v2583 = vunpack.c.l.b16 %v2518
        %v2584 = vunpack.c.l.b16 %v2519
        %v2585 = vunpack.c.l.b16 %v2520
        %v2586 = vunpack.c.l.b16 %v2521
        %v2587 = vunpack.c.l.b16 %v2522
        %v2588 = vunpack.c.l.b16 %v2523
        %v2589 = vunpack.c.l.b16 %v2524
        %v2590 = vunpack.c.l.b16 %v2525
        %v2591 = vunpack.c.l.b16 %v2526
        %v2592 = vunpack.c.l.b16 %v2527
        %v2593 = vunpack.c.l.b16 %v2528
        %v2594 = vunpack.c.l.b16 %v2529
        %v2595 = vunpack.c.l.b16 %v2530
        %v2596 = vunpack.c.l.b16 %v2531
        %v2597 = vunpack.c.l.b16 %v2532
        %v2598 = vunpack.c.l.b16 %v2533
        %v2599 = vunpack.c.l.b16 %v2534
        %v2600 = vunpack.c.l.b16 %v2535
        %v2601 = vunpack.c.l.b16 %v2536
        %v2602 = vunpack.c.l.b16 %v2537
        %v2603 = vunpack.c.l.b16 %v2538
        %v2604 = vunpack.c.l.b16 %v2539
        %v2605 = vunpack.c.l.b16 %v2540
        %v2606 = vpack.c.b16 %v2575, %v2574
        %v2607 = vpack.c.b16 %v2577, %v2576
        %v2608 = vpack.c.b16 %v2579, %v2578
        %v2609 = vpack.c.b16 %v2581, %v2580
        %v2610 = vpack.c.b16 %v2583, %v2582
        %v2611 = vpack.c.b16 %v2585, %v2584
        %v2612 = vpack.c.b16 %v2587, %v2586
        %v2613 = vpack.c.b16 %v2589, %v2588
        %v2614 = vpack.c.b16 %v2591, %v2590
        %v2615 = vpack.c.b16 %v2593, %v2592
        %v2616 = vpack.c.b16 %v2595, %v2594
        %v2617 = vpack.c.b16 %v2597, %v2596
        %v2618 = vpack.c.b16 %v2599, %v2598
        %v2619 = vpack.c.b16 %v2601, %v2600
        %v2620 = vpack.c.b16 %v2603, %v2602
        %v2621 = vpack.c.b16 %v2605, %v2604
        %2638 = vmatprep.subr.bf16.mxu0 0
        %2639 = vmatpush1.bf16.msra.mxu0 %v2613
        %2640 = vmatprep.subr.bf16.mxu0 0
        %2641 = vmatpush1.bf16.msra.mxu0 %v2612
        %2642 = vmatprep.subr.bf16.mxu0 0
        %2643 = vmatpush1.bf16.msra.mxu0 %v2611
        %2644 = vmatprep.subr.bf16.mxu0 0
        %2645 = vmatpush1.bf16.msra.mxu0 %v2610
        %2646 = vmatprep.subr.bf16.mxu0 0
        %2647 = vmatpush1.bf16.msra.mxu0 %v2609
        %2648 = vmatprep.subr.bf16.mxu0 0
        %2649 = vmatpush1.bf16.msra.mxu0 %v2608
        %2650 = vmatprep.subr.bf16.mxu0 0
        %2651 = vmatpush1.bf16.msra.mxu0 %v2607
        %2652 = vmatprep.subr.bf16.mxu0 0
        %2653 = vmatpush1.bf16.msra.mxu0 %v2606
        %2654 = vmatprep.subr.bf16.mxu0 0
        %2655 = vmatpush2.bf16.msra.mxu0 %v2621
        %2656 = vmatprep.subr.bf16.mxu0 0
        %2657 = vmatpush2.bf16.msra.mxu0 %v2620
        %2658 = vmatprep.subr.bf16.mxu0 0
        %2659 = vmatpush2.bf16.msra.mxu0 %v2619
        %2660 = vmatprep.subr.bf16.mxu0 0
        %2661 = vmatpush2.bf16.msra.mxu0 %v2618
        %2662 = vmatprep.subr.bf16.mxu0 0
        %2663 = vmatpush2.bf16.msra.mxu0 %v2617
        %2664 = vmatprep.subr.bf16.mxu0 0
        %2665 = vmatpush2.bf16.msra.mxu0 %v2616
        %2666 = vmatprep.subr.bf16.mxu0 0
        %2667 = vmatpush2.bf16.msra.mxu0 %v2615
        %2668 = vmatprep.subr.bf16.mxu0 0
        %2669 = vmatpush2.bf16.msra.mxu0 %v2614
        %2670 = vmatprep.mubr.bf16.mxu0 %v2508
        %2671 = vmatmul.mubr.bf16.gmra.mxu0 %v2507
        %v2672 = vpop.f32.mrf.mxu0
        %v2673 = vadd.f32 %v2541, %v2672
        %v2674 = vpop.f32.mrf.mxu0
        %v2675 = vpop.f32.mrf.mxu0
        %v2676 = vpop.f32.mrf.mxu0
        %2677 = vdwg.mxu0
        %v2678 = vpack.c.bf16 %v2673, %v2673
        %v2679 = vld [vmem:[#allocation22] sm:$0xf]
        %v2680 = vld [vmem:[#allocation22 + $0x4] sm:$0xf]
        %v2681 = vld [vmem:[#allocation22 + $0x8] sm:$0xf]
        %v2682 = vld [vmem:[#allocation22 + $0xc] sm:$0xf]
        %v2683 = vld [vmem:[#allocation22 + $0x10] sm:$0xf]
        %v2684 = vld [vmem:[#allocation22 + $0x14] sm:$0xf]
        %v2685 = vld [vmem:[#allocation22 + $0x18] sm:$0xf]
        %v2686 = vld [vmem:[#allocation22 + $0x1c] sm:$0xf]
        %v2687 = vld [vmem:[#allocation22 + $0x20] sm:$0xf]
        %v2688 = vld [vmem:[#allocation22 + $0x24] sm:$0xf]
        %v2689 = vld [vmem:[#allocation22 + $0x28] sm:$0xf]
        %v2690 = vld [vmem:[#allocation22 + $0x2c] sm:$0xf]
        %v2691 = vld [vmem:[#allocation22 + $0x30] sm:$0xf]
        %v2692 = vld [vmem:[#allocation22 + $0x34] sm:$0xf]
        %v2693 = vld [vmem:[#allocation22 + $0x38] sm:$0xf]
        %v2694 = vld [vmem:[#allocation22 + $0x3c] sm:$0xf]
        %v2695 = vld [vmem:[%s27 + $0x15] ss:$0 sm:$0xff]
        %v2712 = vunpack.c.l.b16 %v2679
        %v2713 = vunpack.c.l.b16 %v2680
        %v2714 = vunpack.c.l.b16 %v2681
        %v2715 = vunpack.c.l.b16 %v2682
        %v2716 = vunpack.c.l.b16 %v2683
        %v2717 = vunpack.c.l.b16 %v2684
        %v2718 = vunpack.c.l.b16 %v2685
        %v2719 = vunpack.c.l.b16 %v2686
        %v2720 = vunpack.c.l.b16 %v2687
        %v2721 = vunpack.c.l.b16 %v2688
        %v2722 = vunpack.c.l.b16 %v2689
        %v2723 = vunpack.c.l.b16 %v2690
        %v2724 = vunpack.c.l.b16 %v2691
        %v2725 = vunpack.c.l.b16 %v2692
        %v2726 = vunpack.c.l.b16 %v2693
        %v2727 = vunpack.c.l.b16 %v2694
        %v2728 = vpack.c.b16 %v2713, %v2712
        %v2729 = vpack.c.b16 %v2715, %v2714
        %v2730 = vpack.c.b16 %v2717, %v2716
        %v2731 = vpack.c.b16 %v2719, %v2718
        %v2732 = vpack.c.b16 %v2721, %v2720
        %v2733 = vpack.c.b16 %v2723, %v2722
        %v2734 = vpack.c.b16 %v2725, %v2724
        %v2735 = vpack.c.b16 %v2727, %v2726
        %2744 = vmatprep.subr.bf16.mxu0 0
        %2745 = vmatpush1.bf16.msra.mxu0 %v2735
        %2746 = vmatprep.subr.bf16.mxu0 0
        %2747 = vmatpush1.bf16.msra.mxu0 %v2734
        %2748 = vmatprep.subr.bf16.mxu0 0
        %2749 = vmatpush1.bf16.msra.mxu0 %v2733
        %2750 = vmatprep.subr.bf16.mxu0 0
        %2751 = vmatpush1.bf16.msra.mxu0 %v2732
        %2752 = vmatprep.subr.bf16.mxu0 0
        %2753 = vmatpush1.bf16.msra.mxu0 %v2731
        %2754 = vmatprep.subr.bf16.mxu0 0
        %2755 = vmatpush1.bf16.msra.mxu0 %v2730
        %2756 = vmatprep.subr.bf16.mxu0 0
        %2757 = vmatpush1.bf16.msra.mxu0 %v2729
        %2758 = vmatprep.subr.bf16.mxu0 0
        %2759 = vmatpush1.bf16.msra.mxu0 %v2728
        %2760 = vmatprep.subr.bf16.mxu0 0
        %2761 = vmatpush2.bf16.msra.mxu0 0
        %2762 = vmatprep.subr.bf16.mxu0 0
        %2763 = vmatpush2.bf16.msra.mxu0 0
        %2764 = vmatprep.subr.bf16.mxu0 0
        %2765 = vmatpush2.bf16.msra.mxu0 0
        %2766 = vmatprep.subr.bf16.mxu0 0
        %2767 = vmatpush2.bf16.msra.mxu0 0
        %2768 = vmatprep.subr.bf16.mxu0 0
        %2769 = vmatpush2.bf16.msra.mxu0 0
        %2770 = vmatprep.subr.bf16.mxu0 0
        %2771 = vmatpush2.bf16.msra.mxu0 0
        %2772 = vmatprep.subr.bf16.mxu0 0
        %2773 = vmatpush2.bf16.msra.mxu0 0
        %2774 = vmatprep.subr.bf16.mxu0 0
        %2775 = vmatpush2.bf16.msra.mxu0 0
        %2776 = vmatprep.mubr.bf16.mxu0 0
        %2777 = vmatmul.mubr.bf16.gmra.mxu0 %v2678
        %v2778 = vpop.f32.mrf.mxu0
        %v2779 = vadd.f32 %v2695, %v2778
        %v2780 = vpop.f32.mrf.mxu0
        %v2781 = vpop.f32.mrf.mxu0
        %v2782 = vpop.f32.mrf.mxu0
        %2783 = vdwg.mxu0
        %v2784 = vmax.f32 %v2779, 0.0
        %v2785 = vpack.c.bf16 %v2784, %v2784
        %v2786 = vld [vmem:[#allocation23] sm:$0xf]
        %v2787 = vld [vmem:[#allocation23 + $0x4] sm:$0xf]
        %v2788 = vld [vmem:[#allocation23 + $0x8] sm:$0xf]
        %v2789 = vld [vmem:[#allocation23 + $0xc] sm:$0xf]
        %v2790 = vld [vmem:[#allocation23 + $0x10] sm:$0xf]
        %v2791 = vld [vmem:[#allocation23 + $0x14] sm:$0xf]
        %v2792 = vld [vmem:[#allocation23 + $0x18] sm:$0xf]
        %v2793 = vld [vmem:[#allocation23 + $0x1c] sm:$0xf]
        %v2794 = vld [vmem:[#allocation23 + $0x20] sm:$0xf]
        %v2795 = vld [vmem:[#allocation23 + $0x24] sm:$0xf]
        %v2796 = vld [vmem:[#allocation23 + $0x28] sm:$0xf]
        %v2797 = vld [vmem:[#allocation23 + $0x2c] sm:$0xf]
        %v2798 = vld [vmem:[#allocation23 + $0x30] sm:$0xf]
        %v2799 = vld [vmem:[#allocation23 + $0x34] sm:$0xf]
        %v2800 = vld [vmem:[#allocation23 + $0x38] sm:$0xf]
        %v2801 = vld [vmem:[#allocation23 + $0x3c] sm:$0xf]
        %v2802 = vld [vmem:[%s27 + $0x16] ss:$0 sm:$0xff]
        %v2819 = vunpack.c.l.b16 %v2786
        %v2820 = vunpack.c.l.b16 %v2787
        %v2821 = vunpack.c.l.b16 %v2788
        %v2822 = vunpack.c.l.b16 %v2789
        %v2823 = vunpack.c.l.b16 %v2790
        %v2824 = vunpack.c.l.b16 %v2791
        %v2825 = vunpack.c.l.b16 %v2792
        %v2826 = vunpack.c.l.b16 %v2793
        %v2827 = vunpack.c.l.b16 %v2794
        %v2828 = vunpack.c.l.b16 %v2795
        %v2829 = vunpack.c.l.b16 %v2796
        %v2830 = vunpack.c.l.b16 %v2797
        %v2831 = vunpack.c.l.b16 %v2798
        %v2832 = vunpack.c.l.b16 %v2799
        %v2833 = vunpack.c.l.b16 %v2800
        %v2834 = vunpack.c.l.b16 %v2801
        %v2835 = vpack.c.b16 %v2820, %v2819
        %v2836 = vpack.c.b16 %v2822, %v2821
        %v2837 = vpack.c.b16 %v2824, %v2823
        %v2838 = vpack.c.b16 %v2826, %v2825
        %v2839 = vpack.c.b16 %v2828, %v2827
        %v2840 = vpack.c.b16 %v2830, %v2829
        %v2841 = vpack.c.b16 %v2832, %v2831
        %v2842 = vpack.c.b16 %v2834, %v2833
        %2851 = vmatprep.subr.bf16.mxu0 0
        %2852 = vmatpush1.bf16.msra.mxu0 %v2842
        %2853 = vmatprep.subr.bf16.mxu0 0
        %2854 = vmatpush1.bf16.msra.mxu0 %v2841
        %2855 = vmatprep.subr.bf16.mxu0 0
        %2856 = vmatpush1.bf16.msra.mxu0 %v2840
        %2857 = vmatprep.subr.bf16.mxu0 0
        %2858 = vmatpush1.bf16.msra.mxu0 %v2839
        %2859 = vmatprep.subr.bf16.mxu0 0
        %2860 = vmatpush1.bf16.msra.mxu0 %v2838
        %2861 = vmatprep.subr.bf16.mxu0 0
        %2862 = vmatpush1.bf16.msra.mxu0 %v2837
        %2863 = vmatprep.subr.bf16.mxu0 0
        %2864 = vmatpush1.bf16.msra.mxu0 %v2836
        %2865 = vmatprep.subr.bf16.mxu0 0
        %2866 = vmatpush1.bf16.msra.mxu0 %v2835
        %2867 = vmatprep.subr.bf16.mxu0 0
        %2868 = vmatpush2.bf16.msra.mxu0 0
        %2869 = vmatprep.subr.bf16.mxu0 0
        %2870 = vmatpush2.bf16.msra.mxu0 0
        %2871 = vmatprep.subr.bf16.mxu0 0
        %2872 = vmatpush2.bf16.msra.mxu0 0
        %2873 = vmatprep.subr.bf16.mxu0 0
        %2874 = vmatpush2.bf16.msra.mxu0 0
        %2875 = vmatprep.subr.bf16.mxu0 0
        %2876 = vmatpush2.bf16.msra.mxu0 0
        %2877 = vmatprep.subr.bf16.mxu0 0
        %2878 = vmatpush2.bf16.msra.mxu0 0
        %2879 = vmatprep.subr.bf16.mxu0 0
        %2880 = vmatpush2.bf16.msra.mxu0 0
        %2881 = vmatprep.subr.bf16.mxu0 0
        %2882 = vmatpush2.bf16.msra.mxu0 0
        %2883 = vmatprep.mubr.bf16.mxu0 0
        %2884 = vmatmul.mubr.bf16.gmra.mxu0 %v2785
        %v2885 = vpop.f32.mrf.mxu0
        %v2886 = vadd.f32 %v2802, %v2885
        %v2887 = vpop.f32.mrf.mxu0
        %v2888 = vpop.f32.mrf.mxu0
        %v2889 = vpop.f32.mrf.mxu0
        %2890 = vdwg.mxu0
        %v2891 = vunpack.c.l.bf16 %v2678
        %v2892 = vadd.f32 %v2886, %v2891
        %v2893 = vmax.f32 %v2892, 0.0
        %v2894 = vpack.c.bf16 %v2893, %v2893
        %v2895 = vld [vmem:[%s16] sm:$0xf]
        %v2896 = vld [vmem:[%s16 + $0x4] sm:$0xf]
        %v2897 = vld [vmem:[%s16 + $0x8] sm:$0xf]
        %v2898 = vld [vmem:[%s16 + $0xc] sm:$0xf]
        %v2899 = vld [vmem:[%s16 + $0x10] sm:$0xf]
        %v2900 = vld [vmem:[%s16 + $0x14] sm:$0xf]
        %v2901 = vld [vmem:[%s16 + $0x18] sm:$0xf]
        %v2902 = vld [vmem:[%s16 + $0x1c] sm:$0xf]
        %v2903 = vld [vmem:[%s16 + $0x20] sm:$0xf]
        %v2904 = vld [vmem:[%s16 + $0x24] sm:$0xf]
        %v2905 = vld [vmem:[%s16 + $0x28] sm:$0xf]
        %v2906 = vld [vmem:[%s16 + $0x2c] sm:$0xf]
        %v2907 = vld [vmem:[%s16 + $0x30] sm:$0xf]
        %v2908 = vld [vmem:[%s16 + $0x34] sm:$0xf]
        %v2909 = vld [vmem:[%s16 + $0x38] sm:$0xf]
        %v2910 = vld [vmem:[%s16 + $0x3c] sm:$0xf]
        %v2911 = vld [vmem:[%s17] sm:$0xf]
        %v2912 = vld [vmem:[%s17 + $0x4] sm:$0xf]
        %v2913 = vld [vmem:[%s17 + $0x8] sm:$0xf]
        %v2914 = vld [vmem:[%s17 + $0xc] sm:$0xf]
        %v2915 = vld [vmem:[%s17 + $0x10] sm:$0xf]
        %v2916 = vld [vmem:[%s17 + $0x14] sm:$0xf]
        %v2917 = vld [vmem:[%s17 + $0x18] sm:$0xf]
        %v2918 = vld [vmem:[%s17 + $0x1c] sm:$0xf]
        %v2919 = vld [vmem:[%s17 + $0x20] sm:$0xf]
        %v2920 = vld [vmem:[%s17 + $0x24] sm:$0xf]
        %v2921 = vld [vmem:[%s17 + $0x28] sm:$0xf]
        %v2922 = vld [vmem:[%s17 + $0x2c] sm:$0xf]
        %v2923 = vld [vmem:[%s17 + $0x30] sm:$0xf]
        %v2924 = vld [vmem:[%s17 + $0x34] sm:$0xf]
        %v2925 = vld [vmem:[%s17 + $0x38] sm:$0xf]
        %v2926 = vld [vmem:[%s17 + $0x3c] sm:$0xf]
        %v2943 = vunpack.c.l.b16 %v2911
        %v2944 = vunpack.c.l.b16 %v2912
        %v2945 = vunpack.c.l.b16 %v2913
        %v2946 = vunpack.c.l.b16 %v2914
        %v2947 = vunpack.c.l.b16 %v2915
        %v2948 = vunpack.c.l.b16 %v2916
        %v2949 = vunpack.c.l.b16 %v2917
        %v2950 = vunpack.c.l.b16 %v2918
        %v2951 = vunpack.c.l.b16 %v2919
        %v2952 = vunpack.c.l.b16 %v2920
        %v2953 = vunpack.c.l.b16 %v2921
        %v2954 = vunpack.c.l.b16 %v2922
        %v2955 = vunpack.c.l.b16 %v2923
        %v2956 = vunpack.c.l.b16 %v2924
        %v2957 = vunpack.c.l.b16 %v2925
        %v2958 = vunpack.c.l.b16 %v2926
        %v2959 = vpack.c.b16 %v2944, %v2943
        %v2960 = vpack.c.b16 %v2946, %v2945
        %v2961 = vpack.c.b16 %v2948, %v2947
        %v2962 = vpack.c.b16 %v2950, %v2949
        %v2963 = vpack.c.b16 %v2952, %v2951
        %v2964 = vpack.c.b16 %v2954, %v2953
        %v2965 = vpack.c.b16 %v2956, %v2955
        %v2966 = vpack.c.b16 %v2958, %v2957
        %2975 = vmatprep.subr.bf16.mxu0 0
        %2976 = vmatpush1.bf16.msra.mxu0 %v2966
        %2977 = vmatprep.subr.bf16.mxu0 0
        %2978 = vmatpush1.bf16.msra.mxu0 %v2965
        %2979 = vmatprep.subr.bf16.mxu0 0
        %2980 = vmatpush1.bf16.msra.mxu0 %v2964
        %2981 = vmatprep.subr.bf16.mxu0 0
        %2982 = vmatpush1.bf16.msra.mxu0 %v2963
        %2983 = vmatprep.subr.bf16.mxu0 0
        %2984 = vmatpush1.bf16.msra.mxu0 %v2962
        %2985 = vmatprep.subr.bf16.mxu0 0
        %2986 = vmatpush1.bf16.msra.mxu0 %v2961
        %2987 = vmatprep.subr.bf16.mxu0 0
        %2988 = vmatpush1.bf16.msra.mxu0 %v2960
        %2989 = vmatprep.subr.bf16.mxu0 0
        %2990 = vmatpush1.bf16.msra.mxu0 %v2959
        %2991 = vmatprep.subr.bf16.mxu0 0
        %2992 = vmatpush2.bf16.msra.mxu0 0
        %2993 = vmatprep.subr.bf16.mxu0 0
        %2994 = vmatpush2.bf16.msra.mxu0 0
        %2995 = vmatprep.subr.bf16.mxu0 0
        %2996 = vmatpush2.bf16.msra.mxu0 0
        %2997 = vmatprep.subr.bf16.mxu0 0
        %2998 = vmatpush2.bf16.msra.mxu0 0
        %2999 = vmatprep.subr.bf16.mxu0 0
        %3000 = vmatpush2.bf16.msra.mxu0 0
        %3001 = vmatprep.subr.bf16.mxu0 0
        %3002 = vmatpush2.bf16.msra.mxu0 0
        %3003 = vmatprep.subr.bf16.mxu0 0
        %3004 = vmatpush2.bf16.msra.mxu0 0
        %3005 = vmatprep.subr.bf16.mxu0 0
        %3006 = vmatpush2.bf16.msra.mxu0 0
        %3007 = vmatprep.mubr.bf16.mxu0 0
        %3008 = vmatmul.mubr.bf16.gmra.mxu0 %v1852
        %v3009 = vpop.f32.mrf.mxu0
        %v3010 = vadd.f32 0.0, %v3009
        %v3011 = vpop.f32.mrf.mxu0
        %v3012 = vpop.f32.mrf.mxu0
        %v3013 = vpop.f32.mrf.mxu0
        %3014 = vdwg.mxu0
        %v3031 = vunpack.c.l.b16 %v2895
        %v3032 = vunpack.c.l.b16 %v2896
        %v3033 = vunpack.c.l.b16 %v2897
        %v3034 = vunpack.c.l.b16 %v2898
        %v3035 = vunpack.c.l.b16 %v2899
        %v3036 = vunpack.c.l.b16 %v2900
        %v3037 = vunpack.c.l.b16 %v2901
        %v3038 = vunpack.c.l.b16 %v2902
        %v3039 = vunpack.c.l.b16 %v2903
        %v3040 = vunpack.c.l.b16 %v2904
        %v3041 = vunpack.c.l.b16 %v2905
        %v3042 = vunpack.c.l.b16 %v2906
        %v3043 = vunpack.c.l.b16 %v2907
        %v3044 = vunpack.c.l.b16 %v2908
        %v3045 = vunpack.c.l.b16 %v2909
        %v3046 = vunpack.c.l.b16 %v2910
        %v3047 = vpack.c.b16 %v3032, %v3031
        %v3048 = vpack.c.b16 %v3034, %v3033
        %v3049 = vpack.c.b16 %v3036, %v3035
        %v3050 = vpack.c.b16 %v3038, %v3037
        %v3051 = vpack.c.b16 %v3040, %v3039
        %v3052 = vpack.c.b16 %v3042, %v3041
        %v3053 = vpack.c.b16 %v3044, %v3043
        %v3054 = vpack.c.b16 %v3046, %v3045
        %3063 = vmatprep.subr.bf16.mxu0 0
        %3064 = vmatpush1.bf16.msra.mxu0 %v3054
        %3065 = vmatprep.subr.bf16.mxu0 0
        %3066 = vmatpush1.bf16.msra.mxu0 %v3053
        %3067 = vmatprep.subr.bf16.mxu0 0
        %3068 = vmatpush1.bf16.msra.mxu0 %v3052
        %3069 = vmatprep.subr.bf16.mxu0 0
        %3070 = vmatpush1.bf16.msra.mxu0 %v3051
        %3071 = vmatprep.subr.bf16.mxu0 0
        %3072 = vmatpush1.bf16.msra.mxu0 %v3050
        %3073 = vmatprep.subr.bf16.mxu0 0
        %3074 = vmatpush1.bf16.msra.mxu0 %v3049
        %3075 = vmatprep.subr.bf16.mxu0 0
        %3076 = vmatpush1.bf16.msra.mxu0 %v3048
        %3077 = vmatprep.subr.bf16.mxu0 0
        %3078 = vmatpush1.bf16.msra.mxu0 %v3047
        %3079 = vmatprep.subr.bf16.mxu0 0
        %3080 = vmatpush2.bf16.msra.mxu0 0
        %3081 = vmatprep.subr.bf16.mxu0 0
        %3082 = vmatpush2.bf16.msra.mxu0 0
        %3083 = vmatprep.subr.bf16.mxu0 0
        %3084 = vmatpush2.bf16.msra.mxu0 0
        %3085 = vmatprep.subr.bf16.mxu0 0
        %3086 = vmatpush2.bf16.msra.mxu0 0
        %3087 = vmatprep.subr.bf16.mxu0 0
        %3088 = vmatpush2.bf16.msra.mxu0 0
        %3089 = vmatprep.subr.bf16.mxu0 0
        %3090 = vmatpush2.bf16.msra.mxu0 0
        %3091 = vmatprep.subr.bf16.mxu0 0
        %3092 = vmatpush2.bf16.msra.mxu0 0
        %3093 = vmatprep.subr.bf16.mxu0 0
        %3094 = vmatpush2.bf16.msra.mxu0 0
        %3095 = vmatprep.mubr.bf16.mxu0 0
        %3096 = vmatmul.mubr.bf16.gmra.mxu0 %v2894
        %v3097 = vpop.f32.mrf.mxu0
        %v3098 = vadd.f32 %v3010, %v3097
        %v3099 = vpop.f32.mrf.mxu0
        %v3100 = vpop.f32.mrf.mxu0
        %v3101 = vpop.f32.mrf.mxu0
        %3102 = vdwg.mxu0
        %v3103 = vld [vmem:[%s27 + $0x17] ss:$0 sm:$0xff]
        %v3104 = vadd.f32 %v3098, %v3103
        %v3105 = vpack.c.bf16 %v3104, %v3104
        %v3106 = vld [vmem:[#allocation25] sm:$0xf]
        %v3107 = vld [vmem:[#allocation25 + $0x4] sm:$0xf]
        %v3108 = vld [vmem:[#allocation25 + $0x8] sm:$0xf]
        %v3109 = vld [vmem:[#allocation25 + $0xc] sm:$0xf]
        %v3110 = vld [vmem:[#allocation25 + $0x10] sm:$0xf]
        %v3111 = vld [vmem:[#allocation25 + $0x14] sm:$0xf]
        %v3112 = vld [vmem:[#allocation25 + $0x18] sm:$0xf]
        %v3113 = vld [vmem:[#allocation25 + $0x1c] sm:$0xf]
        %v3114 = vld [vmem:[%s27 + $0x20] ss:$0 sm:$0xff]
        %v3123 = vunpack.c.l.b16 %v3106
        %v3124 = vunpack.c.l.b16 %v3107
        %v3125 = vunpack.c.l.b16 %v3108
        %v3126 = vunpack.c.l.b16 %v3109
        %v3127 = vunpack.c.l.b16 %v3110
        %v3128 = vunpack.c.l.b16 %v3111
        %v3129 = vunpack.c.l.b16 %v3112
        %v3130 = vunpack.c.l.b16 %v3113
        %v3131 = vpack.c.b16 %v3124, %v3123
        %v3132 = vpack.c.b16 %v3126, %v3125
        %v3133 = vpack.c.b16 %v3128, %v3127
        %v3134 = vpack.c.b16 %v3130, %v3129
        %v3140 = vsel %vm1434, %v3105, 0
        %3142 = vmatprep.subr.bf16.mxu0 0
        %3143 = vmatpush1.bf16.msra.mxu0 0
        %3144 = vmatprep.subr.bf16.mxu0 0
        %3145 = vmatpush1.bf16.msra.mxu0 0
        %3146 = vmatprep.subr.bf16.mxu0 0
        %3147 = vmatpush1.bf16.msra.mxu0 0
        %3148 = vmatprep.subr.bf16.mxu0 0
        %3149 = vmatpush1.bf16.msra.mxu0 0
        %3150 = vmatprep.subr.bf16.mxu0 0
        %3151 = vmatpush1.bf16.msra.mxu0 %v3134
        %3152 = vmatprep.subr.bf16.mxu0 0
        %3153 = vmatpush1.bf16.msra.mxu0 %v3133
        %3154 = vmatprep.subr.bf16.mxu0 0
        %3155 = vmatpush1.bf16.msra.mxu0 %v3132
        %3156 = vmatprep.subr.bf16.mxu0 0
        %3157 = vmatpush1.bf16.msra.mxu0 %v3131
        %3158 = vmatprep.subr.bf16.mxu0 0
        %3159 = vmatpush2.bf16.msra.mxu0 0
        %3160 = vmatprep.subr.bf16.mxu0 0
        %3161 = vmatpush2.bf16.msra.mxu0 0
        %3162 = vmatprep.subr.bf16.mxu0 0
        %3163 = vmatpush2.bf16.msra.mxu0 0
        %3164 = vmatprep.subr.bf16.mxu0 0
        %3165 = vmatpush2.bf16.msra.mxu0 0
        %3166 = vmatprep.subr.bf16.mxu0 0
        %3167 = vmatpush2.bf16.msra.mxu0 0
        %3168 = vmatprep.subr.bf16.mxu0 0
        %3169 = vmatpush2.bf16.msra.mxu0 0
        %3170 = vmatprep.subr.bf16.mxu0 0
        %3171 = vmatpush2.bf16.msra.mxu0 0
        %3172 = vmatprep.subr.bf16.mxu0 0
        %3173 = vmatpush2.bf16.msra.mxu0 0
        %3174 = vmatprep.mubr.bf16.mxu0 0
        %3175 = vmatmul.mubr.bf16.gmra.mxu0 %v3140
        %v3176 = vpop.f32.mrf.mxu0
        %v3177 = vadd.f32 %v3114, %v3176
        %v3178 = vpop.f32.mrf.mxu0
        %v3179 = vpop.f32.mrf.mxu0
        %v3180 = vpop.f32.mrf.mxu0
        %3181 = vdwg.mxu0
        %v3182 = vmax.f32 %v3177, 0.0
        %v3183 = vpack.c.bf16 %v3182, %v3182
        %v3184 = vld [vmem:[#allocation26] sm:$0xf]
        %v3185 = vld [vmem:[#allocation26 + $0x4] sm:$0xf]
        %v3186 = vld [vmem:[#allocation26 + $0x8] sm:$0xf]
        %v3187 = vld [vmem:[#allocation26 + $0xc] sm:$0xf]
        %v3188 = vld [vmem:[#allocation26 + $0x10] sm:$0xf]
        %v3189 = vld [vmem:[#allocation26 + $0x14] sm:$0xf]
        %v3190 = vld [vmem:[#allocation26 + $0x18] sm:$0xf]
        %v3191 = vld [vmem:[#allocation26 + $0x1c] sm:$0xf]
        %v3192 = vld [vmem:[%s27 + $0x21] ss:$0 sm:$0xff]
        %v3201 = vunpack.c.l.b16 %v3184
        %v3202 = vunpack.c.l.b16 %v3185
        %v3203 = vunpack.c.l.b16 %v3186
        %v3204 = vunpack.c.l.b16 %v3187
        %v3205 = vunpack.c.l.b16 %v3188
        %v3206 = vunpack.c.l.b16 %v3189
        %v3207 = vunpack.c.l.b16 %v3190
        %v3208 = vunpack.c.l.b16 %v3191
        %v3209 = vpack.c.b16 %v3202, %v3201
        %v3210 = vpack.c.b16 %v3204, %v3203
        %v3211 = vpack.c.b16 %v3206, %v3205
        %v3212 = vpack.c.b16 %v3208, %v3207
        %v3218 = vsel %vm1434, %v3183, 0
        %3220 = vmatprep.subr.bf16.mxu0 0
        %3221 = vmatpush1.bf16.msra.mxu0 0
        %3222 = vmatprep.subr.bf16.mxu0 0
        %3223 = vmatpush1.bf16.msra.mxu0 0
        %3224 = vmatprep.subr.bf16.mxu0 0
        %3225 = vmatpush1.bf16.msra.mxu0 0
        %3226 = vmatprep.subr.bf16.mxu0 0
        %3227 = vmatpush1.bf16.msra.mxu0 0
        %3228 = vmatprep.subr.bf16.mxu0 0
        %3229 = vmatpush1.bf16.msra.mxu0 %v3212
        %3230 = vmatprep.subr.bf16.mxu0 0
        %3231 = vmatpush1.bf16.msra.mxu0 %v3211
        %3232 = vmatprep.subr.bf16.mxu0 0
        %3233 = vmatpush1.bf16.msra.mxu0 %v3210
        %3234 = vmatprep.subr.bf16.mxu0 0
        %3235 = vmatpush1.bf16.msra.mxu0 %v3209
        %3236 = vmatprep.subr.bf16.mxu0 0
        %3237 = vmatpush2.bf16.msra.mxu0 0
        %3238 = vmatprep.subr.bf16.mxu0 0
        %3239 = vmatpush2.bf16.msra.mxu0 0
        %3240 = vmatprep.subr.bf16.mxu0 0
        %3241 = vmatpush2.bf16.msra.mxu0 0
        %3242 = vmatprep.subr.bf16.mxu0 0
        %3243 = vmatpush2.bf16.msra.mxu0 0
        %3244 = vmatprep.subr.bf16.mxu0 0
        %3245 = vmatpush2.bf16.msra.mxu0 0
        %3246 = vmatprep.subr.bf16.mxu0 0
        %3247 = vmatpush2.bf16.msra.mxu0 0
        %3248 = vmatprep.subr.bf16.mxu0 0
        %3249 = vmatpush2.bf16.msra.mxu0 0
        %3250 = vmatprep.subr.bf16.mxu0 0
        %3251 = vmatpush2.bf16.msra.mxu0 0
        %3252 = vmatprep.mubr.bf16.mxu0 0
        %3253 = vmatmul.mubr.bf16.gmra.mxu0 %v3218
        %v3254 = vpop.f32.mrf.mxu0
        %v3255 = vadd.f32 %v3192, %v3254
        %v3256 = vpop.f32.mrf.mxu0
        %v3257 = vpop.f32.mrf.mxu0
        %v3258 = vpop.f32.mrf.mxu0
        %3259 = vdwg.mxu0
        %v3260 = vunpack.c.l.bf16 %v3105
        %v3261 = vadd.f32 %v3255, %v3260
        %v3262 = vmax.f32 %v3261, 0.0
        %v3263 = vpack.c.bf16 %v3262, %v3262
        %v3264 = vld [vmem:[#allocation28] sm:$0xf]
        %v3265 = vld [vmem:[#allocation28 + $0x4] sm:$0xf]
        %v3266 = vld [vmem:[#allocation28 + $0x8] sm:$0xf]
        %v3267 = vld [vmem:[#allocation28 + $0xc] sm:$0xf]
        %v3268 = vld [vmem:[#allocation28 + $0x10] sm:$0xf]
        %v3269 = vld [vmem:[#allocation28 + $0x14] sm:$0xf]
        %v3270 = vld [vmem:[#allocation28 + $0x18] sm:$0xf]
        %v3271 = vld [vmem:[#allocation28 + $0x1c] sm:$0xf]
        %v3272 = vld [vmem:[#allocation29] sm:$0xf]
        %v3273 = vld [vmem:[#allocation29 + $0x4] sm:$0xf]
        %v3274 = vld [vmem:[#allocation29 + $0x8] sm:$0xf]
        %v3275 = vld [vmem:[#allocation29 + $0xc] sm:$0xf]
        %v3276 = vld [vmem:[#allocation29 + $0x10] sm:$0xf]
        %v3277 = vld [vmem:[#allocation29 + $0x14] sm:$0xf]
        %v3278 = vld [vmem:[#allocation29 + $0x18] sm:$0xf]
        %v3279 = vld [vmem:[#allocation29 + $0x1c] sm:$0xf]
        %v3288 = vunpack.c.l.b16 %v3272
        %v3289 = vunpack.c.l.b16 %v3273
        %v3290 = vunpack.c.l.b16 %v3274
        %v3291 = vunpack.c.l.b16 %v3275
        %v3292 = vunpack.c.l.b16 %v3276
        %v3293 = vunpack.c.l.b16 %v3277
        %v3294 = vunpack.c.l.b16 %v3278
        %v3295 = vunpack.c.l.b16 %v3279
        %v3296 = vpack.c.b16 %v3289, %v3288
        %v3297 = vpack.c.b16 %v3291, %v3290
        %v3298 = vpack.c.b16 %v3293, %v3292
        %v3299 = vpack.c.b16 %v3295, %v3294
        %3304 = vmatprep.subr.bf16.mxu0 0
        %3305 = vmatpush1.bf16.msra.mxu0 0
        %3306 = vmatprep.subr.bf16.mxu0 0
        %3307 = vmatpush1.bf16.msra.mxu0 0
        %3308 = vmatprep.subr.bf16.mxu0 0
        %3309 = vmatpush1.bf16.msra.mxu0 0
        %3310 = vmatprep.subr.bf16.mxu0 0
        %3311 = vmatpush1.bf16.msra.mxu0 0
        %3312 = vmatprep.subr.bf16.mxu0 0
        %3313 = vmatpush1.bf16.msra.mxu0 %v3299
        %3314 = vmatprep.subr.bf16.mxu0 0
        %3315 = vmatpush1.bf16.msra.mxu0 %v3298
        %3316 = vmatprep.subr.bf16.mxu0 0
        %3317 = vmatpush1.bf16.msra.mxu0 %v3297
        %3318 = vmatprep.subr.bf16.mxu0 0
        %3319 = vmatpush1.bf16.msra.mxu0 %v3296
        %3320 = vmatprep.subr.bf16.mxu0 0
        %3321 = vmatpush2.bf16.msra.mxu0 0
        %3322 = vmatprep.subr.bf16.mxu0 0
        %3323 = vmatpush2.bf16.msra.mxu0 0
        %3324 = vmatprep.subr.bf16.mxu0 0
        %3325 = vmatpush2.bf16.msra.mxu0 0
        %3326 = vmatprep.subr.bf16.mxu0 0
        %3327 = vmatpush2.bf16.msra.mxu0 0
        %3328 = vmatprep.subr.bf16.mxu0 0
        %3329 = vmatpush2.bf16.msra.mxu0 0
        %3330 = vmatprep.subr.bf16.mxu0 0
        %3331 = vmatpush2.bf16.msra.mxu0 0
        %3332 = vmatprep.subr.bf16.mxu0 0
        %3333 = vmatpush2.bf16.msra.mxu0 0
        %3334 = vmatprep.subr.bf16.mxu0 0
        %3335 = vmatpush2.bf16.msra.mxu0 0
        %3336 = vmatprep.mubr.bf16.mxu0 0
        %3337 = vmatmul.mubr.bf16.gmra.mxu0 %v1594
        %v3338 = vpop.f32.mrf.mxu0
        %v3339 = vadd.f32 0.0, %v3338
        %v3340 = vpop.f32.mrf.mxu0
        %v3341 = vpop.f32.mrf.mxu0
        %v3342 = vpop.f32.mrf.mxu0
        %3343 = vdwg.mxu0
        %v3352 = vunpack.c.l.b16 %v3264
        %v3353 = vunpack.c.l.b16 %v3265
        %v3354 = vunpack.c.l.b16 %v3266
        %v3355 = vunpack.c.l.b16 %v3267
        %v3356 = vunpack.c.l.b16 %v3268
        %v3357 = vunpack.c.l.b16 %v3269
        %v3358 = vunpack.c.l.b16 %v3270
        %v3359 = vunpack.c.l.b16 %v3271
        %v3360 = vpack.c.b16 %v3353, %v3352
        %v3361 = vpack.c.b16 %v3355, %v3354
        %v3362 = vpack.c.b16 %v3357, %v3356
        %v3363 = vpack.c.b16 %v3359, %v3358
        %v3369 = vsel %vm1434, %v3263, 0
        %3371 = vmatprep.subr.bf16.mxu0 0
        %3372 = vmatpush1.bf16.msra.mxu0 0
        %3373 = vmatprep.subr.bf16.mxu0 0
        %3374 = vmatpush1.bf16.msra.mxu0 0
        %3375 = vmatprep.subr.bf16.mxu0 0
        %3376 = vmatpush1.bf16.msra.mxu0 0
        %3377 = vmatprep.subr.bf16.mxu0 0
        %3378 = vmatpush1.bf16.msra.mxu0 0
        %3379 = vmatprep.subr.bf16.mxu0 0
        %3380 = vmatpush1.bf16.msra.mxu0 %v3363
        %3381 = vmatprep.subr.bf16.mxu0 0
        %3382 = vmatpush1.bf16.msra.mxu0 %v3362
        %3383 = vmatprep.subr.bf16.mxu0 0
        %3384 = vmatpush1.bf16.msra.mxu0 %v3361
        %3385 = vmatprep.subr.bf16.mxu0 0
        %3386 = vmatpush1.bf16.msra.mxu0 %v3360
        %3387 = vmatprep.subr.bf16.mxu0 0
        %3388 = vmatpush2.bf16.msra.mxu0 0
        %3389 = vmatprep.subr.bf16.mxu0 0
        %3390 = vmatpush2.bf16.msra.mxu0 0
        %3391 = vmatprep.subr.bf16.mxu0 0
        %3392 = vmatpush2.bf16.msra.mxu0 0
        %3393 = vmatprep.subr.bf16.mxu0 0
        %3394 = vmatpush2.bf16.msra.mxu0 0
        %3395 = vmatprep.subr.bf16.mxu0 0
        %3396 = vmatpush2.bf16.msra.mxu0 0
        %3397 = vmatprep.subr.bf16.mxu0 0
        %3398 = vmatpush2.bf16.msra.mxu0 0
        %3399 = vmatprep.subr.bf16.mxu0 0
        %3400 = vmatpush2.bf16.msra.mxu0 0
        %3401 = vmatprep.subr.bf16.mxu0 0
        %3402 = vmatpush2.bf16.msra.mxu0 0
        %3403 = vmatprep.mubr.bf16.mxu0 0
        %3404 = vmatmul.mubr.bf16.gmra.mxu0 %v3369
        %v3405 = vpop.f32.mrf.mxu0
        %v3406 = vadd.f32 %v3339, %v3405
        %v3407 = vpop.f32.mrf.mxu0
        %v3408 = vpop.f32.mrf.mxu0
        %v3409 = vpop.f32.mrf.mxu0
        %3410 = vdwg.mxu0
        %v3411 = vld [vmem:[%s27 + $0x22] ss:$0 sm:$0xff]
        %v3412 = vadd.f32 %v3406, %v3411
        %v3413 = vpack.c.bf16 %v3412, %v3412
        %v3414 = vld [vmem:[#allocation31] sm:$0xf]
        %v3415 = vld [vmem:[#allocation31 + $0x4] sm:$0xf]
        %v3416 = vld [vmem:[#allocation31 + $0x8] sm:$0xf]
        %v3417 = vld [vmem:[#allocation31 + $0xc] sm:$0xf]
        %v3418 = vld [vmem:[#allocation31 + $0x10] sm:$0xf]
        %v3419 = vld [vmem:[#allocation31 + $0x14] sm:$0xf]
        %v3420 = vld [vmem:[#allocation31 + $0x18] sm:$0xf]
        %v3421 = vld [vmem:[#allocation31 + $0x1c] sm:$0xf]
        %v3422 = vld [vmem:[%s27 + $0x23] ss:$0 sm:$0xff]
        %v3431 = vunpack.c.l.b16 %v3414
        %v3432 = vunpack.c.l.b16 %v3415
        %v3433 = vunpack.c.l.b16 %v3416
        %v3434 = vunpack.c.l.b16 %v3417
        %v3435 = vunpack.c.l.b16 %v3418
        %v3436 = vunpack.c.l.b16 %v3419
        %v3437 = vunpack.c.l.b16 %v3420
        %v3438 = vunpack.c.l.b16 %v3421
        %v3439 = vpack.c.b16 %v3432, %v3431
        %v3440 = vpack.c.b16 %v3434, %v3433
        %v3441 = vpack.c.b16 %v3436, %v3435
        %v3442 = vpack.c.b16 %v3438, %v3437
        %v3448 = vsel %vm1434, %v3413, 0
        %3450 = vmatprep.subr.bf16.mxu0 0
        %3451 = vmatpush1.bf16.msra.mxu0 0
        %3452 = vmatprep.subr.bf16.mxu0 0
        %3453 = vmatpush1.bf16.msra.mxu0 0
        %3454 = vmatprep.subr.bf16.mxu0 0
        %3455 = vmatpush1.bf16.msra.mxu0 0
        %3456 = vmatprep.subr.bf16.mxu0 0
        %3457 = vmatpush1.bf16.msra.mxu0 0
        %3458 = vmatprep.subr.bf16.mxu0 0
        %3459 = vmatpush1.bf16.msra.mxu0 %v3442
        %3460 = vmatprep.subr.bf16.mxu0 0
        %3461 = vmatpush1.bf16.msra.mxu0 %v3441
        %3462 = vmatprep.subr.bf16.mxu0 0
        %3463 = vmatpush1.bf16.msra.mxu0 %v3440
        %3464 = vmatprep.subr.bf16.mxu0 0
        %3465 = vmatpush1.bf16.msra.mxu0 %v3439
        %3466 = vmatprep.subr.bf16.mxu0 0
        %3467 = vmatpush2.bf16.msra.mxu0 0
        %3468 = vmatprep.subr.bf16.mxu0 0
        %3469 = vmatpush2.bf16.msra.mxu0 0
        %3470 = vmatprep.subr.bf16.mxu0 0
        %3471 = vmatpush2.bf16.msra.mxu0 0
        %3472 = vmatprep.subr.bf16.mxu0 0
        %3473 = vmatpush2.bf16.msra.mxu0 0
        %3474 = vmatprep.subr.bf16.mxu0 0
        %3475 = vmatpush2.bf16.msra.mxu0 0
        %3476 = vmatprep.subr.bf16.mxu0 0
        %3477 = vmatpush2.bf16.msra.mxu0 0
        %3478 = vmatprep.subr.bf16.mxu0 0
        %3479 = vmatpush2.bf16.msra.mxu0 0
        %3480 = vmatprep.subr.bf16.mxu0 0
        %3481 = vmatpush2.bf16.msra.mxu0 0
        %3482 = vmatprep.mubr.bf16.mxu0 0
        %3483 = vmatmul.mubr.bf16.gmra.mxu0 %v3448
        %v3484 = vpop.f32.mrf.mxu0
        %v3485 = vadd.f32 %v3422, %v3484
        %v3486 = vpop.f32.mrf.mxu0
        %v3487 = vpop.f32.mrf.mxu0
        %v3488 = vpop.f32.mrf.mxu0
        %3489 = vdwg.mxu0
        %v3490 = vmax.f32 %v3485, 0.0
        %v3491 = vpack.c.bf16 %v3490, %v3490
        %v3492 = vld [vmem:[#allocation32] sm:$0xf]
        %v3493 = vld [vmem:[#allocation32 + $0x4] sm:$0xf]
        %v3494 = vld [vmem:[#allocation32 + $0x8] sm:$0xf]
        %v3495 = vld [vmem:[#allocation32 + $0xc] sm:$0xf]
        %v3496 = vld [vmem:[#allocation32 + $0x10] sm:$0xf]
        %v3497 = vld [vmem:[#allocation32 + $0x14] sm:$0xf]
        %v3498 = vld [vmem:[#allocation32 + $0x18] sm:$0xf]
        %v3499 = vld [vmem:[#allocation32 + $0x1c] sm:$0xf]
        %v3500 = vld [vmem:[%s27 + $0x24] ss:$0 sm:$0xff]
        %v3509 = vunpack.c.l.b16 %v3492
        %v3510 = vunpack.c.l.b16 %v3493
        %v3511 = vunpack.c.l.b16 %v3494
        %v3512 = vunpack.c.l.b16 %v3495
        %v3513 = vunpack.c.l.b16 %v3496
        %v3514 = vunpack.c.l.b16 %v3497
        %v3515 = vunpack.c.l.b16 %v3498
        %v3516 = vunpack.c.l.b16 %v3499
        %v3517 = vpack.c.b16 %v3510, %v3509
        %v3518 = vpack.c.b16 %v3512, %v3511
        %v3519 = vpack.c.b16 %v3514, %v3513
        %v3520 = vpack.c.b16 %v3516, %v3515
        %v3526 = vsel %vm1434, %v3491, 0
        %3528 = vmatprep.subr.bf16.mxu0 0
        %3529 = vmatpush1.bf16.msra.mxu0 0
        %3530 = vmatprep.subr.bf16.mxu0 0
        %3531 = vmatpush1.bf16.msra.mxu0 0
        %3532 = vmatprep.subr.bf16.mxu0 0
        %3533 = vmatpush1.bf16.msra.mxu0 0
        %3534 = vmatprep.subr.bf16.mxu0 0
        %3535 = vmatpush1.bf16.msra.mxu0 0
        %3536 = vmatprep.subr.bf16.mxu0 0
        %3537 = vmatpush1.bf16.msra.mxu0 %v3520
        %3538 = vmatprep.subr.bf16.mxu0 0
        %3539 = vmatpush1.bf16.msra.mxu0 %v3519
        %3540 = vmatprep.subr.bf16.mxu0 0
        %3541 = vmatpush1.bf16.msra.mxu0 %v3518
        %3542 = vmatprep.subr.bf16.mxu0 0
        %3543 = vmatpush1.bf16.msra.mxu0 %v3517
        %3544 = vmatprep.subr.bf16.mxu0 0
        %3545 = vmatpush2.bf16.msra.mxu0 0
        %3546 = vmatprep.subr.bf16.mxu0 0
        %3547 = vmatpush2.bf16.msra.mxu0 0
        %3548 = vmatprep.subr.bf16.mxu0 0
        %3549 = vmatpush2.bf16.msra.mxu0 0
        %3550 = vmatprep.subr.bf16.mxu0 0
        %3551 = vmatpush2.bf16.msra.mxu0 0
        %3552 = vmatprep.subr.bf16.mxu0 0
        %3553 = vmatpush2.bf16.msra.mxu0 0
        %3554 = vmatprep.subr.bf16.mxu0 0
        %3555 = vmatpush2.bf16.msra.mxu0 0
        %3556 = vmatprep.subr.bf16.mxu0 0
        %3557 = vmatpush2.bf16.msra.mxu0 0
        %3558 = vmatprep.subr.bf16.mxu0 0
        %3559 = vmatpush2.bf16.msra.mxu0 0
        %3560 = vmatprep.mubr.bf16.mxu0 0
        %3561 = vmatmul.mubr.bf16.gmra.mxu0 %v3526
        %v3562 = vpop.f32.mrf.mxu0
        %v3563 = vadd.f32 %v3500, %v3562
        %v3564 = vpop.f32.mrf.mxu0
        %v3565 = vpop.f32.mrf.mxu0
        %v3566 = vpop.f32.mrf.mxu0
        %3567 = vdwg.mxu0
        %v3568 = vunpack.c.l.bf16 %v3413
        %v3569 = vadd.f32 %v3563, %v3568
        %v3570 = vmax.f32 %v3569, 0.0
        %v3571 = vpack.c.bf16 %v3570, %v3570
        %v3572 = vld [vmem:[#allocation34] sm:$0xf]
        %v3573 = vld [vmem:[#allocation34 + $0x4] sm:$0xf]
        %v3574 = vld [vmem:[#allocation34 + $0x8] sm:$0xf]
        %v3575 = vld [vmem:[#allocation34 + $0xc] sm:$0xf]
        %v3576 = vld [vmem:[#allocation34 + $0x10] sm:$0xf]
        %v3577 = vld [vmem:[#allocation34 + $0x14] sm:$0xf]
        %v3578 = vld [vmem:[#allocation34 + $0x18] sm:$0xf]
        %v3579 = vld [vmem:[#allocation34 + $0x1c] sm:$0xf]
        %v3580 = vld [vmem:[#allocation35] sm:$0xf]
        %v3581 = vld [vmem:[#allocation35 + $0x4] sm:$0xf]
        %v3582 = vld [vmem:[#allocation35 + $0x8] sm:$0xf]
        %v3583 = vld [vmem:[#allocation35 + $0xc] sm:$0xf]
        %v3588 = vunpack.c.l.b16 %v3580
        %v3589 = vunpack.c.l.b16 %v3581
        %v3590 = vunpack.c.l.b16 %v3582
        %v3591 = vunpack.c.l.b16 %v3583
        %v3592 = vpack.c.b16 %v3589, %v3588
        %v3593 = vpack.c.b16 %v3591, %v3590
        %3596 = vmatprep.subr.bf16.mxu0 0
        %3597 = vmatpush1.bf16.msra.mxu0 0
        %3598 = vmatprep.subr.bf16.mxu0 0
        %3599 = vmatpush1.bf16.msra.mxu0 0
        %3600 = vmatprep.subr.bf16.mxu0 0
        %3601 = vmatpush1.bf16.msra.mxu0 0
        %3602 = vmatprep.subr.bf16.mxu0 0
        %3603 = vmatpush1.bf16.msra.mxu0 0
        %3604 = vmatprep.subr.bf16.mxu0 0
        %3605 = vmatpush1.bf16.msra.mxu0 0
        %3606 = vmatprep.subr.bf16.mxu0 0
        %3607 = vmatpush1.bf16.msra.mxu0 0
        %3608 = vmatprep.subr.bf16.mxu0 0
        %3609 = vmatpush1.bf16.msra.mxu0 %v3593
        %3610 = vmatprep.subr.bf16.mxu0 0
        %3611 = vmatpush1.bf16.msra.mxu0 %v3592
        %3612 = vmatprep.subr.bf16.mxu0 0
        %3613 = vmatpush2.bf16.msra.mxu0 0
        %3614 = vmatprep.subr.bf16.mxu0 0
        %3615 = vmatpush2.bf16.msra.mxu0 0
        %3616 = vmatprep.subr.bf16.mxu0 0
        %3617 = vmatpush2.bf16.msra.mxu0 0
        %3618 = vmatprep.subr.bf16.mxu0 0
        %3619 = vmatpush2.bf16.msra.mxu0 0
        %3620 = vmatprep.subr.bf16.mxu0 0
        %3621 = vmatpush2.bf16.msra.mxu0 0
        %3622 = vmatprep.subr.bf16.mxu0 0
        %3623 = vmatpush2.bf16.msra.mxu0 0
        %3624 = vmatprep.subr.bf16.mxu0 0
        %3625 = vmatpush2.bf16.msra.mxu0 0
        %3626 = vmatprep.subr.bf16.mxu0 0
        %3627 = vmatpush2.bf16.msra.mxu0 0
        %3628 = vmatprep.mubr.bf16.mxu0 0
        %3629 = vmatmul.mubr.bf16.gmra.mxu0 %v1358
        %v3630 = vpop.f32.mrf.mxu0
        %v3631 = vadd.f32 0.0, %v3630
        %v3632 = vpop.f32.mrf.mxu0
        %v3633 = vpop.f32.mrf.mxu0
        %v3634 = vpop.f32.mrf.mxu0
        %3635 = vdwg.mxu0
        %v3644 = vunpack.c.l.b16 %v3572
        %v3645 = vunpack.c.l.b16 %v3573
        %v3646 = vunpack.c.l.b16 %v3574
        %v3647 = vunpack.c.l.b16 %v3575
        %v3648 = vunpack.c.l.b16 %v3576
        %v3649 = vunpack.c.l.b16 %v3577
        %v3650 = vunpack.c.l.b16 %v3578
        %v3651 = vunpack.c.l.b16 %v3579
        %v3652 = vpack.c.b16 %v3645, %v3644
        %v3653 = vpack.c.b16 %v3647, %v3646
        %v3654 = vpack.c.b16 %v3649, %v3648
        %v3655 = vpack.c.b16 %v3651, %v3650
        %v3661 = vsel %vm1434, %v3571, 0
        %3663 = vmatprep.subr.bf16.mxu0 0
        %3664 = vmatpush1.bf16.msra.mxu0 0
        %3665 = vmatprep.subr.bf16.mxu0 0
        %3666 = vmatpush1.bf16.msra.mxu0 0
        %3667 = vmatprep.subr.bf16.mxu0 0
        %3668 = vmatpush1.bf16.msra.mxu0 0
        %3669 = vmatprep.subr.bf16.mxu0 0
        %3670 = vmatpush1.bf16.msra.mxu0 0
        %3671 = vmatprep.subr.bf16.mxu0 0
        %3672 = vmatpush1.bf16.msra.mxu0 %v3655
        %3673 = vmatprep.subr.bf16.mxu0 0
        %3674 = vmatpush1.bf16.msra.mxu0 %v3654
        %3675 = vmatprep.subr.bf16.mxu0 0
        %3676 = vmatpush1.bf16.msra.mxu0 %v3653
        %3677 = vmatprep.subr.bf16.mxu0 0
        %3678 = vmatpush1.bf16.msra.mxu0 %v3652
        %3679 = vmatprep.subr.bf16.mxu0 0
        %3680 = vmatpush2.bf16.msra.mxu0 0
        %3681 = vmatprep.subr.bf16.mxu0 0
        %3682 = vmatpush2.bf16.msra.mxu0 0
        %3683 = vmatprep.subr.bf16.mxu0 0
        %3684 = vmatpush2.bf16.msra.mxu0 0
        %3685 = vmatprep.subr.bf16.mxu0 0
        %3686 = vmatpush2.bf16.msra.mxu0 0
        %3687 = vmatprep.subr.bf16.mxu0 0
        %3688 = vmatpush2.bf16.msra.mxu0 0
        %3689 = vmatprep.subr.bf16.mxu0 0
        %3690 = vmatpush2.bf16.msra.mxu0 0
        %3691 = vmatprep.subr.bf16.mxu0 0
        %3692 = vmatpush2.bf16.msra.mxu0 0
        %3693 = vmatprep.subr.bf16.mxu0 0
        %3694 = vmatpush2.bf16.msra.mxu0 0
        %3695 = vmatprep.mubr.bf16.mxu0 0
        %3696 = vmatmul.mubr.bf16.gmra.mxu0 %v3661
        %v3697 = vpop.f32.mrf.mxu0
        %v3698 = vadd.f32 %v3631, %v3697
        %v3699 = vpop.f32.mrf.mxu0
        %v3700 = vpop.f32.mrf.mxu0
        %v3701 = vpop.f32.mrf.mxu0
        %3702 = vdwg.mxu0
        %v3703 = vmax.f32 %v3698, 0.0
        %v3704 = vpack.c.bf16 %v3703, %v3703
        %v3705 = vld [vmem:[%s26] sm:$0xf]
        %v3706 = vld [vmem:[%s26 + $0x4] sm:$0xf]
        %v3707 = vld [vmem:[%s26 + $0x8] sm:$0xf]
        %v3708 = vld [vmem:[%s26 + $0xc] sm:$0xf]
        %v3709 = vld [vmem:[%s26 + $0x10] sm:$0xf]
        %v3710 = vld [vmem:[%s26 + $0x14] sm:$0xf]
        %v3711 = vld [vmem:[%s26 + $0x18] sm:$0xf]
        %v3712 = vld [vmem:[%s26 + $0x1c] sm:$0xf]
        %v3713 = vld [vmem:[%s27 + $0x25] ss:$0 sm:$0xff]
        %v3722 = vunpack.c.l.b16 %v3705
        %v3723 = vunpack.c.l.b16 %v3706
        %v3724 = vunpack.c.l.b16 %v3707
        %v3725 = vunpack.c.l.b16 %v3708
        %v3726 = vunpack.c.l.b16 %v3709
        %v3727 = vunpack.c.l.b16 %v3710
        %v3728 = vunpack.c.l.b16 %v3711
        %v3729 = vunpack.c.l.b16 %v3712
        %v3730 = vpack.c.b16 %v3723, %v3722
        %v3731 = vpack.c.b16 %v3725, %v3724
        %v3732 = vpack.c.b16 %v3727, %v3726
        %v3733 = vpack.c.b16 %v3729, %v3728
        %v3739 = vsel %vm1434, %v3704, 0
        %3741 = vmatprep.subr.bf16.mxu0 0
        %3742 = vmatpush1.bf16.msra.mxu0 0
        %3743 = vmatprep.subr.bf16.mxu0 0
        %3744 = vmatpush1.bf16.msra.mxu0 0
        %3745 = vmatprep.subr.bf16.mxu0 0
        %3746 = vmatpush1.bf16.msra.mxu0 0
        %3747 = vmatprep.subr.bf16.mxu0 0
        %3748 = vmatpush1.bf16.msra.mxu0 0
        %3749 = vmatprep.subr.bf16.mxu0 0
        %3750 = vmatpush1.bf16.msra.mxu0 %v3733
        %3751 = vmatprep.subr.bf16.mxu0 0
        %3752 = vmatpush1.bf16.msra.mxu0 %v3732
        %3753 = vmatprep.subr.bf16.mxu0 0
        %3754 = vmatpush1.bf16.msra.mxu0 %v3731
        %3755 = vmatprep.subr.bf16.mxu0 0
        %3756 = vmatpush1.bf16.msra.mxu0 %v3730
        %3757 = vmatprep.subr.bf16.mxu0 0
        %3758 = vmatpush2.bf16.msra.mxu0 0
        %3759 = vmatprep.subr.bf16.mxu0 0
        %3760 = vmatpush2.bf16.msra.mxu0 0
        %3761 = vmatprep.subr.bf16.mxu0 0
        %3762 = vmatpush2.bf16.msra.mxu0 0
        %3763 = vmatprep.subr.bf16.mxu0 0
        %3764 = vmatpush2.bf16.msra.mxu0 0
        %3765 = vmatprep.subr.bf16.mxu0 0
        %3766 = vmatpush2.bf16.msra.mxu0 0
        %3767 = vmatprep.subr.bf16.mxu0 0
        %3768 = vmatpush2.bf16.msra.mxu0 0
        %3769 = vmatprep.subr.bf16.mxu0 0
        %3770 = vmatpush2.bf16.msra.mxu0 0
        %3771 = vmatprep.subr.bf16.mxu0 0
        %3772 = vmatpush2.bf16.msra.mxu0 0
        %3773 = vmatprep.mubr.bf16.mxu0 0
        %3774 = vmatmul.mubr.bf16.gmra.mxu0 %v3739
        %v3775 = vpop.f32.mrf.mxu0
        %v3776 = vadd.f32 %v3713, %v3775
        %v3777 = vpop.f32.mrf.mxu0
        %v3778 = vpop.f32.mrf.mxu0
        %v3779 = vpop.f32.mrf.mxu0
        %3780 = vdwg.mxu0
        %v3781 = vmax.f32 %v3776, 0.0
        %v3782 = vsel %vm1230, %v3781, -inf
        %3783 = vmax.xlane.f32.xlu0 %v3782
        %v3784 = vpop.xlane.xlu0 %3783
        %v3785 = vmax.f32 %v3784, 1e-12
        %v3786 = vrcp.pop %v3785
        %v3787 = vmul.f32 %v3781, %v3786
        %v3788 = vsel %vm1230, %v3787, -inf
        %3789 = vmax.xlane.f32.xlu0 %v3788
        %v3790 = vpop.xlane.xlu0 %3789
        %3791 = vst.msk [vmem:[%s1154] sm:$0xff] %vm1230, %v3776
        %vm3792 = vcmask 523520
        %3793 = vst.msk [vmem:[%s1154] sm:$0xff] %vm3792, %v3790
        %s3794 = sand.u32 %s655, 1
        %s3795 = scalar_lea.sflag [#allocation4], %s3794
        %s3796 = sand.u32 %s655, 1
        %s3797 = smul.addr %s3796, 8
        %s3798 = scalar_lea.vmem [#allocation37], %s3797
        // Predicated region
        $region221: #{tpu_custom_call.1} parent=131 // pred_check
          %p3799 = pneg %p665
        $region222: #{tpu_custom_call.1} parent=131 // pred_check_branch
          %3801 = sbr.rel (%p3799) target = $region224
        $region223: #{tpu_custom_call.1} parent=131 // pred_region
          %s3803 = ssub.s32 128, 128
          %3804 = vsyncadd %s3795, %s3803
          %s3805 = smul.addr %s54, 128
          %s3806 = scalar_lea.hbm %s28, %s3805
          %s3808 = sshll.u32 %s3798, 4
          %s3809 = int_to_ptr.vmem [resolvable:$true] %s3808
          %3811 = dma.vmem_to_hbm [thread:$0]  %s3809, 128, %s3806, %s3795
        $region224: #{tpu_custom_call.1} parent=131 // pred_fallthru
          _
      $region132: #{tpu_custom_call.1} parent=5 // pred_fallthru
        _
      %p3812 = scmp.le.s32.totalorder 2, %s49
      // Predicated region
      $region225: #{tpu_custom_call.1} parent=5 // pred_check
        %p3813 = pneg %p3812
      $region226: #{tpu_custom_call.1} parent=5 // pred_check_branch
        %3815 = sbr.rel (%p3813) target = $region228
      $region227: #{tpu_custom_call.1} parent=5 // pred_region
        %s3816 = ssub.s32 %s49, 2
        // Predicated region
        $region229: #{tpu_custom_call.1} parent=227 // pred_check
          %p3817 = pneg %p671
        $region230: #{tpu_custom_call.1} parent=227 // pred_check_branch
          %3819 = sbr.rel (%p3817) target = $region232
        $region231: #{tpu_custom_call.1} parent=227 // pred_region
          %s3820 = sand.u32 %s656, 1
          %s3821 = scalar_lea.sflag [#allocation4], %s3820
          %s3822 = sand.u32 %s656, 1
          %s3823 = smul.addr %s3822, 8
          %s3824 = scalar_lea.vmem [#allocation37], %s3823
          %3825 = dma.done %s3821, 128
        $region232: #{tpu_custom_call.1} parent=227 // pred_fallthru
          _
      $region228: #{tpu_custom_call.1} parent=5 // pred_fallthru
        _
    $region6: #{tpu_custom_call.1} parent=1 // loop_footer
      %s53 = sadd.s32 1, %s49
    $region7: #{tpu_custom_call.1} parent=1 // loop_footer_branch
      %48 = sbr.rel target = $region3
    $region8: #{tpu_custom_call.1} parent=1 // loop_exit
      _
    %3826 = vsyncpa [#allocation3], 1
    %s3827 = scalar_lea.sflag [#allocation3], 1
    %3828 = vsyncpa %s3827, 1
    %3829 = vsyncpa [#allocation6], 1
    %3830 = vsyncpa [#allocation9], 1
    %3831 = vsyncpa [#allocation12], 1
    %3832 = vsyncpa [#allocation15], 1
    %3833 = vsyncpa [#allocation18], 1
    %3834 = vsyncpa [#allocation21], 1
    %3835 = vsyncpa [#allocation24], 1
    %3836 = vsyncpa [#allocation27], 1
    %3837 = vsyncpa [#allocation30], 1
    %3838 = vsyncpa [#allocation33], 1
    %3839 = vsyncpa [#allocation36], 1
    %3840 = vsyncpa [#allocation4], 1
    %s3841 = scalar_lea.sflag [#allocation4], 1
    %3842 = vsyncpa %s3841, 1

</llo_original>
